<compile_context>
chip_gen: v7x
topology: tpu7x:2x2x1
jax: 0.10.0
libtpu: 0.0.40
codegen_flags: <defaults>
</compile_context>

<pallas_src>
import functools

import jax
import jax.numpy as jnp
import numpy as np
from jax.experimental import pallas as pl
from jax.experimental.pallas import tpu as pltpu


# ----------------------------------------------------------------------------
# Input-projection kernels (row-tiled matmul on the MXU, bf16 in / f32 acc)
# ----------------------------------------------------------------------------
def _proj1_kernel(x_ref, w_ref, b_ref, o_ref):
    # o = x @ w + b      x:(tm,In) f32  w:(In,8H) bf16  b:(1,8H) f32
    o_ref[...] = (
        jnp.dot(x_ref[...].astype(jnp.bfloat16), w_ref[...],
                preferred_element_type=jnp.float32)
        + b_ref[...]
    )


def _proj2_kernel(xf_ref, xb_ref, wf_ref, wb_ref, b_ref, o_ref):
    # o = xf @ wf + xb @ wb + b   (== concat([xf,xb],-1) @ concat([wf,wb],0) + b)
    o_ref[...] = (
        jnp.dot(xf_ref[...].astype(jnp.bfloat16), wf_ref[...],
                preferred_element_type=jnp.float32)
        + jnp.dot(xb_ref[...].astype(jnp.bfloat16), wb_ref[...],
                  preferred_element_type=jnp.float32)
        + b_ref[...]
    )


def _row_tile(n_rows):
    # Full array if it is small; otherwise 256-row blocks so the projection
    # pipelines its HBM traffic and stays within scoped VMEM on v7x.
    return n_rows if n_rows <= 256 else 256


def project_embed(x, w, b):
    """(N, In) @ (In, 8H) + (8H,) -> (N, 8H)."""
    n, k = x.shape
    out = w.shape[1]
    tm = _row_tile(n)
    return pl.pallas_call(
        _proj1_kernel,
        out_shape=jax.ShapeDtypeStruct((n, out), jnp.float32),
        grid=(pl.cdiv(n, tm),),
        in_specs=[
            pl.BlockSpec((tm, k), lambda i: (i, 0)),
            pl.BlockSpec((k, out), lambda i: (0, 0)),
            pl.BlockSpec((1, out), lambda i: (0, 0)),
        ],
        out_specs=pl.BlockSpec((tm, out), lambda i: (i, 0)),
        compiler_params=pltpu.CompilerParams(dimension_semantics=("parallel",)),
    )(x, w, b.reshape(1, out))


def project_bidi(xf, xb, wf, wb, b):
    """xf @ wf + xb @ wb + b, equivalent to concat([xf, xb], -1) @ W_ih^T + b."""
    n, h = xf.shape
    out = wf.shape[1]
    tm = _row_tile(n)
    return pl.pallas_call(
        _proj2_kernel,
        out_shape=jax.ShapeDtypeStruct((n, out), jnp.float32),
        grid=(pl.cdiv(n, tm),),
        in_specs=[
            pl.BlockSpec((tm, h), lambda i: (i, 0)),
            pl.BlockSpec((tm, h), lambda i: (i, 0)),
            pl.BlockSpec((h, out), lambda i: (0, 0)),
            pl.BlockSpec((h, out), lambda i: (0, 0)),
            pl.BlockSpec((1, out), lambda i: (0, 0)),
        ],
        out_specs=pl.BlockSpec((tm, out), lambda i: (i, 0)),
        compiler_params=pltpu.CompilerParams(dimension_semantics=("parallel",)),
    )(xf, xb, wf, wb, b.reshape(1, out))


# ----------------------------------------------------------------------------
# Fused bidirectional LSTM recurrence (one kernel per layer, time-chunked)
# ----------------------------------------------------------------------------
def _bilstm_kernel(xg_f_ref, xg_b_ref, whh_ref, len_ref,
                   out_f_ref, out_b_ref, h_ref, c_ref,
                   *, hidden, batch, chunk, seq_len):
    cidx = pl.program_id(0)
    H, B = hidden, batch

    @pl.when(cidx == 0)
    def _():
        h_ref[...] = jnp.zeros_like(h_ref)
        c_ref[...] = jnp.zeros_like(c_ref)

    lens = len_ref[...]          # (B, 1) int32, resident
    whh = whh_ref[...]           # (H, 8H) bf16, resident; [:, :4H]=fwd, [:, 4H:]=bwd

    h_all = h_ref[...]           # (2B, H) f32; rows [0:B)=fwd, [B:2B)=bwd
    c_all = c_ref[...]

    def cell(gates, c_prev):     # PyTorch gate order i, f, g, o
        i_g = jax.nn.sigmoid(gates[:, 0 * H:1 * H])
        f_g = jax.nn.sigmoid(gates[:, 1 * H:2 * H])
        g_g = jnp.tanh(gates[:, 2 * H:3 * H])
        o_g = jax.nn.sigmoid(gates[:, 3 * H:4 * H])
        c_new = f_g * c_prev + i_g * g_g
        h_new = o_g * jnp.tanh(c_new)
        return h_new, c_new

    # Statically unrolled time chunk: `chunk` is a small compile-time constant,
    # so every ref slice below is a static index (no dynamic-slice lowering).
    for j in range(chunk):
        t_f = cidx * chunk + j          # forward timestep
        t_b = seq_len - 1 - t_f         # backward timestep
        jb = chunk - 1 - j              # position of t_b inside its time block

        # One fused recurrent matmul for both directions.
        rec = jnp.dot(h_all.astype(jnp.bfloat16), whh,
                      preferred_element_type=jnp.float32)        # (2B, 8H)
        g_f = xg_f_ref[:, j, :] + rec[:B, :4 * H]                # (B, 4H)
        g_b = xg_b_ref[:, jb, :] + rec[B:, 4 * H:]               # (B, 4H)

        h_f, c_f = cell(g_f, c_all[:B])
        h_b, c_b = cell(g_b, c_all[B:])

        # packed-sequence masking: steps at/after a sequence's length are pad
        m_f = t_f < lens                 # (B, 1) bool
        m_b = t_b < lens                 # (B, 1) bool

        out_f_ref[:, j, :] = jnp.where(m_f, h_f, 0.0)   # pad_packed zeros pads
        out_b_ref[:, jb, :] = jnp.where(m_b, h_b, 0.0)

        h_all = jnp.concatenate(
            [jnp.where(m_f, h_f, h_all[:B]), jnp.where(m_b, h_b, h_all[B:])],
            axis=0)
        c_all = jnp.concatenate(
            [jnp.where(m_f, c_f, c_all[:B]), jnp.where(m_b, c_b, c_all[B:])],
            axis=0)

    h_ref[...] = h_all
    c_ref[...] = c_all


def _pick_chunk(t_len):
    # time-chunk size: a multiple of 8 dividing T (BlockSpec sublane rule),
    # else process the whole sequence in one grid step.
    for tc in (32, 16, 8):
        if t_len % tc == 0:
            return tc
    return t_len


def bilstm_layer(xg, whh_comb, lengths, *, hidden, chunk):
    """One fused bidirectional LSTM layer.

    xg:       (B, T, 8H) precomputed input projections (+ both biases);
              columns [0:4H) feed the forward direction, [4H:8H) the backward.
    whh_comb: (H, 8H) bf16, [:, :4H] = W_hh_fwd^T, [:, 4H:] = W_hh_bwd^T.
    lengths:  (B,) valid lengths.
    Returns (out_fwd, out_bwd), each (B, T, H) batch-first, zero at padding.
    """
    b, t_len, g = xg.shape
    h = hidden
    assert g == 8 * h
    assert (4 * h) % 128 == 0, "need H to be a multiple of 32 (lane alignment)"
    nc = t_len // chunk

    kernel = functools.partial(_bilstm_kernel, hidden=h, batch=b,
                               chunk=chunk, seq_len=t_len)
    return pl.pallas_call(
        kernel,
        out_shape=(jax.ShapeDtypeStruct((b, t_len, h), jnp.float32),
                   jax.ShapeDtypeStruct((b, t_len, h), jnp.float32)),
        grid=(nc,),
        in_specs=[
            # forward time chunk of the forward gate columns
            pl.BlockSpec((b, chunk, 4 * h), lambda c: (0, c, 0)),
            # matching (reversed-order) time chunk of the backward gate columns
            pl.BlockSpec((b, chunk, 4 * h), lambda c: (0, nc - 1 - c, 1)),
            pl.BlockSpec((h, 8 * h), lambda c: (0, 0)),      # W_hh resident
            pl.BlockSpec((b, 1), lambda c: (0, 0)),          # lengths resident
        ],
        out_specs=(
            pl.BlockSpec((b, chunk, h), lambda c: (0, c, 0)),
            pl.BlockSpec((b, chunk, h), lambda c: (0, nc - 1 - c, 0)),
        ),
        scratch_shapes=[
            pltpu.VMEM((2 * b, h), jnp.float32),   # carried h (fwd rows, bwd rows)
            pltpu.VMEM((2 * b, h), jnp.float32),   # carried c
        ],
        compiler_params=pltpu.CompilerParams(
            dimension_semantics=("arbitrary",)),   # sequential recurrence
    )(xg, xg, whh_comb, lengths.reshape(b, 1).astype(jnp.int32))


# ----------------------------------------------------------------------------
# Encoder forward
# ----------------------------------------------------------------------------
def encoder_forward(src, lengths, params, *, hidden, num_layers):
    h = hidden
    b, t_len = src.shape
    chunk = _pick_chunk(t_len)

    # Embedding lookup (gather) kept in plain JAX glue; dropout = identity.
    x = params["emb"][src]                               # (B, T, E), batch-first

    out_f = out_b = None
    for layer in range(num_layers):
        lp = params["lstm"][layer]
        if layer == 0:
            xg = project_embed(x.reshape(b * t_len, -1), lp["w_in"], lp["b"])
        else:
            # equivalent to concat([out_f, out_b], -1) @ W_ih^T + b, no concat
            xg = project_bidi(out_f.reshape(b * t_len, h),
                              out_b.reshape(b * t_len, h),
                              lp["w_in_f"], lp["w_in_b"], lp["b"])
        xg = xg.reshape(b, t_len, 8 * h)
        out_f, out_b = bilstm_layer(xg, lp["w_hh"], lengths,
                                    hidden=h, chunk=chunk)
        # inter-layer dropout: identity in inference mode

    # single concatenate at the very end -> PyTorch batch_first (B, T, 2H)
    # final dropout: identity in inference mode
    return jnp.concatenate([out_f, out_b], axis=-1)


# ----------------------------------------------------------------------------
# Deterministic parameter construction (PyTorch-style init, packed layout)
# ----------------------------------------------------------------------------
def make_params(key, *, vocab, emb_size, hidden, num_layers):
    hsz = hidden
    keys = jax.random.split(key, 1 + num_layers * 2 * 4)
    k = iter(keys)
    params = {"emb": jax.random.normal(next(k), (vocab, emb_size), jnp.float32) * 0.1}
    scale = 1.0 / np.sqrt(hsz)
    layers = []
    for layer in range(num_layers):
        in_dim = emb_size if layer == 0 else 2 * hsz
        raw = []
        for _d in range(2):
            w_ih = jax.random.uniform(next(k), (4 * hsz, in_dim), jnp.float32,
                                      -scale, scale)
            w_hh = jax.random.uniform(next(k), (4 * hsz, hsz), jnp.float32,
                                      -scale, scale)
            b_ih = jax.random.uniform(next(k), (4 * hsz,), jnp.float32,
                                      -scale, scale)
            b_hh = jax.random.uniform(next(k), (4 * hsz,), jnp.float32,
                                      -scale, scale)
            raw.append((w_ih, w_hh, b_ih + b_hh))
        (w_ih_f, w_hh_f, b_f), (w_ih_b, w_hh_b, b_b) = raw
        # combined input projection (In, 8H): cols [0:4H)=fwd gates, [4H:8H)=bwd
        w_in = jnp.concatenate([w_ih_f.T, w_ih_b.T], axis=1).astype(jnp.bfloat16)
        # combined recurrent weight (H, 8H)
        w_hh = jnp.concatenate([w_hh_f.T, w_hh_b.T], axis=1).astype(jnp.bfloat16)
        bias = jnp.concatenate([b_f, b_b], axis=0)           # (8H,) f32
        lp = {"w_hh": w_hh, "b": bias}
        if layer == 0:
            lp["w_in"] = w_in
        else:
            lp["w_in_f"] = w_in[:hsz, :]   # rows multiplying the fwd half-input
            lp["w_in_b"] = w_in[hsz:, :]   # rows multiplying the bwd half-input
        layers.append(lp)
    params["lstm"] = layers
    return params


# ----------------------------------------------------------------------------
if __name__ == "__main__":
    B, T = 2, 8
    VOCAB, EMB, HID, LAYERS = 50, 32, 32, 2

    key = jax.random.PRNGKey(0)
    k_param, k_src = jax.random.split(key)
    params = make_params(k_param, vocab=VOCAB, emb_size=EMB,
                         hidden=HID, num_layers=LAYERS)

    src = jax.random.randint(k_src, (B, T), 0, VOCAB, dtype=jnp.int32)
    lengths = jnp.array([8, 5], dtype=jnp.int32)  # sorted descending (packed)

    fwd = jax.jit(functools.partial(encoder_forward, hidden=HID,
                                    num_layers=LAYERS))
    out = fwd(src, lengths, params)
    out = jax.block_until_ready(out)

    assert out.shape == (B, T, 2 * HID), out.shape
    # pad_packed_sequence semantics: padded timesteps are exactly zero
    assert float(jnp.abs(out[1, 5:, :]).max()) == 0.0
    # valid timesteps are non-trivial
    assert float(jnp.abs(out[0]).max()) > 0.0

    print("KERNEL_OK")
</pallas_src>

<mosaic_0001>
module attributes {stable_mosaic.version = 11 : i64} {
  func.func @_proj1_kernel(%arg0: i32, %arg1: memref<16x32xf32, #tpu.memory_space<vmem>>, %arg2: memref<32x256xbf16, #tpu.memory_space<vmem>>, %arg3: memref<1x256xf32, #tpu.memory_space<vmem>>, %arg4: memref<16x256xf32, #tpu.memory_space<vmem>>) attributes {dimension_semantics = [#tpu.dimension_semantics<parallel>], iteration_bounds = array<i64: 1>, scalar_prefetch = 0 : i64, scratch_operands = 0 : i64, tpu.core_type = #tpu.core_type<tc>, window_params = [{transform_indices = @transform_0, window_bounds = array<i64: 16, 32>}, {pipeline_mode = #tpu.pipeline_mode<synchronous>, transform_indices = @transform_1, window_bounds = array<i64: 32, 256>}, {pipeline_mode = #tpu.pipeline_mode<synchronous>, transform_indices = @transform_2, window_bounds = array<i64: 1, 256>}, {transform_indices = @transform_3, window_bounds = array<i64: 16, 256>}]} {
    %c0 = arith.constant 0 : index
    %c0_0 = arith.constant 0 : index
    %0 = vector.load %arg1[%c0, %c0_0] : memref<16x32xf32, #tpu.memory_space<vmem>>, vector<16x32xf32>
    %1 = arith.truncf %0 : vector<16x32xf32> to vector<16x32xbf16>
    %c0_1 = arith.constant 0 : index
    %c0_2 = arith.constant 0 : index
    %2 = vector.load %arg2[%c0_1, %c0_2] : memref<32x256xbf16, #tpu.memory_space<vmem>>, vector<32x256xbf16>
    %cst = arith.constant dense<0.000000e+00> : vector<16x256xf32>
    %3 = tpu.matmul %1, %2, %cst {dimension_numbers = #tpu.dot_dimension_numbers<[1], [0], [0], [1], [0, 0, 1, 1], [], []>} : vector<16x32xbf16>, vector<32x256xbf16>, vector<16x256xf32> -> vector<16x256xf32>
    %c0_3 = arith.constant 0 : index
    %c0_4 = arith.constant 0 : index
    %4 = vector.load %arg3[%c0_3, %c0_4] : memref<1x256xf32, #tpu.memory_space<vmem>>, vector<1x256xf32>
    %5 = vector.broadcast %4 : vector<1x256xf32> to vector<16x256xf32>
    %6 = arith.addf %3, %5 : vector<16x256xf32>
    %c0_5 = arith.constant 0 : index
    %c0_6 = arith.constant 0 : index
    %7 = vector.load %arg4[%c0_5, %c0_6] : memref<16x256xf32, #tpu.memory_space<vmem>>, vector<16x256xf32>
    tpu.vector_store %arg4[%c0_5, %c0_6], %6 {strides = array<i32>} : memref<16x256xf32, #tpu.memory_space<vmem>>, vector<16x256xf32>,
    return
  }
  func.func @transform_0(%arg0: i32) -> (i32, i32) {
    %c0_i32 = arith.constant 0 : i32
    %c0_i32_0 = arith.constant 0 : i32
    return %arg0, %c0_i32 : i32, i32
  }
  func.func @transform_1(%arg0: i32) -> (i32, i32) {
    %c0_i32 = arith.constant 0 : i32
    %c0_i32_0 = arith.constant 0 : i32
    %c0_i32_1 = arith.constant 0 : i32
    return %c0_i32, %c0_i32_0 : i32, i32
  }
  func.func @transform_2(%arg0: i32) -> (i32, i32) {
    %c0_i32 = arith.constant 0 : i32
    %c0_i32_0 = arith.constant 0 : i32
    %c0_i32_1 = arith.constant 0 : i32
    return %c0_i32, %c0_i32_0 : i32, i32
  }
  func.func @transform_3(%arg0: i32) -> (i32, i32) {
    %c0_i32 = arith.constant 0 : i32
    %c0_i32_0 = arith.constant 0 : i32
    return %arg0, %c0_i32 : i32, i32
  }
}

module attributes {stable_mosaic.version = 11 : i64} {
  func.func @_proj2_kernel(%arg0: i32, %arg1: memref<16x32xf32, #tpu.memory_space<vmem>>, %arg2: memref<16x32xf32, #tpu.memory_space<vmem>>, %arg3: memref<32x256xbf16, #tpu.memory_space<vmem>>, %arg4: memref<32x256xbf16, #tpu.memory_space<vmem>>, %arg5: memref<1x256xf32, #tpu.memory_space<vmem>>, %arg6: memref<16x256xf32, #tpu.memory_space<vmem>>) attributes {dimension_semantics = [#tpu.dimension_semantics<parallel>], iteration_bounds = array<i64: 1>, scalar_prefetch = 0 : i64, scratch_operands = 0 : i64, tpu.core_type = #tpu.core_type<tc>, window_params = [{transform_indices = @transform_0, window_bounds = array<i64: 16, 32>}, {transform_indices = @transform_1, window_bounds = array<i64: 16, 32>}, {pipeline_mode = #tpu.pipeline_mode<synchronous>, transform_indices = @transform_2, window_bounds = array<i64: 32, 256>}, {pipeline_mode = #tpu.pipeline_mode<synchronous>, transform_indices = @transform_3, window_bounds = array<i64: 32, 256>}, {pipeline_mode = #tpu.pipeline_mode<synchronous>, transform_indices = @transform_4, window_bounds = array<i64: 1, 256>}, {transform_indices = @transform_5, window_bounds = array<i64: 16, 256>}]} {
    %c0 = arith.constant 0 : index
    %c0_0 = arith.constant 0 : index
    %0 = vector.load %arg1[%c0, %c0_0] : memref<16x32xf32, #tpu.memory_space<vmem>>, vector<16x32xf32>
    %1 = arith.truncf %0 : vector<16x32xf32> to vector<16x32xbf16>
    %c0_1 = arith.constant 0 : index
    %c0_2 = arith.constant 0 : index
    %2 = vector.load %arg3[%c0_1, %c0_2] : memref<32x256xbf16, #tpu.memory_space<vmem>>, vector<32x256xbf16>
    %cst = arith.constant dense<0.000000e+00> : vector<16x256xf32>
    %3 = tpu.matmul %1, %2, %cst {dimension_numbers = #tpu.dot_dimension_numbers<[1], [0], [0], [1], [0, 0, 1, 1], [], []>} : vector<16x32xbf16>, vector<32x256xbf16>, vector<16x256xf32> -> vector<16x256xf32>
    %c0_3 = arith.constant 0 : index
    %c0_4 = arith.constant 0 : index
    %4 = vector.load %arg2[%c0_3, %c0_4] : memref<16x32xf32, #tpu.memory_space<vmem>>, vector<16x32xf32>
    %5 = arith.truncf %4 : vector<16x32xf32> to vector<16x32xbf16>
    %c0_5 = arith.constant 0 : index
    %c0_6 = arith.constant 0 : index
    %6 = vector.load %arg4[%c0_5, %c0_6] : memref<32x256xbf16, #tpu.memory_space<vmem>>, vector<32x256xbf16>
    %cst_7 = arith.constant dense<0.000000e+00> : vector<16x256xf32>
    %7 = tpu.matmul %5, %6, %cst_7 {dimension_numbers = #tpu.dot_dimension_numbers<[1], [0], [0], [1], [0, 0, 1, 1], [], []>} : vector<16x32xbf16>, vector<32x256xbf16>, vector<16x256xf32> -> vector<16x256xf32>
    %8 = arith.addf %3, %7 : vector<16x256xf32>
    %c0_8 = arith.constant 0 : index
    %c0_9 = arith.constant 0 : index
    %9 = vector.load %arg5[%c0_8, %c0_9] : memref<1x256xf32, #tpu.memory_space<vmem>>, vector<1x256xf32>
    %10 = vector.broadcast %9 : vector<1x256xf32> to vector<16x256xf32>
    %11 = arith.addf %8, %10 : vector<16x256xf32>
    %c0_10 = arith.constant 0 : index
    %c0_11 = arith.constant 0 : index
    %12 = vector.load %arg6[%c0_10, %c0_11] : memref<16x256xf32, #tpu.memory_space<vmem>>, vector<16x256xf32>
    tpu.vector_store %arg6[%c0_10, %c0_11], %11 {strides = array<i32>} : memref<16x256xf32, #tpu.memory_space<vmem>>, vector<16x256xf32>,
    return
  }
  func.func @transform_0(%arg0: i32) -> (i32, i32) {
    %c0_i32 = arith.constant 0 : i32
    %c0_i32_0 = arith.constant 0 : i32
    return %arg0, %c0_i32 : i32, i32
  }
  func.func @transform_1(%arg0: i32) -> (i32, i32) {
    %c0_i32 = arith.constant 0 : i32
    %c0_i32_0 = arith.constant 0 : i32
    return %arg0, %c0_i32 : i32, i32
  }
  func.func @transform_2(%arg0: i32) -> (i32, i32) {
    %c0_i32 = arith.constant 0 : i32
    %c0_i32_0 = arith.constant 0 : i32
    %c0_i32_1 = arith.constant 0 : i32
    return %c0_i32, %c0_i32_0 : i32, i32
  }
  func.func @transform_3(%arg0: i32) -> (i32, i32) {
    %c0_i32 = arith.constant 0 : i32
    %c0_i32_0 = arith.constant 0 : i32
    %c0_i32_1 = arith.constant 0 : i32
    return %c0_i32, %c0_i32_0 : i32, i32
  }
  func.func @transform_4(%arg0: i32) -> (i32, i32) {
    %c0_i32 = arith.constant 0 : i32
    %c0_i32_0 = arith.constant 0 : i32
    %c0_i32_1 = arith.constant 0 : i32
    return %c0_i32, %c0_i32_0 : i32, i32
  }
  func.func @transform_5(%arg0: i32) -> (i32, i32) {
    %c0_i32 = arith.constant 0 : i32
    %c0_i32_0 = arith.constant 0 : i32
    return %arg0, %c0_i32 : i32, i32
  }
}

module attributes {stable_mosaic.version = 11 : i64} {
  func.func @_bilstm_kernel(%arg0: i32, %arg1: memref<2x8x128xf32, #tpu.memory_space<vmem>>, %arg2: memref<2x8x128xf32, #tpu.memory_space<vmem>>, %arg3: memref<32x256xbf16, #tpu.memory_space<vmem>>, %arg4: memref<2x1xi32, #tpu.memory_space<vmem>>, %arg5: memref<2x8x32xf32, #tpu.memory_space<vmem>>, %arg6: memref<2x8x32xf32, #tpu.memory_space<vmem>>, %arg7: memref<4x32xf32, #tpu.memory_space<vmem>>, %arg8: memref<4x32xf32, #tpu.memory_space<vmem>>) attributes {dimension_semantics = [#tpu.dimension_semantics<arbitrary>], iteration_bounds = array<i64: 1>, scalar_prefetch = 0 : i64, scratch_operands = 2 : i64, tpu.core_type = #tpu.core_type<tc>, window_params = [{transform_indices = @transform_0, window_bounds = array<i64: 2, 8, 128>}, {transform_indices = @transform_1, window_bounds = array<i64: 2, 8, 128>}, {pipeline_mode = #tpu.pipeline_mode<synchronous>, transform_indices = @transform_2, window_bounds = array<i64: 32, 256>}, {pipeline_mode = #tpu.pipeline_mode<synchronous>, transform_indices = @transform_3, window_bounds = array<i64: 2, 1>}, {transform_indices = @transform_4, window_bounds = array<i64: 2, 8, 32>}, {transform_indices = @transform_5, window_bounds = array<i64: 2, 8, 32>}]} {
    %c0_i32 = arith.constant 0 : i32
    %0 = arith.cmpi eq, %arg0, %c0_i32 : i32
    %1 = arith.extui %0 : i1 to i32
    %c0_i32_0 = arith.constant 0 : i32
    %2 = arith.cmpi ne, %1, %c0_i32_0 : i32
    scf.if %2 {
      %cst_188 = arith.constant 0.000000e+00 : f32
      %817 = vector.broadcast %cst_188 : f32 to vector<4x32xf32>
      %c0_189 = arith.constant 0 : index
      %c0_190 = arith.constant 0 : index
      %818 = vector.load %arg7[%c0_189, %c0_190] : memref<4x32xf32, #tpu.memory_space<vmem>>, vector<4x32xf32>
      tpu.vector_store %arg7[%c0_189, %c0_190], %817 {strides = array<i32>} : memref<4x32xf32, #tpu.memory_space<vmem>>, vector<4x32xf32>,
      %cst_191 = arith.constant 0.000000e+00 : f32
      %819 = vector.broadcast %cst_191 : f32 to vector<4x32xf32>
      %c0_192 = arith.constant 0 : index
      %c0_193 = arith.constant 0 : index
      %820 = vector.load %arg8[%c0_192, %c0_193] : memref<4x32xf32, #tpu.memory_space<vmem>>, vector<4x32xf32>
      tpu.vector_store %arg8[%c0_192, %c0_193], %819 {strides = array<i32>} : memref<4x32xf32, #tpu.memory_space<vmem>>, vector<4x32xf32>,
    } else {
    }
    %c0 = arith.constant 0 : index
    %c0_1 = arith.constant 0 : index
    %3 = vector.load %arg4[%c0, %c0_1] : memref<2x1xi32, #tpu.memory_space<vmem>>, vector<2x1xi32>
    %c0_2 = arith.constant 0 : index
    %c0_3 = arith.constant 0 : index
    %4 = vector.load %arg3[%c0_2, %c0_3] : memref<32x256xbf16, #tpu.memory_space<vmem>>, vector<32x256xbf16>
    %c0_4 = arith.constant 0 : index
    %c0_5 = arith.constant 0 : index
    %5 = vector.load %arg7[%c0_4, %c0_5] : memref<4x32xf32, #tpu.memory_space<vmem>>, vector<4x32xf32>
    %c0_6 = arith.constant 0 : index
    %c0_7 = arith.constant 0 : index
    %6 = vector.load %arg8[%c0_6, %c0_7] : memref<4x32xf32, #tpu.memory_space<vmem>>, vector<4x32xf32>
    %c8_i32 = arith.constant 8 : i32
    %7 = arith.muli %arg0, %c8_i32 : i32
    %c0_i32_8 = arith.constant 0 : i32
    %8 = arith.addi %7, %c0_i32_8 : i32
    %c7_i32 = arith.constant 7 : i32
    %9 = arith.subi %c7_i32, %8 : i32
    %10 = arith.truncf %5 : vector<4x32xf32> to vector<4x32xbf16>
    %cst = arith.constant dense<0.000000e+00> : vector<4x256xf32>
    %11 = tpu.matmul %10, %4, %cst {dimension_numbers = #tpu.dot_dimension_numbers<[1], [0], [0], [1], [0, 0, 1, 1], [], []>} : vector<4x32xbf16>, vector<32x256xbf16>, vector<4x256xf32> -> vector<4x256xf32>
    %c0_9 = arith.constant 0 : index
    %c0_10 = arith.constant 0 : index
    %c0_11 = arith.constant 0 : index
    %12 = vector.load %arg1[%c0_9, %c0_10, %c0_11] : memref<2x8x128xf32, #tpu.memory_space<vmem>>, vector<2x1x128xf32>
    %13 = vector.shape_cast %12 : vector<2x1x128xf32> to vector<2x128xf32>
    %14 = vector.extract_strided_slice %11 {offsets = [0, 0], sizes = [2, 128], strides = [1, 1]} : vector<4x256xf32> to vector<2x128xf32>
    %15 = arith.addf %13, %14 : vector<2x128xf32>
    %c0_12 = arith.constant 0 : index
    %c7 = arith.constant 7 : index
    %c0_13 = arith.constant 0 : index
    %16 = vector.load %arg2[%c0_12, %c7, %c0_13] : memref<2x8x128xf32, #tpu.memory_space<vmem>>, vector<2x1x128xf32>
    %17 = vector.shape_cast %16 : vector<2x1x128xf32> to vector<2x128xf32>
    %18 = vector.extract_strided_slice %11 {offsets = [2, 128], sizes = [2, 128], strides = [1, 1]} : vector<4x256xf32> to vector<2x128xf32>
    %19 = arith.addf %17, %18 : vector<2x128xf32>
    %20 = vector.extract_strided_slice %6 {offsets = [0, 0], sizes = [2, 32], strides = [1, 1]} : vector<4x32xf32> to vector<2x32xf32>
    %21 = vector.extract_strided_slice %15 {offsets = [0, 0], sizes = [2, 32], strides = [1, 1]} : vector<2x128xf32> to vector<2x32xf32>
    %22 = arith.negf %21 : vector<2x32xf32>
    %23 = math.exp %22 : vector<2x32xf32>
    %cst_14 = arith.constant 1.000000e+00 : f32
    %24 = vector.broadcast %cst_14 : f32 to vector<2x32xf32>
    %25 = arith.addf %24, %23 : vector<2x32xf32>
    %26 = arith.divf %24, %25 : vector<2x32xf32>
    %27 = vector.extract_strided_slice %15 {offsets = [0, 32], sizes = [2, 32], strides = [1, 1]} : vector<2x128xf32> to vector<2x32xf32>
    %28 = arith.negf %27 : vector<2x32xf32>
    %29 = math.exp %28 : vector<2x32xf32>
    %cst_15 = arith.constant 1.000000e+00 : f32
    %30 = vector.broadcast %cst_15 : f32 to vector<2x32xf32>
    %31 = arith.addf %30, %29 : vector<2x32xf32>
    %32 = arith.divf %30, %31 : vector<2x32xf32>
    %33 = vector.extract_strided_slice %15 {offsets = [0, 64], sizes = [2, 32], strides = [1, 1]} : vector<2x128xf32> to vector<2x32xf32>
    %34 = math.tanh %33 : vector<2x32xf32>
    %35 = vector.extract_strided_slice %15 {offsets = [0, 96], sizes = [2, 32], strides = [1, 1]} : vector<2x128xf32> to vector<2x32xf32>
    %36 = arith.negf %35 : vector<2x32xf32>
    %37 = math.exp %36 : vector<2x32xf32>
    %cst_16 = arith.constant 1.000000e+00 : f32
    %38 = vector.broadcast %cst_16 : f32 to vector<2x32xf32>
    %39 = arith.addf %38, %37 : vector<2x32xf32>
    %40 = arith.divf %38, %39 : vector<2x32xf32>
    %41 = arith.mulf %32, %20 : vector<2x32xf32>
    %42 = arith.mulf %26, %34 : vector<2x32xf32>
    %43 = arith.addf %41, %42 : vector<2x32xf32>
    %44 = math.tanh %43 : vector<2x32xf32>
    %45 = arith.mulf %40, %44 : vector<2x32xf32>
    %46 = vector.extract_strided_slice %6 {offsets = [2, 0], sizes = [2, 32], strides = [1, 1]} : vector<4x32xf32> to vector<2x32xf32>
    %47 = vector.extract_strided_slice %19 {offsets = [0, 0], sizes = [2, 32], strides = [1, 1]} : vector<2x128xf32> to vector<2x32xf32>
    %48 = arith.negf %47 : vector<2x32xf32>
    %49 = math.exp %48 : vector<2x32xf32>
    %cst_17 = arith.constant 1.000000e+00 : f32
    %50 = vector.broadcast %cst_17 : f32 to vector<2x32xf32>
    %51 = arith.addf %50, %49 : vector<2x32xf32>
    %52 = arith.divf %50, %51 : vector<2x32xf32>
    %53 = vector.extract_strided_slice %19 {offsets = [0, 32], sizes = [2, 32], strides = [1, 1]} : vector<2x128xf32> to vector<2x32xf32>
    %54 = arith.negf %53 : vector<2x32xf32>
    %55 = math.exp %54 : vector<2x32xf32>
    %cst_18 = arith.constant 1.000000e+00 : f32
    %56 = vector.broadcast %cst_18 : f32 to vector<2x32xf32>
    %57 = arith.addf %56, %55 : vector<2x32xf32>
    %58 = arith.divf %56, %57 : vector<2x32xf32>
    %59 = vector.extract_strided_slice %19 {offsets = [0, 64], sizes = [2, 32], strides = [1, 1]} : vector<2x128xf32> to vector<2x32xf32>
    %60 = math.tanh %59 : vector<2x32xf32>
    %61 = vector.extract_strided_slice %19 {offsets = [0, 96], sizes = [2, 32], strides = [1, 1]} : vector<2x128xf32> to vector<2x32xf32>
    %62 = arith.negf %61 : vector<2x32xf32>
    %63 = math.exp %62 : vector<2x32xf32>
    %cst_19 = arith.constant 1.000000e+00 : f32
    %64 = vector.broadcast %cst_19 : f32 to vector<2x32xf32>
    %65 = arith.addf %64, %63 : vector<2x32xf32>
    %66 = arith.divf %64, %65 : vector<2x32xf32>
    %67 = arith.mulf %58, %46 : vector<2x32xf32>
    %68 = arith.mulf %52, %60 : vector<2x32xf32>
    %69 = arith.addf %67, %68 : vector<2x32xf32>
    %70 = math.tanh %69 : vector<2x32xf32>
    %71 = arith.mulf %66, %70 : vector<2x32xf32>
    %72 = vector.broadcast %8 : i32 to vector<2x1xi32>
    %73 = arith.cmpi slt, %72, %3 : vector<2x1xi32>
    %74 = vector.broadcast %9 : i32 to vector<2x1xi32>
    %75 = arith.cmpi slt, %74, %3 : vector<2x1xi32>
    %cst_20 = arith.constant 0.000000e+00 : f32
    %76 = vector.shape_cast %73 : vector<2x1xi1> to vector<2x1xi1>
    %77 = vector.broadcast %76 : vector<2x1xi1> to vector<2x32xi1>
    %78 = vector.broadcast %cst_20 : f32 to vector<2x32xf32>
    %79 = arith.select %77, %45, %78 : vector<2x32xi1>, vector<2x32xf32>
    %c0_21 = arith.constant 0 : index
    %c0_22 = arith.constant 0 : index
    %c0_23 = arith.constant 0 : index
    %80 = vector.load %arg5[%c0_21, %c0_22, %c0_23] : memref<2x8x32xf32, #tpu.memory_space<vmem>>, vector<2x1x32xf32>
    %81 = vector.shape_cast %80 : vector<2x1x32xf32> to vector<2x32xf32>
    %82 = vector.shape_cast %79 : vector<2x32xf32> to vector<2x1x32xf32>
    tpu.vector_store %arg5[%c0_21, %c0_22, %c0_23], %82 {strides = array<i32>} : memref<2x8x32xf32, #tpu.memory_space<vmem>>, vector<2x1x32xf32>,
    %cst_24 = arith.constant 0.000000e+00 : f32
    %83 = vector.shape_cast %75 : vector<2x1xi1> to vector<2x1xi1>
    %84 = vector.broadcast %83 : vector<2x1xi1> to vector<2x32xi1>
    %85 = vector.broadcast %cst_24 : f32 to vector<2x32xf32>
    %86 = arith.select %84, %71, %85 : vector<2x32xi1>, vector<2x32xf32>
    %c0_25 = arith.constant 0 : index
    %c7_26 = arith.constant 7 : index
    %c0_27 = arith.constant 0 : index
    %87 = vector.load %arg6[%c0_25, %c7_26, %c0_27] : memref<2x8x32xf32, #tpu.memory_space<vmem>>, vector<2x1x32xf32>
    %88 = vector.shape_cast %87 : vector<2x1x32xf32> to vector<2x32xf32>
    %89 = vector.shape_cast %86 : vector<2x32xf32> to vector<2x1x32xf32>
    tpu.vector_store %arg6[%c0_25, %c7_26, %c0_27], %89 {strides = array<i32>} : memref<2x8x32xf32, #tpu.memory_space<vmem>>, vector<2x1x32xf32>,
    %90 = vector.extract_strided_slice %5 {offsets = [0, 0], sizes = [2, 32], strides = [1, 1]} : vector<4x32xf32> to vector<2x32xf32>
    %91 = vector.shape_cast %73 : vector<2x1xi1> to vector<2x1xi1>
    %92 = vector.broadcast %91 : vector<2x1xi1> to vector<2x32xi1>
    %93 = arith.select %92, %45, %90 : vector<2x32xi1>, vector<2x32xf32>
    %94 = vector.extract_strided_slice %5 {offsets = [2, 0], sizes = [2, 32], strides = [1, 1]} : vector<4x32xf32> to vector<2x32xf32>
    %95 = vector.shape_cast %75 : vector<2x1xi1> to vector<2x1xi1>
    %96 = vector.broadcast %95 : vector<2x1xi1> to vector<2x32xi1>
    %97 = arith.select %96, %71, %94 : vector<2x32xi1>, vector<2x32xf32>
    %98 = tpu.concatenate %93, %97 in 0 : vector<2x32xf32>, vector<2x32xf32> -> vector<4x32xf32>
    %99 = vector.extract_strided_slice %6 {offsets = [0, 0], sizes = [2, 32], strides = [1, 1]} : vector<4x32xf32> to vector<2x32xf32>
    %100 = vector.shape_cast %73 : vector<2x1xi1> to vector<2x1xi1>
    %101 = vector.broadcast %100 : vector<2x1xi1> to vector<2x32xi1>
    %102 = arith.select %101, %43, %99 : vector<2x32xi1>, vector<2x32xf32>
    %103 = vector.extract_strided_slice %6 {offsets = [2, 0], sizes = [2, 32], strides = [1, 1]} : vector<4x32xf32> to vector<2x32xf32>
    %104 = vector.shape_cast %75 : vector<2x1xi1> to vector<2x1xi1>
    %105 = vector.broadcast %104 : vector<2x1xi1> to vector<2x32xi1>
    %106 = arith.select %105, %69, %103 : vector<2x32xi1>, vector<2x32xf32>
    %107 = tpu.concatenate %102, %106 in 0 : vector<2x32xf32>, vector<2x32xf32> -> vector<4x32xf32>
    %c8_i32_28 = arith.constant 8 : i32
    %108 = arith.muli %arg0, %c8_i32_28 : i32
    %c1_i32 = arith.constant 1 : i32
    %109 = arith.addi %108, %c1_i32 : i32
    %c7_i32_29 = arith.constant 7 : i32
    %110 = arith.subi %c7_i32_29, %109 : i32
    %111 = arith.truncf %98 : vector<4x32xf32> to vector<4x32xbf16>
    %cst_30 = arith.constant dense<0.000000e+00> : vector<4x256xf32>
    %112 = tpu.matmul %111, %4, %cst_30 {dimension_numbers = #tpu.dot_dimension_numbers<[1], [0], [0], [1], [0, 0, 1, 1], [], []>} : vector<4x32xbf16>, vector<32x256xbf16>, vector<4x256xf32> -> vector<4x256xf32>
    %c0_31 = arith.constant 0 : index
    %c1 = arith.constant 1 : index
    %c0_32 = arith.constant 0 : index
    %113 = vector.load %arg1[%c0_31, %c1, %c0_32] : memref<2x8x128xf32, #tpu.memory_space<vmem>>, vector<2x1x128xf32>
    %114 = vector.shape_cast %113 : vector<2x1x128xf32> to vector<2x128xf32>
    %115 = vector.extract_strided_slice %112 {offsets = [0, 0], sizes = [2, 128], strides = [1, 1]} : vector<4x256xf32> to vector<2x128xf32>
    %116 = arith.addf %114, %115 : vector<2x128xf32>
    %c0_33 = arith.constant 0 : index
    %c6 = arith.constant 6 : index
    %c0_34 = arith.constant 0 : index
    %117 = vector.load %arg2[%c0_33, %c6, %c0_34] : memref<2x8x128xf32, #tpu.memory_space<vmem>>, vector<2x1x128xf32>
    %118 = vector.shape_cast %117 : vector<2x1x128xf32> to vector<2x128xf32>
    %119 = vector.extract_strided_slice %112 {offsets = [2, 128], sizes = [2, 128], strides = [1, 1]} : vector<4x256xf32> to vector<2x128xf32>
    %120 = arith.addf %118, %119 : vector<2x128xf32>
    %121 = vector.extract_strided_slice %107 {offsets = [0, 0], sizes = [2, 32], strides = [1, 1]} : vector<4x32xf32> to vector<2x32xf32>
    %122 = vector.extract_strided_slice %116 {offsets = [0, 0], sizes = [2, 32], strides = [1, 1]} : vector<2x128xf32> to vector<2x32xf32>
    %123 = arith.negf %122 : vector<2x32xf32>
    %124 = math.exp %123 : vector<2x32xf32>
    %cst_35 = arith.constant 1.000000e+00 : f32
    %125 = vector.broadcast %cst_35 : f32 to vector<2x32xf32>
    %126 = arith.addf %125, %124 : vector<2x32xf32>
    %127 = arith.divf %125, %126 : vector<2x32xf32>
    %128 = vector.extract_strided_slice %116 {offsets = [0, 32], sizes = [2, 32], strides = [1, 1]} : vector<2x128xf32> to vector<2x32xf32>
    %129 = arith.negf %128 : vector<2x32xf32>
    %130 = math.exp %129 : vector<2x32xf32>
    %cst_36 = arith.constant 1.000000e+00 : f32
    %131 = vector.broadcast %cst_36 : f32 to vector<2x32xf32>
    %132 = arith.addf %131, %130 : vector<2x32xf32>
    %133 = arith.divf %131, %132 : vector<2x32xf32>
    %134 = vector.extract_strided_slice %116 {offsets = [0, 64], sizes = [2, 32], strides = [1, 1]} : vector<2x128xf32> to vector<2x32xf32>
    %135 = math.tanh %134 : vector<2x32xf32>
    %136 = vector.extract_strided_slice %116 {offsets = [0, 96], sizes = [2, 32], strides = [1, 1]} : vector<2x128xf32> to vector<2x32xf32>
    %137 = arith.negf %136 : vector<2x32xf32>
    %138 = math.exp %137 : vector<2x32xf32>
    %cst_37 = arith.constant 1.000000e+00 : f32
    %139 = vector.broadcast %cst_37 : f32 to vector<2x32xf32>
    %140 = arith.addf %139, %138 : vector<2x32xf32>
    %141 = arith.divf %139, %140 : vector<2x32xf32>
    %142 = arith.mulf %133, %121 : vector<2x32xf32>
    %143 = arith.mulf %127, %135 : vector<2x32xf32>
    %144 = arith.addf %142, %143 : vector<2x32xf32>
    %145 = math.tanh %144 : vector<2x32xf32>
    %146 = arith.mulf %141, %145 : vector<2x32xf32>
    %147 = vector.extract_strided_slice %107 {offsets = [2, 0], sizes = [2, 32], strides = [1, 1]} : vector<4x32xf32> to vector<2x32xf32>
    %148 = vector.extract_strided_slice %120 {offsets = [0, 0], sizes = [2, 32], strides = [1, 1]} : vector<2x128xf32> to vector<2x32xf32>
    %149 = arith.negf %148 : vector<2x32xf32>
    %150 = math.exp %149 : vector<2x32xf32>
    %cst_38 = arith.constant 1.000000e+00 : f32
    %151 = vector.broadcast %cst_38 : f32 to vector<2x32xf32>
    %152 = arith.addf %151, %150 : vector<2x32xf32>
    %153 = arith.divf %151, %152 : vector<2x32xf32>
    %154 = vector.extract_strided_slice %120 {offsets = [0, 32], sizes = [2, 32], strides = [1, 1]} : vector<2x128xf32> to vector<2x32xf32>
    %155 = arith.negf %154 : vector<2x32xf32>
    %156 = math.exp %155 : vector<2x32xf32>
    %cst_39 = arith.constant 1.000000e+00 : f32
    %157 = vector.broadcast %cst_39 : f32 to vector<2x32xf32>
    %158 = arith.addf %157, %156 : vector<2x32xf32>
    %159 = arith.divf %157, %158 : vector<2x32xf32>
    %160 = vector.extract_strided_slice %120 {offsets = [0, 64], sizes = [2, 32], strides = [1, 1]} : vector<2x128xf32> to vector<2x32xf32>
    %161 = math.tanh %160 : vector<2x32xf32>
    %162 = vector.extract_strided_slice %120 {offsets = [0, 96], sizes = [2, 32], strides = [1, 1]} : vector<2x128xf32> to vector<2x32xf32>
    %163 = arith.negf %162 : vector<2x32xf32>
    %164 = math.exp %163 : vector<2x32xf32>
    %cst_40 = arith.constant 1.000000e+00 : f32
    %165 = vector.broadcast %cst_40 : f32 to vector<2x32xf32>
    %166 = arith.addf %165, %164 : vector<2x32xf32>
    %167 = arith.divf %165, %166 : vector<2x32xf32>
    %168 = arith.mulf %159, %147 : vector<2x32xf32>
    %169 = arith.mulf %153, %161 : vector<2x32xf32>
    %170 = arith.addf %168, %169 : vector<2x32xf32>
    %171 = math.tanh %170 : vector<2x32xf32>
    %172 = arith.mulf %167, %171 : vector<2x32xf32>
    %173 = vector.broadcast %109 : i32 to vector<2x1xi32>
    %174 = arith.cmpi slt, %173, %3 : vector<2x1xi32>
    %175 = vector.broadcast %110 : i32 to vector<2x1xi32>
    %176 = arith.cmpi slt, %175, %3 : vector<2x1xi32>
    %cst_41 = arith.constant 0.000000e+00 : f32
    %177 = vector.shape_cast %174 : vector<2x1xi1> to vector<2x1xi1>
    %178 = vector.broadcast %177 : vector<2x1xi1> to vector<2x32xi1>
    %179 = vector.broadcast %cst_41 : f32 to vector<2x32xf32>
    %180 = arith.select %178, %146, %179 : vector<2x32xi1>, vector<2x32xf32>
    %c0_42 = arith.constant 0 : index
    %c1_43 = arith.constant 1 : index
    %c0_44 = arith.constant 0 : index
    %181 = vector.load %arg5[%c0_42, %c1_43, %c0_44] : memref<2x8x32xf32, #tpu.memory_space<vmem>>, vector<2x1x32xf32>
    %182 = vector.shape_cast %181 : vector<2x1x32xf32> to vector<2x32xf32>
    %183 = vector.shape_cast %180 : vector<2x32xf32> to vector<2x1x32xf32>
    tpu.vector_store %arg5[%c0_42, %c1_43, %c0_44], %183 {strides = array<i32>} : memref<2x8x32xf32, #tpu.memory_space<vmem>>, vector<2x1x32xf32>,
    %cst_45 = arith.constant 0.000000e+00 : f32
    %184 = vector.shape_cast %176 : vector<2x1xi1> to vector<2x1xi1>
    %185 = vector.broadcast %184 : vector<2x1xi1> to vector<2x32xi1>
    %186 = vector.broadcast %cst_45 : f32 to vector<2x32xf32>
    %187 = arith.select %185, %172, %186 : vector<2x32xi1>, vector<2x32xf32>
    %c0_46 = arith.constant 0 : index
    %c6_47 = arith.constant 6 : index
    %c0_48 = arith.constant 0 : index
    %188 = vector.load %arg6[%c0_46, %c6_47, %c0_48] : memref<2x8x32xf32, #tpu.memory_space<vmem>>, vector<2x1x32xf32>
    %189 = vector.shape_cast %188 : vector<2x1x32xf32> to vector<2x32xf32>
    %190 = vector.shape_cast %187 : vector<2x32xf32> to vector<2x1x32xf32>
    tpu.vector_store %arg6[%c0_46, %c6_47, %c0_48], %190 {strides = array<i32>} : memref<2x8x32xf32, #tpu.memory_space<vmem>>, vector<2x1x32xf32>,
    %191 = vector.extract_strided_slice %98 {offsets = [0, 0], sizes = [2, 32], strides = [1, 1]} : vector<4x32xf32> to vector<2x32xf32>
    %192 = vector.shape_cast %174 : vector<2x1xi1> to vector<2x1xi1>
    %193 = vector.broadcast %192 : vector<2x1xi1> to vector<2x32xi1>
    %194 = arith.select %193, %146, %191 : vector<2x32xi1>, vector<2x32xf32>
    %195 = vector.extract_strided_slice %98 {offsets = [2, 0], sizes = [2, 32], strides = [1, 1]} : vector<4x32xf32> to vector<2x32xf32>
    %196 = vector.shape_cast %176 : vector<2x1xi1> to vector<2x1xi1>
    %197 = vector.broadcast %196 : vector<2x1xi1> to vector<2x32xi1>
    %198 = arith.select %197, %172, %195 : vector<2x32xi1>, vector<2x32xf32>
    %199 = tpu.concatenate %194, %198 in 0 : vector<2x32xf32>, vector<2x32xf32> -> vector<4x32xf32>
    %200 = vector.extract_strided_slice %107 {offsets = [0, 0], sizes = [2, 32], strides = [1, 1]} : vector<4x32xf32> to vector<2x32xf32>
    %201 = vector.shape_cast %174 : vector<2x1xi1> to vector<2x1xi1>
    %202 = vector.broadcast %201 : vector<2x1xi1> to vector<2x32xi1>
    %203 = arith.select %202, %144, %200 : vector<2x32xi1>, vector<2x32xf32>
    %204 = vector.extract_strided_slice %107 {offsets = [2, 0], sizes = [2, 32], strides = [1, 1]} : vector<4x32xf32> to vector<2x32xf32>
    %205 = vector.shape_cast %176 : vector<2x1xi1> to vector<2x1xi1>
    %206 = vector.broadcast %205 : vector<2x1xi1> to vector<2x32xi1>
    %207 = arith.select %206, %170, %204 : vector<2x32xi1>, vector<2x32xf32>
    %208 = tpu.concatenate %203, %207 in 0 : vector<2x32xf32>, vector<2x32xf32> -> vector<4x32xf32>
    %c8_i32_49 = arith.constant 8 : i32
    %209 = arith.muli %arg0, %c8_i32_49 : i32
    %c2_i32 = arith.constant 2 : i32
    %210 = arith.addi %209, %c2_i32 : i32
    %c7_i32_50 = arith.constant 7 : i32
    %211 = arith.subi %c7_i32_50, %210 : i32
    %212 = arith.truncf %199 : vector<4x32xf32> to vector<4x32xbf16>
    %cst_51 = arith.constant dense<0.000000e+00> : vector<4x256xf32>
    %213 = tpu.matmul %212, %4, %cst_51 {dimension_numbers = #tpu.dot_dimension_numbers<[1], [0], [0], [1], [0, 0, 1, 1], [], []>} : vector<4x32xbf16>, vector<32x256xbf16>, vector<4x256xf32> -> vector<4x256xf32>
    %c0_52 = arith.constant 0 : index
    %c2 = arith.constant 2 : index
    %c0_53 = arith.constant 0 : index
    %214 = vector.load %arg1[%c0_52, %c2, %c0_53] : memref<2x8x128xf32, #tpu.memory_space<vmem>>, vector<2x1x128xf32>
    %215 = vector.shape_cast %214 : vector<2x1x128xf32> to vector<2x128xf32>
    %216 = vector.extract_strided_slice %213 {offsets = [0, 0], sizes = [2, 128], strides = [1, 1]} : vector<4x256xf32> to vector<2x128xf32>
    %217 = arith.addf %215, %216 : vector<2x128xf32>
    %c0_54 = arith.constant 0 : index
    %c5 = arith.constant 5 : index
    %c0_55 = arith.constant 0 : index
    %218 = vector.load %arg2[%c0_54, %c5, %c0_55] : memref<2x8x128xf32, #tpu.memory_space<vmem>>, vector<2x1x128xf32>
    %219 = vector.shape_cast %218 : vector<2x1x128xf32> to vector<2x128xf32>
    %220 = vector.extract_strided_slice %213 {offsets = [2, 128], sizes = [2, 128], strides = [1, 1]} : vector<4x256xf32> to vector<2x128xf32>
    %221 = arith.addf %219, %220 : vector<2x128xf32>
    %222 = vector.extract_strided_slice %208 {offsets = [0, 0], sizes = [2, 32], strides = [1, 1]} : vector<4x32xf32> to vector<2x32xf32>
    %223 = vector.extract_strided_slice %217 {offsets = [0, 0], sizes = [2, 32], strides = [1, 1]} : vector<2x128xf32> to vector<2x32xf32>
    %224 = arith.negf %223 : vector<2x32xf32>
    %225 = math.exp %224 : vector<2x32xf32>
    %cst_56 = arith.constant 1.000000e+00 : f32
    %226 = vector.broadcast %cst_56 : f32 to vector<2x32xf32>
    %227 = arith.addf %226, %225 : vector<2x32xf32>
    %228 = arith.divf %226, %227 : vector<2x32xf32>
    %229 = vector.extract_strided_slice %217 {offsets = [0, 32], sizes = [2, 32], strides = [1, 1]} : vector<2x128xf32> to vector<2x32xf32>
    %230 = arith.negf %229 : vector<2x32xf32>
    %231 = math.exp %230 : vector<2x32xf32>
    %cst_57 = arith.constant 1.000000e+00 : f32
    %232 = vector.broadcast %cst_57 : f32 to vector<2x32xf32>
    %233 = arith.addf %232, %231 : vector<2x32xf32>
    %234 = arith.divf %232, %233 : vector<2x32xf32>
    %235 = vector.extract_strided_slice %217 {offsets = [0, 64], sizes = [2, 32], strides = [1, 1]} : vector<2x128xf32> to vector<2x32xf32>
    %236 = math.tanh %235 : vector<2x32xf32>
    %237 = vector.extract_strided_slice %217 {offsets = [0, 96], sizes = [2, 32], strides = [1, 1]} : vector<2x128xf32> to vector<2x32xf32>
    %238 = arith.negf %237 : vector<2x32xf32>
    %239 = math.exp %238 : vector<2x32xf32>
    %cst_58 = arith.constant 1.000000e+00 : f32
    %240 = vector.broadcast %cst_58 : f32 to vector<2x32xf32>
    %241 = arith.addf %240, %239 : vector<2x32xf32>
    %242 = arith.divf %240, %241 : vector<2x32xf32>
    %243 = arith.mulf %234, %222 : vector<2x32xf32>
    %244 = arith.mulf %228, %236 : vector<2x32xf32>
    %245 = arith.addf %243, %244 : vector<2x32xf32>
    %246 = math.tanh %245 : vector<2x32xf32>
    %247 = arith.mulf %242, %246 : vector<2x32xf32>
    %248 = vector.extract_strided_slice %208 {offsets = [2, 0], sizes = [2, 32], strides = [1, 1]} : vector<4x32xf32> to vector<2x32xf32>
    %249 = vector.extract_strided_slice %221 {offsets = [0, 0], sizes = [2, 32], strides = [1, 1]} : vector<2x128xf32> to vector<2x32xf32>
    %250 = arith.negf %249 : vector<2x32xf32>
    %251 = math.exp %250 : vector<2x32xf32>
    %cst_59 = arith.constant 1.000000e+00 : f32
    %252 = vector.broadcast %cst_59 : f32 to vector<2x32xf32>
    %253 = arith.addf %252, %251 : vector<2x32xf32>
    %254 = arith.divf %252, %253 : vector<2x32xf32>
    %255 = vector.extract_strided_slice %221 {offsets = [0, 32], sizes = [2, 32], strides = [1, 1]} : vector<2x128xf32> to vector<2x32xf32>
    %256 = arith.negf %255 : vector<2x32xf32>
    %257 = math.exp %256 : vector<2x32xf32>
    %cst_60 = arith.constant 1.000000e+00 : f32
    %258 = vector.broadcast %cst_60 : f32 to vector<2x32xf32>
    %259 = arith.addf %258, %257 : vector<2x32xf32>
    %260 = arith.divf %258, %259 : vector<2x32xf32>
    %261 = vector.extract_strided_slice %221 {offsets = [0, 64], sizes = [2, 32], strides = [1, 1]} : vector<2x128xf32> to vector<2x32xf32>
    %262 = math.tanh %261 : vector<2x32xf32>
    %263 = vector.extract_strided_slice %221 {offsets = [0, 96], sizes = [2, 32], strides = [1, 1]} : vector<2x128xf32> to vector<2x32xf32>
    %264 = arith.negf %263 : vector<2x32xf32>
    %265 = math.exp %264 : vector<2x32xf32>
    %cst_61 = arith.constant 1.000000e+00 : f32
    %266 = vector.broadcast %cst_61 : f32 to vector<2x32xf32>
    %267 = arith.addf %266, %265 : vector<2x32xf32>
    %268 = arith.divf %266, %267 : vector<2x32xf32>
    %269 = arith.mulf %260, %248 : vector<2x32xf32>
    %270 = arith.mulf %254, %262 : vector<2x32xf32>
    %271 = arith.addf %269, %270 : vector<2x32xf32>
    %272 = math.tanh %271 : vector<2x32xf32>
    %273 = arith.mulf %268, %272 : vector<2x32xf32>
    %274 = vector.broadcast %210 : i32 to vector<2x1xi32>
    %275 = arith.cmpi slt, %274, %3 : vector<2x1xi32>
    %276 = vector.broadcast %211 : i32 to vector<2x1xi32>
    %277 = arith.cmpi slt, %276, %3 : vector<2x1xi32>
    %cst_62 = arith.constant 0.000000e+00 : f32
    %278 = vector.shape_cast %275 : vector<2x1xi1> to vector<2x1xi1>
    %279 = vector.broadcast %278 : vector<2x1xi1> to vector<2x32xi1>
    %280 = vector.broadcast %cst_62 : f32 to vector<2x32xf32>
    %281 = arith.select %279, %247, %280 : vector<2x32xi1>, vector<2x32xf32>
    %c0_63 = arith.constant 0 : index
    %c2_64 = arith.constant 2 : index
    %c0_65 = arith.constant 0 : index
    %282 = vector.load %arg5[%c0_63, %c2_64, %c0_65] : memref<2x8x32xf32, #tpu.memory_space<vmem>>, vector<2x1x32xf32>
    %283 = vector.shape_cast %282 : vector<2x1x32xf32> to vector<2x32xf32>
    %284 = vector.shape_cast %281 : vector<2x32xf32> to vector<2x1x32xf32>
    tpu.vector_store %arg5[%c0_63, %c2_64, %c0_65], %284 {strides = array<i32>} : memref<2x8x32xf32, #tpu.memory_space<vmem>>, vector<2x1x32xf32>,
    %cst_66 = arith.constant 0.000000e+00 : f32
    %285 = vector.shape_cast %277 : vector<2x1xi1> to vector<2x1xi1>
    %286 = vector.broadcast %285 : vector<2x1xi1> to vector<2x32xi1>
    %287 = vector.broadcast %cst_66 : f32 to vector<2x32xf32>
    %288 = arith.select %286, %273, %287 : vector<2x32xi1>, vector<2x32xf32>
    %c0_67 = arith.constant 0 : index
    %c5_68 = arith.constant 5 : index
    %c0_69 = arith.constant 0 : index
    %289 = vector.load %arg6[%c0_67, %c5_68, %c0_69] : memref<2x8x32xf32, #tpu.memory_space<vmem>>, vector<2x1x32xf32>
    %290 = vector.shape_cast %289 : vector<2x1x32xf32> to vector<2x32xf32>
    %291 = vector.shape_cast %288 : vector<2x32xf32> to vector<2x1x32xf32>
    tpu.vector_store %arg6[%c0_67, %c5_68, %c0_69], %291 {strides = array<i32>} : memref<2x8x32xf32, #tpu.memory_space<vmem>>, vector<2x1x32xf32>,
    %292 = vector.extract_strided_slice %199 {offsets = [0, 0], sizes = [2, 32], strides = [1, 1]} : vector<4x32xf32> to vector<2x32xf32>
    %293 = vector.shape_cast %275 : vector<2x1xi1> to vector<2x1xi1>
    %294 = vector.broadcast %293 : vector<2x1xi1> to vector<2x32xi1>
    %295 = arith.select %294, %247, %292 : vector<2x32xi1>, vector<2x32xf32>
    %296 = vector.extract_strided_slice %199 {offsets = [2, 0], sizes = [2, 32], strides = [1, 1]} : vector<4x32xf32> to vector<2x32xf32>
    %297 = vector.shape_cast %277 : vector<2x1xi1> to vector<2x1xi1>
    %298 = vector.broadcast %297 : vector<2x1xi1> to vector<2x32xi1>
    %299 = arith.select %298, %273, %296 : vector<2x32xi1>, vector<2x32xf32>
    %300 = tpu.concatenate %295, %299 in 0 : vector<2x32xf32>, vector<2x32xf32> -> vector<4x32xf32>
    %301 = vector.extract_strided_slice %208 {offsets = [0, 0], sizes = [2, 32], strides = [1, 1]} : vector<4x32xf32> to vector<2x32xf32>
    %302 = vector.shape_cast %275 : vector<2x1xi1> to vector<2x1xi1>
    %303 = vector.broadcast %302 : vector<2x1xi1> to vector<2x32xi1>
    %304 = arith.select %303, %245, %301 : vector<2x32xi1>, vector<2x32xf32>
    %305 = vector.extract_strided_slice %208 {offsets = [2, 0], sizes = [2, 32], strides = [1, 1]} : vector<4x32xf32> to vector<2x32xf32>
    %306 = vector.shape_cast %277 : vector<2x1xi1> to vector<2x1xi1>
    %307 = vector.broadcast %306 : vector<2x1xi1> to vector<2x32xi1>
    %308 = arith.select %307, %271, %305 : vector<2x32xi1>, vector<2x32xf32>
    %309 = tpu.concatenate %304, %308 in 0 : vector<2x32xf32>, vector<2x32xf32> -> vector<4x32xf32>
    %c8_i32_70 = arith.constant 8 : i32
    %310 = arith.muli %arg0, %c8_i32_70 : i32
    %c3_i32 = arith.constant 3 : i32
    %311 = arith.addi %310, %c3_i32 : i32
    %c7_i32_71 = arith.constant 7 : i32
    %312 = arith.subi %c7_i32_71, %311 : i32
    %313 = arith.truncf %300 : vector<4x32xf32> to vector<4x32xbf16>
    %cst_72 = arith.constant dense<0.000000e+00> : vector<4x256xf32>
    %314 = tpu.matmul %313, %4, %cst_72 {dimension_numbers = #tpu.dot_dimension_numbers<[1], [0], [0], [1], [0, 0, 1, 1], [], []>} : vector<4x32xbf16>, vector<32x256xbf16>, vector<4x256xf32> -> vector<4x256xf32>
    %c0_73 = arith.constant 0 : index
    %c3 = arith.constant 3 : index
    %c0_74 = arith.constant 0 : index
    %315 = vector.load %arg1[%c0_73, %c3, %c0_74] : memref<2x8x128xf32, #tpu.memory_space<vmem>>, vector<2x1x128xf32>
    %316 = vector.shape_cast %315 : vector<2x1x128xf32> to vector<2x128xf32>
    %317 = vector.extract_strided_slice %314 {offsets = [0, 0], sizes = [2, 128], strides = [1, 1]} : vector<4x256xf32> to vector<2x128xf32>
    %318 = arith.addf %316, %317 : vector<2x128xf32>
    %c0_75 = arith.constant 0 : index
    %c4 = arith.constant 4 : index
    %c0_76 = arith.constant 0 : index
    %319 = vector.load %arg2[%c0_75, %c4, %c0_76] : memref<2x8x128xf32, #tpu.memory_space<vmem>>, vector<2x1x128xf32>
    %320 = vector.shape_cast %319 : vector<2x1x128xf32> to vector<2x128xf32>
    %321 = vector.extract_strided_slice %314 {offsets = [2, 128], sizes = [2, 128], strides = [1, 1]} : vector<4x256xf32> to vector<2x128xf32>
    %322 = arith.addf %320, %321 : vector<2x128xf32>
    %323 = vector.extract_strided_slice %309 {offsets = [0, 0], sizes = [2, 32], strides = [1, 1]} : vector<4x32xf32> to vector<2x32xf32>
    %324 = vector.extract_strided_slice %318 {offsets = [0, 0], sizes = [2, 32], strides = [1, 1]} : vector<2x128xf32> to vector<2x32xf32>
    %325 = arith.negf %324 : vector<2x32xf32>
    %326 = math.exp %325 : vector<2x32xf32>
    %cst_77 = arith.constant 1.000000e+00 : f32
    %327 = vector.broadcast %cst_77 : f32 to vector<2x32xf32>
    %328 = arith.addf %327, %326 : vector<2x32xf32>
    %329 = arith.divf %327, %328 : vector<2x32xf32>
    %330 = vector.extract_strided_slice %318 {offsets = [0, 32], sizes = [2, 32], strides = [1, 1]} : vector<2x128xf32> to vector<2x32xf32>
    %331 = arith.negf %330 : vector<2x32xf32>
    %332 = math.exp %331 : vector<2x32xf32>
    %cst_78 = arith.constant 1.000000e+00 : f32
    %333 = vector.broadcast %cst_78 : f32 to vector<2x32xf32>
    %334 = arith.addf %333, %332 : vector<2x32xf32>
    %335 = arith.divf %333, %334 : vector<2x32xf32>
    %336 = vector.extract_strided_slice %318 {offsets = [0, 64], sizes = [2, 32], strides = [1, 1]} : vector<2x128xf32> to vector<2x32xf32>
    %337 = math.tanh %336 : vector<2x32xf32>
    %338 = vector.extract_strided_slice %318 {offsets = [0, 96], sizes = [2, 32], strides = [1, 1]} : vector<2x128xf32> to vector<2x32xf32>
    %339 = arith.negf %338 : vector<2x32xf32>
    %340 = math.exp %339 : vector<2x32xf32>
    %cst_79 = arith.constant 1.000000e+00 : f32
    %341 = vector.broadcast %cst_79 : f32 to vector<2x32xf32>
    %342 = arith.addf %341, %340 : vector<2x32xf32>
    %343 = arith.divf %341, %342 : vector<2x32xf32>
    %344 = arith.mulf %335, %323 : vector<2x32xf32>
    %345 = arith.mulf %329, %337 : vector<2x32xf32>
    %346 = arith.addf %344, %345 : vector<2x32xf32>
    %347 = math.tanh %346 : vector<2x32xf32>
    %348 = arith.mulf %343, %347 : vector<2x32xf32>
    %349 = vector.extract_strided_slice %309 {offsets = [2, 0], sizes = [2, 32], strides = [1, 1]} : vector<4x32xf32> to vector<2x32xf32>
    %350 = vector.extract_strided_slice %322 {offsets = [0, 0], sizes = [2, 32], strides = [1, 1]} : vector<2x128xf32> to vector<2x32xf32>
    %351 = arith.negf %350 : vector<2x32xf32>
    %352 = math.exp %351 : vector<2x32xf32>
    %cst_80 = arith.constant 1.000000e+00 : f32
    %353 = vector.broadcast %cst_80 : f32 to vector<2x32xf32>
    %354 = arith.addf %353, %352 : vector<2x32xf32>
    %355 = arith.divf %353, %354 : vector<2x32xf32>
    %356 = vector.extract_strided_slice %322 {offsets = [0, 32], sizes = [2, 32], strides = [1, 1]} : vector<2x128xf32> to vector<2x32xf32>
    %357 = arith.negf %356 : vector<2x32xf32>
    %358 = math.exp %357 : vector<2x32xf32>
    %cst_81 = arith.constant 1.000000e+00 : f32
    %359 = vector.broadcast %cst_81 : f32 to vector<2x32xf32>
    %360 = arith.addf %359, %358 : vector<2x32xf32>
    %361 = arith.divf %359, %360 : vector<2x32xf32>
    %362 = vector.extract_strided_slice %322 {offsets = [0, 64], sizes = [2, 32], strides = [1, 1]} : vector<2x128xf32> to vector<2x32xf32>
    %363 = math.tanh %362 : vector<2x32xf32>
    %364 = vector.extract_strided_slice %322 {offsets = [0, 96], sizes = [2, 32], strides = [1, 1]} : vector<2x128xf32> to vector<2x32xf32>
    %365 = arith.negf %364 : vector<2x32xf32>
    %366 = math.exp %365 : vector<2x32xf32>
    %cst_82 = arith.constant 1.000000e+00 : f32
    %367 = vector.broadcast %cst_82 : f32 to vector<2x32xf32>
    %368 = arith.addf %367, %366 : vector<2x32xf32>
    %369 = arith.divf %367, %368 : vector<2x32xf32>
    %370 = arith.mulf %361, %349 : vector<2x32xf32>
    %371 = arith.mulf %355, %363 : vector<2x32xf32>
    %372 = arith.addf %370, %371 : vector<2x32xf32>
    %373 = math.tanh %372 : vector<2x32xf32>
    %374 = arith.mulf %369, %373 : vector<2x32xf32>
    %375 = vector.broadcast %311 : i32 to vector<2x1xi32>
    %376 = arith.cmpi slt, %375, %3 : vector<2x1xi32>
    %377 = vector.broadcast %312 : i32 to vector<2x1xi32>
    %378 = arith.cmpi slt, %377, %3 : vector<2x1xi32>
    %cst_83 = arith.constant 0.000000e+00 : f32
    %379 = vector.shape_cast %376 : vector<2x1xi1> to vector<2x1xi1>
    %380 = vector.broadcast %379 : vector<2x1xi1> to vector<2x32xi1>
    %381 = vector.broadcast %cst_83 : f32 to vector<2x32xf32>
    %382 = arith.select %380, %348, %381 : vector<2x32xi1>, vector<2x32xf32>
    %c0_84 = arith.constant 0 : index
    %c3_85 = arith.constant 3 : index
    %c0_86 = arith.constant 0 : index
    %383 = vector.load %arg5[%c0_84, %c3_85, %c0_86] : memref<2x8x32xf32, #tpu.memory_space<vmem>>, vector<2x1x32xf32>
    %384 = vector.shape_cast %383 : vector<2x1x32xf32> to vector<2x32xf32>
    %385 = vector.shape_cast %382 : vector<2x32xf32> to vector<2x1x32xf32>
    tpu.vector_store %arg5[%c0_84, %c3_85, %c0_86], %385 {strides = array<i32>} : memref<2x8x32xf32, #tpu.memory_space<vmem>>, vector<2x1x32xf32>,
    %cst_87 = arith.constant 0.000000e+00 : f32
    %386 = vector.shape_cast %378 : vector<2x1xi1> to vector<2x1xi1>
    %387 = vector.broadcast %386 : vector<2x1xi1> to vector<2x32xi1>
    %388 = vector.broadcast %cst_87 : f32 to vector<2x32xf32>
    %389 = arith.select %387, %374, %388 : vector<2x32xi1>, vector<2x32xf32>
    %c0_88 = arith.constant 0 : index
    %c4_89 = arith.constant 4 : index
    %c0_90 = arith.constant 0 : index
    %390 = vector.load %arg6[%c0_88, %c4_89, %c0_90] : memref<2x8x32xf32, #tpu.memory_space<vmem>>, vector<2x1x32xf32>
    %391 = vector.shape_cast %390 : vector<2x1x32xf32> to vector<2x32xf32>
    %392 = vector.shape_cast %389 : vector<2x32xf32> to vector<2x1x32xf32>
    tpu.vector_store %arg6[%c0_88, %c4_89, %c0_90], %392 {strides = array<i32>} : memref<2x8x32xf32, #tpu.memory_space<vmem>>, vector<2x1x32xf32>,
    %393 = vector.extract_strided_slice %300 {offsets = [0, 0], sizes = [2, 32], strides = [1, 1]} : vector<4x32xf32> to vector<2x32xf32>
    %394 = vector.shape_cast %376 : vector<2x1xi1> to vector<2x1xi1>
    %395 = vector.broadcast %394 : vector<2x1xi1> to vector<2x32xi1>
    %396 = arith.select %395, %348, %393 : vector<2x32xi1>, vector<2x32xf32>
    %397 = vector.extract_strided_slice %300 {offsets = [2, 0], sizes = [2, 32], strides = [1, 1]} : vector<4x32xf32> to vector<2x32xf32>
    %398 = vector.shape_cast %378 : vector<2x1xi1> to vector<2x1xi1>
    %399 = vector.broadcast %398 : vector<2x1xi1> to vector<2x32xi1>
    %400 = arith.select %399, %374, %397 : vector<2x32xi1>, vector<2x32xf32>
    %401 = tpu.concatenate %396, %400 in 0 : vector<2x32xf32>, vector<2x32xf32> -> vector<4x32xf32>
    %402 = vector.extract_strided_slice %309 {offsets = [0, 0], sizes = [2, 32], strides = [1, 1]} : vector<4x32xf32> to vector<2x32xf32>
    %403 = vector.shape_cast %376 : vector<2x1xi1> to vector<2x1xi1>
    %404 = vector.broadcast %403 : vector<2x1xi1> to vector<2x32xi1>
    %405 = arith.select %404, %346, %402 : vector<2x32xi1>, vector<2x32xf32>
    %406 = vector.extract_strided_slice %309 {offsets = [2, 0], sizes = [2, 32], strides = [1, 1]} : vector<4x32xf32> to vector<2x32xf32>
    %407 = vector.shape_cast %378 : vector<2x1xi1> to vector<2x1xi1>
    %408 = vector.broadcast %407 : vector<2x1xi1> to vector<2x32xi1>
    %409 = arith.select %408, %372, %406 : vector<2x32xi1>, vector<2x32xf32>
    %410 = tpu.concatenate %405, %409 in 0 : vector<2x32xf32>, vector<2x32xf32> -> vector<4x32xf32>
    %c8_i32_91 = arith.constant 8 : i32
    %411 = arith.muli %arg0, %c8_i32_91 : i32
    %c4_i32 = arith.constant 4 : i32
    %412 = arith.addi %411, %c4_i32 : i32
    %c7_i32_92 = arith.constant 7 : i32
    %413 = arith.subi %c7_i32_92, %412 : i32
    %414 = arith.truncf %401 : vector<4x32xf32> to vector<4x32xbf16>
    %cst_93 = arith.constant dense<0.000000e+00> : vector<4x256xf32>
    %415 = tpu.matmul %414, %4, %cst_93 {dimension_numbers = #tpu.dot_dimension_numbers<[1], [0], [0], [1], [0, 0, 1, 1], [], []>} : vector<4x32xbf16>, vector<32x256xbf16>, vector<4x256xf32> -> vector<4x256xf32>
    %c0_94 = arith.constant 0 : index
    %c4_95 = arith.constant 4 : index
    %c0_96 = arith.constant 0 : index
    %416 = vector.load %arg1[%c0_94, %c4_95, %c0_96] : memref<2x8x128xf32, #tpu.memory_space<vmem>>, vector<2x1x128xf32>
    %417 = vector.shape_cast %416 : vector<2x1x128xf32> to vector<2x128xf32>
    %418 = vector.extract_strided_slice %415 {offsets = [0, 0], sizes = [2, 128], strides = [1, 1]} : vector<4x256xf32> to vector<2x128xf32>
    %419 = arith.addf %417, %418 : vector<2x128xf32>
    %c0_97 = arith.constant 0 : index
    %c3_98 = arith.constant 3 : index
    %c0_99 = arith.constant 0 : index
    %420 = vector.load %arg2[%c0_97, %c3_98, %c0_99] : memref<2x8x128xf32, #tpu.memory_space<vmem>>, vector<2x1x128xf32>
    %421 = vector.shape_cast %420 : vector<2x1x128xf32> to vector<2x128xf32>
    %422 = vector.extract_strided_slice %415 {offsets = [2, 128], sizes = [2, 128], strides = [1, 1]} : vector<4x256xf32> to vector<2x128xf32>
    %423 = arith.addf %421, %422 : vector<2x128xf32>
    %424 = vector.extract_strided_slice %410 {offsets = [0, 0], sizes = [2, 32], strides = [1, 1]} : vector<4x32xf32> to vector<2x32xf32>
    %425 = vector.extract_strided_slice %419 {offsets = [0, 0], sizes = [2, 32], strides = [1, 1]} : vector<2x128xf32> to vector<2x32xf32>
    %426 = arith.negf %425 : vector<2x32xf32>
    %427 = math.exp %426 : vector<2x32xf32>
    %cst_100 = arith.constant 1.000000e+00 : f32
    %428 = vector.broadcast %cst_100 : f32 to vector<2x32xf32>
    %429 = arith.addf %428, %427 : vector<2x32xf32>
    %430 = arith.divf %428, %429 : vector<2x32xf32>
    %431 = vector.extract_strided_slice %419 {offsets = [0, 32], sizes = [2, 32], strides = [1, 1]} : vector<2x128xf32> to vector<2x32xf32>
    %432 = arith.negf %431 : vector<2x32xf32>
    %433 = math.exp %432 : vector<2x32xf32>
    %cst_101 = arith.constant 1.000000e+00 : f32
    %434 = vector.broadcast %cst_101 : f32 to vector<2x32xf32>
    %435 = arith.addf %434, %433 : vector<2x32xf32>
    %436 = arith.divf %434, %435 : vector<2x32xf32>
    %437 = vector.extract_strided_slice %419 {offsets = [0, 64], sizes = [2, 32], strides = [1, 1]} : vector<2x128xf32> to vector<2x32xf32>
    %438 = math.tanh %437 : vector<2x32xf32>
    %439 = vector.extract_strided_slice %419 {offsets = [0, 96], sizes = [2, 32], strides = [1, 1]} : vector<2x128xf32> to vector<2x32xf32>
    %440 = arith.negf %439 : vector<2x32xf32>
    %441 = math.exp %440 : vector<2x32xf32>
    %cst_102 = arith.constant 1.000000e+00 : f32
    %442 = vector.broadcast %cst_102 : f32 to vector<2x32xf32>
    %443 = arith.addf %442, %441 : vector<2x32xf32>
    %444 = arith.divf %442, %443 : vector<2x32xf32>
    %445 = arith.mulf %436, %424 : vector<2x32xf32>
    %446 = arith.mulf %430, %438 : vector<2x32xf32>
    %447 = arith.addf %445, %446 : vector<2x32xf32>
    %448 = math.tanh %447 : vector<2x32xf32>
    %449 = arith.mulf %444, %448 : vector<2x32xf32>
    %450 = vector.extract_strided_slice %410 {offsets = [2, 0], sizes = [2, 32], strides = [1, 1]} : vector<4x32xf32> to vector<2x32xf32>
    %451 = vector.extract_strided_slice %423 {offsets = [0, 0], sizes = [2, 32], strides = [1, 1]} : vector<2x128xf32> to vector<2x32xf32>
    %452 = arith.negf %451 : vector<2x32xf32>
    %453 = math.exp %452 : vector<2x32xf32>
    %cst_103 = arith.constant 1.000000e+00 : f32
    %454 = vector.broadcast %cst_103 : f32 to vector<2x32xf32>
    %455 = arith.addf %454, %453 : vector<2x32xf32>
    %456 = arith.divf %454, %455 : vector<2x32xf32>
    %457 = vector.extract_strided_slice %423 {offsets = [0, 32], sizes = [2, 32], strides = [1, 1]} : vector<2x128xf32> to vector<2x32xf32>
    %458 = arith.negf %457 : vector<2x32xf32>
    %459 = math.exp %458 : vector<2x32xf32>
    %cst_104 = arith.constant 1.000000e+00 : f32
    %460 = vector.broadcast %cst_104 : f32 to vector<2x32xf32>
    %461 = arith.addf %460, %459 : vector<2x32xf32>
    %462 = arith.divf %460, %461 : vector<2x32xf32>
    %463 = vector.extract_strided_slice %423 {offsets = [0, 64], sizes = [2, 32], strides = [1, 1]} : vector<2x128xf32> to vector<2x32xf32>
    %464 = math.tanh %463 : vector<2x32xf32>
    %465 = vector.extract_strided_slice %423 {offsets = [0, 96], sizes = [2, 32], strides = [1, 1]} : vector<2x128xf32> to vector<2x32xf32>
    %466 = arith.negf %465 : vector<2x32xf32>
    %467 = math.exp %466 : vector<2x32xf32>
    %cst_105 = arith.constant 1.000000e+00 : f32
    %468 = vector.broadcast %cst_105 : f32 to vector<2x32xf32>
    %469 = arith.addf %468, %467 : vector<2x32xf32>
    %470 = arith.divf %468, %469 : vector<2x32xf32>
    %471 = arith.mulf %462, %450 : vector<2x32xf32>
    %472 = arith.mulf %456, %464 : vector<2x32xf32>
    %473 = arith.addf %471, %472 : vector<2x32xf32>
    %474 = math.tanh %473 : vector<2x32xf32>
    %475 = arith.mulf %470, %474 : vector<2x32xf32>
    %476 = vector.broadcast %412 : i32 to vector<2x1xi32>
    %477 = arith.cmpi slt, %476, %3 : vector<2x1xi32>
    %478 = vector.broadcast %413 : i32 to vector<2x1xi32>
    %479 = arith.cmpi slt, %478, %3 : vector<2x1xi32>
    %cst_106 = arith.constant 0.000000e+00 : f32
    %480 = vector.shape_cast %477 : vector<2x1xi1> to vector<2x1xi1>
    %481 = vector.broadcast %480 : vector<2x1xi1> to vector<2x32xi1>
    %482 = vector.broadcast %cst_106 : f32 to vector<2x32xf32>
    %483 = arith.select %481, %449, %482 : vector<2x32xi1>, vector<2x32xf32>
    %c0_107 = arith.constant 0 : index
    %c4_108 = arith.constant 4 : index
    %c0_109 = arith.constant 0 : index
    %484 = vector.load %arg5[%c0_107, %c4_108, %c0_109] : memref<2x8x32xf32, #tpu.memory_space<vmem>>, vector<2x1x32xf32>
    %485 = vector.shape_cast %484 : vector<2x1x32xf32> to vector<2x32xf32>
    %486 = vector.shape_cast %483 : vector<2x32xf32> to vector<2x1x32xf32>
    tpu.vector_store %arg5[%c0_107, %c4_108, %c0_109], %486 {strides = array<i32>} : memref<2x8x32xf32, #tpu.memory_space<vmem>>, vector<2x1x32xf32>,
    %cst_110 = arith.constant 0.000000e+00 : f32
    %487 = vector.shape_cast %479 : vector<2x1xi1> to vector<2x1xi1>
    %488 = vector.broadcast %487 : vector<2x1xi1> to vector<2x32xi1>
    %489 = vector.broadcast %cst_110 : f32 to vector<2x32xf32>
    %490 = arith.select %488, %475, %489 : vector<2x32xi1>, vector<2x32xf32>
    %c0_111 = arith.constant 0 : index
    %c3_112 = arith.constant 3 : index
    %c0_113 = arith.constant 0 : index
    %491 = vector.load %arg6[%c0_111, %c3_112, %c0_113] : memref<2x8x32xf32, #tpu.memory_space<vmem>>, vector<2x1x32xf32>
    %492 = vector.shape_cast %491 : vector<2x1x32xf32> to vector<2x32xf32>
    %493 = vector.shape_cast %490 : vector<2x32xf32> to vector<2x1x32xf32>
    tpu.vector_store %arg6[%c0_111, %c3_112, %c0_113], %493 {strides = array<i32>} : memref<2x8x32xf32, #tpu.memory_space<vmem>>, vector<2x1x32xf32>,
    %494 = vector.extract_strided_slice %401 {offsets = [0, 0], sizes = [2, 32], strides = [1, 1]} : vector<4x32xf32> to vector<2x32xf32>
    %495 = vector.shape_cast %477 : vector<2x1xi1> to vector<2x1xi1>
    %496 = vector.broadcast %495 : vector<2x1xi1> to vector<2x32xi1>
    %497 = arith.select %496, %449, %494 : vector<2x32xi1>, vector<2x32xf32>
    %498 = vector.extract_strided_slice %401 {offsets = [2, 0], sizes = [2, 32], strides = [1, 1]} : vector<4x32xf32> to vector<2x32xf32>
    %499 = vector.shape_cast %479 : vector<2x1xi1> to vector<2x1xi1>
    %500 = vector.broadcast %499 : vector<2x1xi1> to vector<2x32xi1>
    %501 = arith.select %500, %475, %498 : vector<2x32xi1>, vector<2x32xf32>
    %502 = tpu.concatenate %497, %501 in 0 : vector<2x32xf32>, vector<2x32xf32> -> vector<4x32xf32>
    %503 = vector.extract_strided_slice %410 {offsets = [0, 0], sizes = [2, 32], strides = [1, 1]} : vector<4x32xf32> to vector<2x32xf32>
    %504 = vector.shape_cast %477 : vector<2x1xi1> to vector<2x1xi1>
    %505 = vector.broadcast %504 : vector<2x1xi1> to vector<2x32xi1>
    %506 = arith.select %505, %447, %503 : vector<2x32xi1>, vector<2x32xf32>
    %507 = vector.extract_strided_slice %410 {offsets = [2, 0], sizes = [2, 32], strides = [1, 1]} : vector<4x32xf32> to vector<2x32xf32>
    %508 = vector.shape_cast %479 : vector<2x1xi1> to vector<2x1xi1>
    %509 = vector.broadcast %508 : vector<2x1xi1> to vector<2x32xi1>
    %510 = arith.select %509, %473, %507 : vector<2x32xi1>, vector<2x32xf32>
    %511 = tpu.concatenate %506, %510 in 0 : vector<2x32xf32>, vector<2x32xf32> -> vector<4x32xf32>
    %c8_i32_114 = arith.constant 8 : i32
    %512 = arith.muli %arg0, %c8_i32_114 : i32
    %c5_i32 = arith.constant 5 : i32
    %513 = arith.addi %512, %c5_i32 : i32
    %c7_i32_115 = arith.constant 7 : i32
    %514 = arith.subi %c7_i32_115, %513 : i32
    %515 = arith.truncf %502 : vector<4x32xf32> to vector<4x32xbf16>
    %cst_116 = arith.constant dense<0.000000e+00> : vector<4x256xf32>
    %516 = tpu.matmul %515, %4, %cst_116 {dimension_numbers = #tpu.dot_dimension_numbers<[1], [0], [0], [1], [0, 0, 1, 1], [], []>} : vector<4x32xbf16>, vector<32x256xbf16>, vector<4x256xf32> -> vector<4x256xf32>
    %c0_117 = arith.constant 0 : index
    %c5_118 = arith.constant 5 : index
    %c0_119 = arith.constant 0 : index
    %517 = vector.load %arg1[%c0_117, %c5_118, %c0_119] : memref<2x8x128xf32, #tpu.memory_space<vmem>>, vector<2x1x128xf32>
    %518 = vector.shape_cast %517 : vector<2x1x128xf32> to vector<2x128xf32>
    %519 = vector.extract_strided_slice %516 {offsets = [0, 0], sizes = [2, 128], strides = [1, 1]} : vector<4x256xf32> to vector<2x128xf32>
    %520 = arith.addf %518, %519 : vector<2x128xf32>
    %c0_120 = arith.constant 0 : index
    %c2_121 = arith.constant 2 : index
    %c0_122 = arith.constant 0 : index
    %521 = vector.load %arg2[%c0_120, %c2_121, %c0_122] : memref<2x8x128xf32, #tpu.memory_space<vmem>>, vector<2x1x128xf32>
    %522 = vector.shape_cast %521 : vector<2x1x128xf32> to vector<2x128xf32>
    %523 = vector.extract_strided_slice %516 {offsets = [2, 128], sizes = [2, 128], strides = [1, 1]} : vector<4x256xf32> to vector<2x128xf32>
    %524 = arith.addf %522, %523 : vector<2x128xf32>
    %525 = vector.extract_strided_slice %511 {offsets = [0, 0], sizes = [2, 32], strides = [1, 1]} : vector<4x32xf32> to vector<2x32xf32>
    %526 = vector.extract_strided_slice %520 {offsets = [0, 0], sizes = [2, 32], strides = [1, 1]} : vector<2x128xf32> to vector<2x32xf32>
    %527 = arith.negf %526 : vector<2x32xf32>
    %528 = math.exp %527 : vector<2x32xf32>
    %cst_123 = arith.constant 1.000000e+00 : f32
    %529 = vector.broadcast %cst_123 : f32 to vector<2x32xf32>
    %530 = arith.addf %529, %528 : vector<2x32xf32>
    %531 = arith.divf %529, %530 : vector<2x32xf32>
    %532 = vector.extract_strided_slice %520 {offsets = [0, 32], sizes = [2, 32], strides = [1, 1]} : vector<2x128xf32> to vector<2x32xf32>
    %533 = arith.negf %532 : vector<2x32xf32>
    %534 = math.exp %533 : vector<2x32xf32>
    %cst_124 = arith.constant 1.000000e+00 : f32
    %535 = vector.broadcast %cst_124 : f32 to vector<2x32xf32>
    %536 = arith.addf %535, %534 : vector<2x32xf32>
    %537 = arith.divf %535, %536 : vector<2x32xf32>
    %538 = vector.extract_strided_slice %520 {offsets = [0, 64], sizes = [2, 32], strides = [1, 1]} : vector<2x128xf32> to vector<2x32xf32>
    %539 = math.tanh %538 : vector<2x32xf32>
    %540 = vector.extract_strided_slice %520 {offsets = [0, 96], sizes = [2, 32], strides = [1, 1]} : vector<2x128xf32> to vector<2x32xf32>
    %541 = arith.negf %540 : vector<2x32xf32>
    %542 = math.exp %541 : vector<2x32xf32>
    %cst_125 = arith.constant 1.000000e+00 : f32
    %543 = vector.broadcast %cst_125 : f32 to vector<2x32xf32>
    %544 = arith.addf %543, %542 : vector<2x32xf32>
    %545 = arith.divf %543, %544 : vector<2x32xf32>
    %546 = arith.mulf %537, %525 : vector<2x32xf32>
    %547 = arith.mulf %531, %539 : vector<2x32xf32>
    %548 = arith.addf %546, %547 : vector<2x32xf32>
    %549 = math.tanh %548 : vector<2x32xf32>
    %550 = arith.mulf %545, %549 : vector<2x32xf32>
    %551 = vector.extract_strided_slice %511 {offsets = [2, 0], sizes = [2, 32], strides = [1, 1]} : vector<4x32xf32> to vector<2x32xf32>
    %552 = vector.extract_strided_slice %524 {offsets = [0, 0], sizes = [2, 32], strides = [1, 1]} : vector<2x128xf32> to vector<2x32xf32>
    %553 = arith.negf %552 : vector<2x32xf32>
    %554 = math.exp %553 : vector<2x32xf32>
    %cst_126 = arith.constant 1.000000e+00 : f32
    %555 = vector.broadcast %cst_126 : f32 to vector<2x32xf32>
    %556 = arith.addf %555, %554 : vector<2x32xf32>
    %557 = arith.divf %555, %556 : vector<2x32xf32>
    %558 = vector.extract_strided_slice %524 {offsets = [0, 32], sizes = [2, 32], strides = [1, 1]} : vector<2x128xf32> to vector<2x32xf32>
    %559 = arith.negf %558 : vector<2x32xf32>
    %560 = math.exp %559 : vector<2x32xf32>
    %cst_127 = arith.constant 1.000000e+00 : f32
    %561 = vector.broadcast %cst_127 : f32 to vector<2x32xf32>
    %562 = arith.addf %561, %560 : vector<2x32xf32>
    %563 = arith.divf %561, %562 : vector<2x32xf32>
    %564 = vector.extract_strided_slice %524 {offsets = [0, 64], sizes = [2, 32], strides = [1, 1]} : vector<2x128xf32> to vector<2x32xf32>
    %565 = math.tanh %564 : vector<2x32xf32>
    %566 = vector.extract_strided_slice %524 {offsets = [0, 96], sizes = [2, 32], strides = [1, 1]} : vector<2x128xf32> to vector<2x32xf32>
    %567 = arith.negf %566 : vector<2x32xf32>
    %568 = math.exp %567 : vector<2x32xf32>
    %cst_128 = arith.constant 1.000000e+00 : f32
    %569 = vector.broadcast %cst_128 : f32 to vector<2x32xf32>
    %570 = arith.addf %569, %568 : vector<2x32xf32>
    %571 = arith.divf %569, %570 : vector<2x32xf32>
    %572 = arith.mulf %563, %551 : vector<2x32xf32>
    %573 = arith.mulf %557, %565 : vector<2x32xf32>
    %574 = arith.addf %572, %573 : vector<2x32xf32>
    %575 = math.tanh %574 : vector<2x32xf32>
    %576 = arith.mulf %571, %575 : vector<2x32xf32>
    %577 = vector.broadcast %513 : i32 to vector<2x1xi32>
    %578 = arith.cmpi slt, %577, %3 : vector<2x1xi32>
    %579 = vector.broadcast %514 : i32 to vector<2x1xi32>
    %580 = arith.cmpi slt, %579, %3 : vector<2x1xi32>
    %cst_129 = arith.constant 0.000000e+00 : f32
    %581 = vector.shape_cast %578 : vector<2x1xi1> to vector<2x1xi1>
    %582 = vector.broadcast %581 : vector<2x1xi1> to vector<2x32xi1>
    %583 = vector.broadcast %cst_129 : f32 to vector<2x32xf32>
    %584 = arith.select %582, %550, %583 : vector<2x32xi1>, vector<2x32xf32>
    %c0_130 = arith.constant 0 : index
    %c5_131 = arith.constant 5 : index
    %c0_132 = arith.constant 0 : index
    %585 = vector.load %arg5[%c0_130, %c5_131, %c0_132] : memref<2x8x32xf32, #tpu.memory_space<vmem>>, vector<2x1x32xf32>
    %586 = vector.shape_cast %585 : vector<2x1x32xf32> to vector<2x32xf32>
    %587 = vector.shape_cast %584 : vector<2x32xf32> to vector<2x1x32xf32>
    tpu.vector_store %arg5[%c0_130, %c5_131, %c0_132], %587 {strides = array<i32>} : memref<2x8x32xf32, #tpu.memory_space<vmem>>, vector<2x1x32xf32>,
    %cst_133 = arith.constant 0.000000e+00 : f32
    %588 = vector.shape_cast %580 : vector<2x1xi1> to vector<2x1xi1>
    %589 = vector.broadcast %588 : vector<2x1xi1> to vector<2x32xi1>
    %590 = vector.broadcast %cst_133 : f32 to vector<2x32xf32>
    %591 = arith.select %589, %576, %590 : vector<2x32xi1>, vector<2x32xf32>
    %c0_134 = arith.constant 0 : index
    %c2_135 = arith.constant 2 : index
    %c0_136 = arith.constant 0 : index
    %592 = vector.load %arg6[%c0_134, %c2_135, %c0_136] : memref<2x8x32xf32, #tpu.memory_space<vmem>>, vector<2x1x32xf32>
    %593 = vector.shape_cast %592 : vector<2x1x32xf32> to vector<2x32xf32>
    %594 = vector.shape_cast %591 : vector<2x32xf32> to vector<2x1x32xf32>
    tpu.vector_store %arg6[%c0_134, %c2_135, %c0_136], %594 {strides = array<i32>} : memref<2x8x32xf32, #tpu.memory_space<vmem>>, vector<2x1x32xf32>,
    %595 = vector.extract_strided_slice %502 {offsets = [0, 0], sizes = [2, 32], strides = [1, 1]} : vector<4x32xf32> to vector<2x32xf32>
    %596 = vector.shape_cast %578 : vector<2x1xi1> to vector<2x1xi1>
    %597 = vector.broadcast %596 : vector<2x1xi1> to vector<2x32xi1>
    %598 = arith.select %597, %550, %595 : vector<2x32xi1>, vector<2x32xf32>
    %599 = vector.extract_strided_slice %502 {offsets = [2, 0], sizes = [2, 32], strides = [1, 1]} : vector<4x32xf32> to vector<2x32xf32>
    %600 = vector.shape_cast %580 : vector<2x1xi1> to vector<2x1xi1>
    %601 = vector.broadcast %600 : vector<2x1xi1> to vector<2x32xi1>
    %602 = arith.select %601, %576, %599 : vector<2x32xi1>, vector<2x32xf32>
    %603 = tpu.concatenate %598, %602 in 0 : vector<2x32xf32>, vector<2x32xf32> -> vector<4x32xf32>
    %604 = vector.extract_strided_slice %511 {offsets = [0, 0], sizes = [2, 32], strides = [1, 1]} : vector<4x32xf32> to vector<2x32xf32>
    %605 = vector.shape_cast %578 : vector<2x1xi1> to vector<2x1xi1>
    %606 = vector.broadcast %605 : vector<2x1xi1> to vector<2x32xi1>
    %607 = arith.select %606, %548, %604 : vector<2x32xi1>, vector<2x32xf32>
    %608 = vector.extract_strided_slice %511 {offsets = [2, 0], sizes = [2, 32], strides = [1, 1]} : vector<4x32xf32> to vector<2x32xf32>
    %609 = vector.shape_cast %580 : vector<2x1xi1> to vector<2x1xi1>
    %610 = vector.broadcast %609 : vector<2x1xi1> to vector<2x32xi1>
    %611 = arith.select %610, %574, %608 : vector<2x32xi1>, vector<2x32xf32>
    %612 = tpu.concatenate %607, %611 in 0 : vector<2x32xf32>, vector<2x32xf32> -> vector<4x32xf32>
    %c8_i32_137 = arith.constant 8 : i32
    %613 = arith.muli %arg0, %c8_i32_137 : i32
    %c6_i32 = arith.constant 6 : i32
    %614 = arith.addi %613, %c6_i32 : i32
    %c7_i32_138 = arith.constant 7 : i32
    %615 = arith.subi %c7_i32_138, %614 : i32
    %616 = arith.truncf %603 : vector<4x32xf32> to vector<4x32xbf16>
    %cst_139 = arith.constant dense<0.000000e+00> : vector<4x256xf32>
    %617 = tpu.matmul %616, %4, %cst_139 {dimension_numbers = #tpu.dot_dimension_numbers<[1], [0], [0], [1], [0, 0, 1, 1], [], []>} : vector<4x32xbf16>, vector<32x256xbf16>, vector<4x256xf32> -> vector<4x256xf32>
    %c0_140 = arith.constant 0 : index
    %c6_141 = arith.constant 6 : index
    %c0_142 = arith.constant 0 : index
    %618 = vector.load %arg1[%c0_140, %c6_141, %c0_142] : memref<2x8x128xf32, #tpu.memory_space<vmem>>, vector<2x1x128xf32>
    %619 = vector.shape_cast %618 : vector<2x1x128xf32> to vector<2x128xf32>
    %620 = vector.extract_strided_slice %617 {offsets = [0, 0], sizes = [2, 128], strides = [1, 1]} : vector<4x256xf32> to vector<2x128xf32>
    %621 = arith.addf %619, %620 : vector<2x128xf32>
    %c0_143 = arith.constant 0 : index
    %c1_144 = arith.constant 1 : index
    %c0_145 = arith.constant 0 : index
    %622 = vector.load %arg2[%c0_143, %c1_144, %c0_145] : memref<2x8x128xf32, #tpu.memory_space<vmem>>, vector<2x1x128xf32>
    %623 = vector.shape_cast %622 : vector<2x1x128xf32> to vector<2x128xf32>
    %624 = vector.extract_strided_slice %617 {offsets = [2, 128], sizes = [2, 128], strides = [1, 1]} : vector<4x256xf32> to vector<2x128xf32>
    %625 = arith.addf %623, %624 : vector<2x128xf32>
    %626 = vector.extract_strided_slice %612 {offsets = [0, 0], sizes = [2, 32], strides = [1, 1]} : vector<4x32xf32> to vector<2x32xf32>
    %627 = vector.extract_strided_slice %621 {offsets = [0, 0], sizes = [2, 32], strides = [1, 1]} : vector<2x128xf32> to vector<2x32xf32>
    %628 = arith.negf %627 : vector<2x32xf32>
    %629 = math.exp %628 : vector<2x32xf32>
    %cst_146 = arith.constant 1.000000e+00 : f32
    %630 = vector.broadcast %cst_146 : f32 to vector<2x32xf32>
    %631 = arith.addf %630, %629 : vector<2x32xf32>
    %632 = arith.divf %630, %631 : vector<2x32xf32>
    %633 = vector.extract_strided_slice %621 {offsets = [0, 32], sizes = [2, 32], strides = [1, 1]} : vector<2x128xf32> to vector<2x32xf32>
    %634 = arith.negf %633 : vector<2x32xf32>
    %635 = math.exp %634 : vector<2x32xf32>
    %cst_147 = arith.constant 1.000000e+00 : f32
    %636 = vector.broadcast %cst_147 : f32 to vector<2x32xf32>
    %637 = arith.addf %636, %635 : vector<2x32xf32>
    %638 = arith.divf %636, %637 : vector<2x32xf32>
    %639 = vector.extract_strided_slice %621 {offsets = [0, 64], sizes = [2, 32], strides = [1, 1]} : vector<2x128xf32> to vector<2x32xf32>
    %640 = math.tanh %639 : vector<2x32xf32>
    %641 = vector.extract_strided_slice %621 {offsets = [0, 96], sizes = [2, 32], strides = [1, 1]} : vector<2x128xf32> to vector<2x32xf32>
    %642 = arith.negf %641 : vector<2x32xf32>
    %643 = math.exp %642 : vector<2x32xf32>
    %cst_148 = arith.constant 1.000000e+00 : f32
    %644 = vector.broadcast %cst_148 : f32 to vector<2x32xf32>
    %645 = arith.addf %644, %643 : vector<2x32xf32>
    %646 = arith.divf %644, %645 : vector<2x32xf32>
    %647 = arith.mulf %638, %626 : vector<2x32xf32>
    %648 = arith.mulf %632, %640 : vector<2x32xf32>
    %649 = arith.addf %647, %648 : vector<2x32xf32>
    %650 = math.tanh %649 : vector<2x32xf32>
    %651 = arith.mulf %646, %650 : vector<2x32xf32>
    %652 = vector.extract_strided_slice %612 {offsets = [2, 0], sizes = [2, 32], strides = [1, 1]} : vector<4x32xf32> to vector<2x32xf32>
    %653 = vector.extract_strided_slice %625 {offsets = [0, 0], sizes = [2, 32], strides = [1, 1]} : vector<2x128xf32> to vector<2x32xf32>
    %654 = arith.negf %653 : vector<2x32xf32>
    %655 = math.exp %654 : vector<2x32xf32>
    %cst_149 = arith.constant 1.000000e+00 : f32
    %656 = vector.broadcast %cst_149 : f32 to vector<2x32xf32>
    %657 = arith.addf %656, %655 : vector<2x32xf32>
    %658 = arith.divf %656, %657 : vector<2x32xf32>
    %659 = vector.extract_strided_slice %625 {offsets = [0, 32], sizes = [2, 32], strides = [1, 1]} : vector<2x128xf32> to vector<2x32xf32>
    %660 = arith.negf %659 : vector<2x32xf32>
    %661 = math.exp %660 : vector<2x32xf32>
    %cst_150 = arith.constant 1.000000e+00 : f32
    %662 = vector.broadcast %cst_150 : f32 to vector<2x32xf32>
    %663 = arith.addf %662, %661 : vector<2x32xf32>
    %664 = arith.divf %662, %663 : vector<2x32xf32>
    %665 = vector.extract_strided_slice %625 {offsets = [0, 64], sizes = [2, 32], strides = [1, 1]} : vector<2x128xf32> to vector<2x32xf32>
    %666 = math.tanh %665 : vector<2x32xf32>
    %667 = vector.extract_strided_slice %625 {offsets = [0, 96], sizes = [2, 32], strides = [1, 1]} : vector<2x128xf32> to vector<2x32xf32>
    %668 = arith.negf %667 : vector<2x32xf32>
    %669 = math.exp %668 : vector<2x32xf32>
    %cst_151 = arith.constant 1.000000e+00 : f32
    %670 = vector.broadcast %cst_151 : f32 to vector<2x32xf32>
    %671 = arith.addf %670, %669 : vector<2x32xf32>
    %672 = arith.divf %670, %671 : vector<2x32xf32>
    %673 = arith.mulf %664, %652 : vector<2x32xf32>
    %674 = arith.mulf %658, %666 : vector<2x32xf32>
    %675 = arith.addf %673, %674 : vector<2x32xf32>
    %676 = math.tanh %675 : vector<2x32xf32>
    %677 = arith.mulf %672, %676 : vector<2x32xf32>
    %678 = vector.broadcast %614 : i32 to vector<2x1xi32>
    %679 = arith.cmpi slt, %678, %3 : vector<2x1xi32>
    %680 = vector.broadcast %615 : i32 to vector<2x1xi32>
    %681 = arith.cmpi slt, %680, %3 : vector<2x1xi32>
    %cst_152 = arith.constant 0.000000e+00 : f32
    %682 = vector.shape_cast %679 : vector<2x1xi1> to vector<2x1xi1>
    %683 = vector.broadcast %682 : vector<2x1xi1> to vector<2x32xi1>
    %684 = vector.broadcast %cst_152 : f32 to vector<2x32xf32>
    %685 = arith.select %683, %651, %684 : vector<2x32xi1>, vector<2x32xf32>
    %c0_153 = arith.constant 0 : index
    %c6_154 = arith.constant 6 : index
    %c0_155 = arith.constant 0 : index
    %686 = vector.load %arg5[%c0_153, %c6_154, %c0_155] : memref<2x8x32xf32, #tpu.memory_space<vmem>>, vector<2x1x32xf32>
    %687 = vector.shape_cast %686 : vector<2x1x32xf32> to vector<2x32xf32>
    %688 = vector.shape_cast %685 : vector<2x32xf32> to vector<2x1x32xf32>
    tpu.vector_store %arg5[%c0_153, %c6_154, %c0_155], %688 {strides = array<i32>} : memref<2x8x32xf32, #tpu.memory_space<vmem>>, vector<2x1x32xf32>,
    %cst_156 = arith.constant 0.000000e+00 : f32
    %689 = vector.shape_cast %681 : vector<2x1xi1> to vector<2x1xi1>
    %690 = vector.broadcast %689 : vector<2x1xi1> to vector<2x32xi1>
    %691 = vector.broadcast %cst_156 : f32 to vector<2x32xf32>
    %692 = arith.select %690, %677, %691 : vector<2x32xi1>, vector<2x32xf32>
    %c0_157 = arith.constant 0 : index
    %c1_158 = arith.constant 1 : index
    %c0_159 = arith.constant 0 : index
    %693 = vector.load %arg6[%c0_157, %c1_158, %c0_159] : memref<2x8x32xf32, #tpu.memory_space<vmem>>, vector<2x1x32xf32>
    %694 = vector.shape_cast %693 : vector<2x1x32xf32> to vector<2x32xf32>
    %695 = vector.shape_cast %692 : vector<2x32xf32> to vector<2x1x32xf32>
    tpu.vector_store %arg6[%c0_157, %c1_158, %c0_159], %695 {strides = array<i32>} : memref<2x8x32xf32, #tpu.memory_space<vmem>>, vector<2x1x32xf32>,
    %696 = vector.extract_strided_slice %603 {offsets = [0, 0], sizes = [2, 32], strides = [1, 1]} : vector<4x32xf32> to vector<2x32xf32>
    %697 = vector.shape_cast %679 : vector<2x1xi1> to vector<2x1xi1>
    %698 = vector.broadcast %697 : vector<2x1xi1> to vector<2x32xi1>
    %699 = arith.select %698, %651, %696 : vector<2x32xi1>, vector<2x32xf32>
    %700 = vector.extract_strided_slice %603 {offsets = [2, 0], sizes = [2, 32], strides = [1, 1]} : vector<4x32xf32> to vector<2x32xf32>
    %701 = vector.shape_cast %681 : vector<2x1xi1> to vector<2x1xi1>
    %702 = vector.broadcast %701 : vector<2x1xi1> to vector<2x32xi1>
    %703 = arith.select %702, %677, %700 : vector<2x32xi1>, vector<2x32xf32>
    %704 = tpu.concatenate %699, %703 in 0 : vector<2x32xf32>, vector<2x32xf32> -> vector<4x32xf32>
    %705 = vector.extract_strided_slice %612 {offsets = [0, 0], sizes = [2, 32], strides = [1, 1]} : vector<4x32xf32> to vector<2x32xf32>
    %706 = vector.shape_cast %679 : vector<2x1xi1> to vector<2x1xi1>
    %707 = vector.broadcast %706 : vector<2x1xi1> to vector<2x32xi1>
    %708 = arith.select %707, %649, %705 : vector<2x32xi1>, vector<2x32xf32>
    %709 = vector.extract_strided_slice %612 {offsets = [2, 0], sizes = [2, 32], strides = [1, 1]} : vector<4x32xf32> to vector<2x32xf32>
    %710 = vector.shape_cast %681 : vector<2x1xi1> to vector<2x1xi1>
    %711 = vector.broadcast %710 : vector<2x1xi1> to vector<2x32xi1>
    %712 = arith.select %711, %675, %709 : vector<2x32xi1>, vector<2x32xf32>
    %713 = tpu.concatenate %708, %712 in 0 : vector<2x32xf32>, vector<2x32xf32> -> vector<4x32xf32>
    %c8_i32_160 = arith.constant 8 : i32
    %714 = arith.muli %arg0, %c8_i32_160 : i32
    %c7_i32_161 = arith.constant 7 : i32
    %715 = arith.addi %714, %c7_i32_161 : i32
    %c7_i32_162 = arith.constant 7 : i32
    %716 = arith.subi %c7_i32_162, %715 : i32
    %717 = arith.truncf %704 : vector<4x32xf32> to vector<4x32xbf16>
    %cst_163 = arith.constant dense<0.000000e+00> : vector<4x256xf32>
    %718 = tpu.matmul %717, %4, %cst_163 {dimension_numbers = #tpu.dot_dimension_numbers<[1], [0], [0], [1], [0, 0, 1, 1], [], []>} : vector<4x32xbf16>, vector<32x256xbf16>, vector<4x256xf32> -> vector<4x256xf32>
    %c0_164 = arith.constant 0 : index
    %c7_165 = arith.constant 7 : index
    %c0_166 = arith.constant 0 : index
    %719 = vector.load %arg1[%c0_164, %c7_165, %c0_166] : memref<2x8x128xf32, #tpu.memory_space<vmem>>, vector<2x1x128xf32>
    %720 = vector.shape_cast %719 : vector<2x1x128xf32> to vector<2x128xf32>
    %721 = vector.extract_strided_slice %718 {offsets = [0, 0], sizes = [2, 128], strides = [1, 1]} : vector<4x256xf32> to vector<2x128xf32>
    %722 = arith.addf %720, %721 : vector<2x128xf32>
    %c0_167 = arith.constant 0 : index
    %c0_168 = arith.constant 0 : index
    %c0_169 = arith.constant 0 : index
    %723 = vector.load %arg2[%c0_167, %c0_168, %c0_169] : memref<2x8x128xf32, #tpu.memory_space<vmem>>, vector<2x1x128xf32>
    %724 = vector.shape_cast %723 : vector<2x1x128xf32> to vector<2x128xf32>
    %725 = vector.extract_strided_slice %718 {offsets = [2, 128], sizes = [2, 128], strides = [1, 1]} : vector<4x256xf32> to vector<2x128xf32>
    %726 = arith.addf %724, %725 : vector<2x128xf32>
    %727 = vector.extract_strided_slice %713 {offsets = [0, 0], sizes = [2, 32], strides = [1, 1]} : vector<4x32xf32> to vector<2x32xf32>
    %728 = vector.extract_strided_slice %722 {offsets = [0, 0], sizes = [2, 32], strides = [1, 1]} : vector<2x128xf32> to vector<2x32xf32>
    %729 = arith.negf %728 : vector<2x32xf32>
    %730 = math.exp %729 : vector<2x32xf32>
    %cst_170 = arith.constant 1.000000e+00 : f32
    %731 = vector.broadcast %cst_170 : f32 to vector<2x32xf32>
    %732 = arith.addf %731, %730 : vector<2x32xf32>
    %733 = arith.divf %731, %732 : vector<2x32xf32>
    %734 = vector.extract_strided_slice %722 {offsets = [0, 32], sizes = [2, 32], strides = [1, 1]} : vector<2x128xf32> to vector<2x32xf32>
    %735 = arith.negf %734 : vector<2x32xf32>
    %736 = math.exp %735 : vector<2x32xf32>
    %cst_171 = arith.constant 1.000000e+00 : f32
    %737 = vector.broadcast %cst_171 : f32 to vector<2x32xf32>
    %738 = arith.addf %737, %736 : vector<2x32xf32>
    %739 = arith.divf %737, %738 : vector<2x32xf32>
    %740 = vector.extract_strided_slice %722 {offsets = [0, 64], sizes = [2, 32], strides = [1, 1]} : vector<2x128xf32> to vector<2x32xf32>
    %741 = math.tanh %740 : vector<2x32xf32>
    %742 = vector.extract_strided_slice %722 {offsets = [0, 96], sizes = [2, 32], strides = [1, 1]} : vector<2x128xf32> to vector<2x32xf32>
    %743 = arith.negf %742 : vector<2x32xf32>
    %744 = math.exp %743 : vector<2x32xf32>
    %cst_172 = arith.constant 1.000000e+00 : f32
    %745 = vector.broadcast %cst_172 : f32 to vector<2x32xf32>
    %746 = arith.addf %745, %744 : vector<2x32xf32>
    %747 = arith.divf %745, %746 : vector<2x32xf32>
    %748 = arith.mulf %739, %727 : vector<2x32xf32>
    %749 = arith.mulf %733, %741 : vector<2x32xf32>
    %750 = arith.addf %748, %749 : vector<2x32xf32>
    %751 = math.tanh %750 : vector<2x32xf32>
    %752 = arith.mulf %747, %751 : vector<2x32xf32>
    %753 = vector.extract_strided_slice %713 {offsets = [2, 0], sizes = [2, 32], strides = [1, 1]} : vector<4x32xf32> to vector<2x32xf32>
    %754 = vector.extract_strided_slice %726 {offsets = [0, 0], sizes = [2, 32], strides = [1, 1]} : vector<2x128xf32> to vector<2x32xf32>
    %755 = arith.negf %754 : vector<2x32xf32>
    %756 = math.exp %755 : vector<2x32xf32>
    %cst_173 = arith.constant 1.000000e+00 : f32
    %757 = vector.broadcast %cst_173 : f32 to vector<2x32xf32>
    %758 = arith.addf %757, %756 : vector<2x32xf32>
    %759 = arith.divf %757, %758 : vector<2x32xf32>
    %760 = vector.extract_strided_slice %726 {offsets = [0, 32], sizes = [2, 32], strides = [1, 1]} : vector<2x128xf32> to vector<2x32xf32>
    %761 = arith.negf %760 : vector<2x32xf32>
    %762 = math.exp %761 : vector<2x32xf32>
    %cst_174 = arith.constant 1.000000e+00 : f32
    %763 = vector.broadcast %cst_174 : f32 to vector<2x32xf32>
    %764 = arith.addf %763, %762 : vector<2x32xf32>
    %765 = arith.divf %763, %764 : vector<2x32xf32>
    %766 = vector.extract_strided_slice %726 {offsets = [0, 64], sizes = [2, 32], strides = [1, 1]} : vector<2x128xf32> to vector<2x32xf32>
    %767 = math.tanh %766 : vector<2x32xf32>
    %768 = vector.extract_strided_slice %726 {offsets = [0, 96], sizes = [2, 32], strides = [1, 1]} : vector<2x128xf32> to vector<2x32xf32>
    %769 = arith.negf %768 : vector<2x32xf32>
    %770 = math.exp %769 : vector<2x32xf32>
    %cst_175 = arith.constant 1.000000e+00 : f32
    %771 = vector.broadcast %cst_175 : f32 to vector<2x32xf32>
    %772 = arith.addf %771, %770 : vector<2x32xf32>
    %773 = arith.divf %771, %772 : vector<2x32xf32>
    %774 = arith.mulf %765, %753 : vector<2x32xf32>
    %775 = arith.mulf %759, %767 : vector<2x32xf32>
    %776 = arith.addf %774, %775 : vector<2x32xf32>
    %777 = math.tanh %776 : vector<2x32xf32>
    %778 = arith.mulf %773, %777 : vector<2x32xf32>
    %779 = vector.broadcast %715 : i32 to vector<2x1xi32>
    %780 = arith.cmpi slt, %779, %3 : vector<2x1xi32>
    %781 = vector.broadcast %716 : i32 to vector<2x1xi32>
    %782 = arith.cmpi slt, %781, %3 : vector<2x1xi32>
    %cst_176 = arith.constant 0.000000e+00 : f32
    %783 = vector.shape_cast %780 : vector<2x1xi1> to vector<2x1xi1>
    %784 = vector.broadcast %783 : vector<2x1xi1> to vector<2x32xi1>
    %785 = vector.broadcast %cst_176 : f32 to vector<2x32xf32>
    %786 = arith.select %784, %752, %785 : vector<2x32xi1>, vector<2x32xf32>
    %c0_177 = arith.constant 0 : index
    %c7_178 = arith.constant 7 : index
    %c0_179 = arith.constant 0 : index
    %787 = vector.load %arg5[%c0_177, %c7_178, %c0_179] : memref<2x8x32xf32, #tpu.memory_space<vmem>>, vector<2x1x32xf32>
    %788 = vector.shape_cast %787 : vector<2x1x32xf32> to vector<2x32xf32>
    %789 = vector.shape_cast %786 : vector<2x32xf32> to vector<2x1x32xf32>
    tpu.vector_store %arg5[%c0_177, %c7_178, %c0_179], %789 {strides = array<i32>} : memref<2x8x32xf32, #tpu.memory_space<vmem>>, vector<2x1x32xf32>,
    %cst_180 = arith.constant 0.000000e+00 : f32
    %790 = vector.shape_cast %782 : vector<2x1xi1> to vector<2x1xi1>
    %791 = vector.broadcast %790 : vector<2x1xi1> to vector<2x32xi1>
    %792 = vector.broadcast %cst_180 : f32 to vector<2x32xf32>
    %793 = arith.select %791, %778, %792 : vector<2x32xi1>, vector<2x32xf32>
    %c0_181 = arith.constant 0 : index
    %c0_182 = arith.constant 0 : index
    %c0_183 = arith.constant 0 : index
    %794 = vector.load %arg6[%c0_181, %c0_182, %c0_183] : memref<2x8x32xf32, #tpu.memory_space<vmem>>, vector<2x1x32xf32>
    %795 = vector.shape_cast %794 : vector<2x1x32xf32> to vector<2x32xf32>
    %796 = vector.shape_cast %793 : vector<2x32xf32> to vector<2x1x32xf32>
    tpu.vector_store %arg6[%c0_181, %c0_182, %c0_183], %796 {strides = array<i32>} : memref<2x8x32xf32, #tpu.memory_space<vmem>>, vector<2x1x32xf32>,
    %797 = vector.extract_strided_slice %704 {offsets = [0, 0], sizes = [2, 32], strides = [1, 1]} : vector<4x32xf32> to vector<2x32xf32>
    %798 = vector.shape_cast %780 : vector<2x1xi1> to vector<2x1xi1>
    %799 = vector.broadcast %798 : vector<2x1xi1> to vector<2x32xi1>
    %800 = arith.select %799, %752, %797 : vector<2x32xi1>, vector<2x32xf32>
    %801 = vector.extract_strided_slice %704 {offsets = [2, 0], sizes = [2, 32], strides = [1, 1]} : vector<4x32xf32> to vector<2x32xf32>
    %802 = vector.shape_cast %782 : vector<2x1xi1> to vector<2x1xi1>
    %803 = vector.broadcast %802 : vector<2x1xi1> to vector<2x32xi1>
    %804 = arith.select %803, %778, %801 : vector<2x32xi1>, vector<2x32xf32>
    %805 = tpu.concatenate %800, %804 in 0 : vector<2x32xf32>, vector<2x32xf32> -> vector<4x32xf32>
    %806 = vector.extract_strided_slice %713 {offsets = [0, 0], sizes = [2, 32], strides = [1, 1]} : vector<4x32xf32> to vector<2x32xf32>
    %807 = vector.shape_cast %780 : vector<2x1xi1> to vector<2x1xi1>
    %808 = vector.broadcast %807 : vector<2x1xi1> to vector<2x32xi1>
    %809 = arith.select %808, %750, %806 : vector<2x32xi1>, vector<2x32xf32>
    %810 = vector.extract_strided_slice %713 {offsets = [2, 0], sizes = [2, 32], strides = [1, 1]} : vector<4x32xf32> to vector<2x32xf32>
    %811 = vector.shape_cast %782 : vector<2x1xi1> to vector<2x1xi1>
    %812 = vector.broadcast %811 : vector<2x1xi1> to vector<2x32xi1>
    %813 = arith.select %812, %776, %810 : vector<2x32xi1>, vector<2x32xf32>
    %814 = tpu.concatenate %809, %813 in 0 : vector<2x32xf32>, vector<2x32xf32> -> vector<4x32xf32>
    %c0_184 = arith.constant 0 : index
    %c0_185 = arith.constant 0 : index
    %815 = vector.load %arg7[%c0_184, %c0_185] : memref<4x32xf32, #tpu.memory_space<vmem>>, vector<4x32xf32>
    tpu.vector_store %arg7[%c0_184, %c0_185], %805 {strides = array<i32>} : memref<4x32xf32, #tpu.memory_space<vmem>>, vector<4x32xf32>,
    %c0_186 = arith.constant 0 : index
    %c0_187 = arith.constant 0 : index
    %816 = vector.load %arg8[%c0_186, %c0_187] : memref<4x32xf32, #tpu.memory_space<vmem>>, vector<4x32xf32>
    tpu.vector_store %arg8[%c0_186, %c0_187], %814 {strides = array<i32>} : memref<4x32xf32, #tpu.memory_space<vmem>>, vector<4x32xf32>,
    return
  }
  func.func @transform_0(%arg0: i32) -> (i32, i32, i32) {
    %c0_i32 = arith.constant 0 : i32
    %c0_i32_0 = arith.constant 0 : i32
    %c0_i32_1 = arith.constant 0 : i32
    return %c0_i32, %arg0, %c0_i32_0 : i32, i32, i32
  }
  func.func @transform_1(%arg0: i32) -> (i32, i32, i32) {
    %c0_i32 = arith.constant 0 : i32
    %0 = arith.subi %c0_i32, %arg0 : i32
    %c0_i32_0 = arith.constant 0 : i32
    %c1_i32 = arith.constant 1 : i32
    %c0_i32_1 = arith.constant 0 : i32
    return %c0_i32_0, %0, %c1_i32 : i32, i32, i32
  }
  func.func @transform_2(%arg0: i32) -> (i32, i32) {
    %c0_i32 = arith.constant 0 : i32
    %c0_i32_0 = arith.constant 0 : i32
    %c0_i32_1 = arith.constant 0 : i32
    return %c0_i32, %c0_i32_0 : i32, i32
  }
  func.func @transform_3(%arg0: i32) -> (i32, i32) {
    %c0_i32 = arith.constant 0 : i32
    %c0_i32_0 = arith.constant 0 : i32
    %c0_i32_1 = arith.constant 0 : i32
    return %c0_i32, %c0_i32_0 : i32, i32
  }
  func.func @transform_4(%arg0: i32) -> (i32, i32, i32) {
    %c0_i32 = arith.constant 0 : i32
    %c0_i32_0 = arith.constant 0 : i32
    %c0_i32_1 = arith.constant 0 : i32
    return %c0_i32, %arg0, %c0_i32_0 : i32, i32, i32
  }
  func.func @transform_5(%arg0: i32) -> (i32, i32, i32) {
    %c0_i32 = arith.constant 0 : i32
    %0 = arith.subi %c0_i32, %arg0 : i32
    %c0_i32_0 = arith.constant 0 : i32
    %c0_i32_1 = arith.constant 0 : i32
    %c0_i32_2 = arith.constant 0 : i32
    return %c0_i32_0, %0, %c0_i32_1 : i32, i32, i32
  }
}

</mosaic_0001>

<llo_original>
// kernel: encoder_forward.4
$region0: #{encoder_forward.4}
  #allocation0 [shape = 'u32[]', space=smem, size = 0x4, offset = 0x4, fixed_abs, tag = 'smem constant byte address 0x4 - core index']
  #allocation1 [shape = 'u32[144,128]{1,0:T(1,128)}', space=vmem, size = 0x12000, scoped, tag = 'internal scratch']
  %s0 = inlined_call_operand.vmem [shape: f32[16,32], index: 0, kind: input, shape index: {}]
  %s1 = inlined_call_operand.vmem [shape: bf16[32,256], index: 1, kind: input, shape index: {}]
  %s2 = inlined_call_operand.vmem [shape: f32[1,256], index: 2, kind: input, shape index: {}]
  %s3 = inlined_call_operand.vmem [shape: f32[16,256], index: 3, kind: output, shape index: {}]
  %s4 = sld [smem:[#allocation0]]
  $region22: #{encoder_forward.4} parent=0
    _
  %s6 = ssub.s32 1, %s4
  %s7 = scalar_select 0, %s6, %s4
  // Predicated region
  $region2: #{encoder_forward.4} parent=0 // pred_check
    _
  $region3: #{encoder_forward.4} parent=0 // pred_check_branch
    %9 = sbr.rel (0) target = $region5
  $region4: #{encoder_forward.4} parent=0 // pred_region
    _
  $region5: #{encoder_forward.4} parent=0 // pred_fallthru
    _
  // Predicated region
  $region6: #{encoder_forward.4} parent=0 // pred_check
    _
  $region7: #{encoder_forward.4} parent=0 // pred_check_branch
    %11 = sbr.rel (0) target = $region9
  $region8: #{encoder_forward.4} parent=0 // pred_region
    _
  $region9: #{encoder_forward.4} parent=0 // pred_fallthru
    _
  // Predicated region
  $region10: #{encoder_forward.4} parent=0 // pred_check
    _
  $region11: #{encoder_forward.4} parent=0 // pred_check_branch
    %13 = sbr.rel (0) target = $region13
  $region12: #{encoder_forward.4} parent=0 // pred_region
    _
  $region13: #{encoder_forward.4} parent=0 // pred_fallthru
    _
  %v15 = vld [vmem:[%s0] sm:$0xff]
  %v16 = vld [vmem:[%s0 + $0x8] sm:$0xff]
  %v17 = vpack.c.bf16 %v16, %v15
  %v18 = vld [vmem:[%s1] sm:$0xff]
  %v19 = vld [vmem:[%s1 + $0x8] sm:$0xff]
  %v20 = vld [vmem:[%s1 + $0x10] sm:$0xff]
  %v21 = vld [vmem:[%s1 + $0x18] sm:$0xff]
  %v22 = vld [vmem:[%s2] sm:$0x3]
  %v24 = vlaneseq
  %v25 = vshrl.u32 %v24, 7
  %v26 = vsub.s32 0, %v25
  %v27 = vrot.slane %v22, %v26
  %v28 = vlaneseq
  %v29 = vshrl.u32 %v28, 7
  %v30 = vsub.s32 1, %v29
  %v31 = vrot.slane %v22, %v30
  %v38 = vunpack.c.l.b16 %v18
  %v39 = vunpack.c.h.b16 %v18
  %v40 = vunpack.c.l.b16 %v19
  %v41 = vunpack.c.h.b16 %v19
  %v42 = vunpack.c.l.b16 %v20
  %v43 = vunpack.c.h.b16 %v20
  %v44 = vunpack.c.l.b16 %v21
  %v45 = vunpack.c.h.b16 %v21
  %v46 = vpack.c.b16 %v40, %v38
  %v47 = vpack.c.b16 %v41, %v39
  %v48 = vpack.c.b16 %v44, %v42
  %v49 = vpack.c.b16 %v45, %v43
  %vm54 = vcmask 261120
  %v56 = vsel %vm54, %v17, 0
  %58 = vmatprep.subr.bf16.mxu0 %v47
  %59 = vmatpush1.bf16.msra.mxu0 %v46
  %60 = vmatprep.subr.bf16.mxu0 %v49
  %61 = vmatpush1.bf16.msra.mxu0 %v48
  %62 = vmatprep.subr.bf16.mxu0 0
  %63 = vmatpush1.bf16.msra.mxu0 0
  %64 = vmatprep.subr.bf16.mxu0 0
  %65 = vmatpush1.bf16.msra.mxu0 0
  %66 = vmatprep.subr.bf16.mxu0 0
  %67 = vmatpush1.bf16.msra.mxu0 0
  %68 = vmatprep.subr.bf16.mxu0 0
  %69 = vmatpush1.bf16.msra.mxu0 0
  %70 = vmatprep.subr.bf16.mxu0 0
  %71 = vmatpush1.bf16.msra.mxu0 0
  %72 = vmatprep.subr.bf16.mxu0 0
  %73 = vmatpush1.bf16.msra.mxu0 0
  %74 = vmatprep.subr.bf16.mxu0 0
  %75 = vmatpush1.bf16.msra.mxu0 0
  %76 = vmatprep.subr.bf16.mxu0 0
  %77 = vmatpush1.bf16.msra.mxu0 0
  %78 = vmatprep.subr.bf16.mxu0 0
  %79 = vmatpush1.bf16.msra.mxu0 0
  %80 = vmatprep.subr.bf16.mxu0 0
  %81 = vmatpush1.bf16.msra.mxu0 0
  %82 = vmatprep.subr.bf16.mxu0 0
  %83 = vmatpush1.bf16.msra.mxu0 0
  %84 = vmatprep.subr.bf16.mxu0 0
  %85 = vmatpush1.bf16.msra.mxu0 0
  %86 = vmatprep.subr.bf16.mxu0 0
  %87 = vmatpush1.bf16.msra.mxu0 0
  %88 = vmatprep.subr.bf16.mxu0 0
  %89 = vmatpush1.bf16.msra.mxu0 0
  %90 = vmatprep.mubr.bf16.mxu0 0
  %91 = vmatmul.mubr.bf16.gmra.mrb[0].mxu0 %v56
  %v92 = vpop.f32.mrb[0].mxu0
  %v93 = vadd.f32 %v27, %v92
  %v94 = vpop.f32.mrb[0].mxu0
  %v95 = vadd.f32 %v31, %v94
  %v96 = vpop.f32.mrb[0].mxu0
  %v97 = vadd.f32 %v27, %v96
  %v98 = vpop.f32.mrb[0].mxu0
  %v99 = vadd.f32 %v31, %v98
  %100 = vdwg.mxu0
  %101 = vst [vmem:[%s3] sm:$0xff] %v93
  %102 = vst [vmem:[%s3 + $0x8] sm:$0xff] %v95
  %103 = vst [vmem:[%s3 + $0x10] sm:$0xff] %v97
  %104 = vst [vmem:[%s3 + $0x18] sm:$0xff] %v99
  // Predicated region
  $region14: #{encoder_forward.4} parent=0 // pred_check
    _
  $region15: #{encoder_forward.4} parent=0 // pred_check_branch
    %106 = sbr.rel (0) target = $region17
  $region16: #{encoder_forward.4} parent=0 // pred_region
    _
  $region17: #{encoder_forward.4} parent=0 // pred_fallthru
    _
  // Predicated region
  $region18: #{encoder_forward.4} parent=0 // pred_check
    _
  $region19: #{encoder_forward.4} parent=0 // pred_check_branch
    %108 = sbr.rel (0) target = $region21
  $region20: #{encoder_forward.4} parent=0 // pred_region
    _
  $region21: #{encoder_forward.4} parent=0 // pred_fallthru
    _

// kernel: encoder_forward.6
$region0: #{encoder_forward.6}
  #allocation0 [shape = 'u32[]', space=smem, size = 0x4, offset = 0x4, fixed_abs, tag = 'smem constant byte address 0x4 - core index']
  #allocation1 [shape = 'u32[144,128]{1,0:T(1,128)}', space=vmem, size = 0x12000, scoped, tag = 'internal scratch']
  %s0 = inlined_call_operand.vmem [shape: f32[16,32], index: 0, kind: input, shape index: {}]
  %s1 = inlined_call_operand.vmem [shape: f32[16,32], index: 1, kind: input, shape index: {}]
  %s2 = inlined_call_operand.vmem [shape: bf16[32,256], index: 2, kind: input, shape index: {}]
  %s3 = inlined_call_operand.vmem [shape: bf16[32,256], index: 3, kind: input, shape index: {}]
  %s4 = inlined_call_operand.vmem [shape: f32[1,256], index: 4, kind: input, shape index: {}]
  %s5 = inlined_call_operand.vmem [shape: f32[16,256], index: 5, kind: output, shape index: {}]
  %s6 = sld [smem:[#allocation0]]
  $region30: #{encoder_forward.6} parent=0
    _
  %s8 = ssub.s32 1, %s6
  %s9 = scalar_select 0, %s8, %s6
  // Predicated region
  $region2: #{encoder_forward.6} parent=0 // pred_check
    _
  $region3: #{encoder_forward.6} parent=0 // pred_check_branch
    %11 = sbr.rel (0) target = $region5
  $region4: #{encoder_forward.6} parent=0 // pred_region
    _
  $region5: #{encoder_forward.6} parent=0 // pred_fallthru
    _
  // Predicated region
  $region6: #{encoder_forward.6} parent=0 // pred_check
    _
  $region7: #{encoder_forward.6} parent=0 // pred_check_branch
    %13 = sbr.rel (0) target = $region9
  $region8: #{encoder_forward.6} parent=0 // pred_region
    _
  $region9: #{encoder_forward.6} parent=0 // pred_fallthru
    _
  // Predicated region
  $region10: #{encoder_forward.6} parent=0 // pred_check
    _
  $region11: #{encoder_forward.6} parent=0 // pred_check_branch
    %15 = sbr.rel (0) target = $region13
  $region12: #{encoder_forward.6} parent=0 // pred_region
    _
  $region13: #{encoder_forward.6} parent=0 // pred_fallthru
    _
  // Predicated region
  $region14: #{encoder_forward.6} parent=0 // pred_check
    _
  $region15: #{encoder_forward.6} parent=0 // pred_check_branch
    %17 = sbr.rel (0) target = $region17
  $region16: #{encoder_forward.6} parent=0 // pred_region
    _
  $region17: #{encoder_forward.6} parent=0 // pred_fallthru
    _
  // Predicated region
  $region18: #{encoder_forward.6} parent=0 // pred_check
    _
  $region19: #{encoder_forward.6} parent=0 // pred_check_branch
    %19 = sbr.rel (0) target = $region21
  $region20: #{encoder_forward.6} parent=0 // pred_region
    _
  $region21: #{encoder_forward.6} parent=0 // pred_fallthru
    _
  %v21 = vld [vmem:[%s0] sm:$0xff]
  %v22 = vld [vmem:[%s0 + $0x8] sm:$0xff]
  %v23 = vpack.c.bf16 %v22, %v21
  %v24 = vld [vmem:[%s2] sm:$0xff]
  %v25 = vld [vmem:[%s2 + $0x8] sm:$0xff]
  %v26 = vld [vmem:[%s2 + $0x10] sm:$0xff]
  %v27 = vld [vmem:[%s2 + $0x18] sm:$0xff]
  %v28 = vld [vmem:[%s1] sm:$0xff]
  %v29 = vld [vmem:[%s1 + $0x8] sm:$0xff]
  %v30 = vpack.c.bf16 %v29, %v28
  %v31 = vld [vmem:[%s3] sm:$0xff]
  %v32 = vld [vmem:[%s3 + $0x8] sm:$0xff]
  %v33 = vld [vmem:[%s3 + $0x10] sm:$0xff]
  %v34 = vld [vmem:[%s3 + $0x18] sm:$0xff]
  %v39 = vunpack.c.l.b16 %v31
  %v40 = vunpack.c.h.b16 %v31
  %v41 = vunpack.c.l.b16 %v32
  %v42 = vunpack.c.h.b16 %v32
  %v43 = vunpack.c.l.b16 %v33
  %v44 = vunpack.c.h.b16 %v33
  %v45 = vunpack.c.l.b16 %v34
  %v46 = vunpack.c.h.b16 %v34
  %v47 = vpack.c.b16 %v41, %v39
  %v48 = vpack.c.b16 %v42, %v40
  %v49 = vpack.c.b16 %v45, %v43
  %v50 = vpack.c.b16 %v46, %v44
  %vm55 = vcmask 261120
  %v57 = vsel %vm55, %v30, 0
  %59 = vmatprep.subr.bf16.mxu0 %v48
  %60 = vmatpush1.bf16.msra.mxu0 %v47
  %61 = vmatprep.subr.bf16.mxu0 %v50
  %62 = vmatpush1.bf16.msra.mxu0 %v49
  %63 = vmatprep.subr.bf16.mxu0 0
  %64 = vmatpush1.bf16.msra.mxu0 0
  %65 = vmatprep.subr.bf16.mxu0 0
  %66 = vmatpush1.bf16.msra.mxu0 0
  %67 = vmatprep.subr.bf16.mxu0 0
  %68 = vmatpush1.bf16.msra.mxu0 0
  %69 = vmatprep.subr.bf16.mxu0 0
  %70 = vmatpush1.bf16.msra.mxu0 0
  %71 = vmatprep.subr.bf16.mxu0 0
  %72 = vmatpush1.bf16.msra.mxu0 0
  %73 = vmatprep.subr.bf16.mxu0 0
  %74 = vmatpush1.bf16.msra.mxu0 0
  %75 = vmatprep.subr.bf16.mxu0 0
  %76 = vmatpush1.bf16.msra.mxu0 0
  %77 = vmatprep.subr.bf16.mxu0 0
  %78 = vmatpush1.bf16.msra.mxu0 0
  %79 = vmatprep.subr.bf16.mxu0 0
  %80 = vmatpush1.bf16.msra.mxu0 0
  %81 = vmatprep.subr.bf16.mxu0 0
  %82 = vmatpush1.bf16.msra.mxu0 0
  %83 = vmatprep.subr.bf16.mxu0 0
  %84 = vmatpush1.bf16.msra.mxu0 0
  %85 = vmatprep.subr.bf16.mxu0 0
  %86 = vmatpush1.bf16.msra.mxu0 0
  %87 = vmatprep.subr.bf16.mxu0 0
  %88 = vmatpush1.bf16.msra.mxu0 0
  %89 = vmatprep.subr.bf16.mxu0 0
  %90 = vmatpush1.bf16.msra.mxu0 0
  %91 = vmatprep.mubr.bf16.mxu0 0
  %92 = vmatmul.mubr.bf16.gmra.mrb[0].mxu0 %v57
  %v93 = vpop.f32.mrb[0].mxu0
  %v94 = vadd.f32 0.0, %v93
  %v95 = vpop.f32.mrb[0].mxu0
  %v96 = vadd.f32 0.0, %v95
  %v97 = vpop.f32.mrb[0].mxu0
  %v98 = vadd.f32 0.0, %v97
  %v99 = vpop.f32.mrb[0].mxu0
  %v100 = vadd.f32 0.0, %v99
  %101 = vdwg.mxu0
  %v106 = vunpack.c.l.b16 %v24
  %v107 = vunpack.c.h.b16 %v24
  %v108 = vunpack.c.l.b16 %v25
  %v109 = vunpack.c.h.b16 %v25
  %v110 = vunpack.c.l.b16 %v26
  %v111 = vunpack.c.h.b16 %v26
  %v112 = vunpack.c.l.b16 %v27
  %v113 = vunpack.c.h.b16 %v27
  %v114 = vpack.c.b16 %v108, %v106
  %v115 = vpack.c.b16 %v109, %v107
  %v116 = vpack.c.b16 %v112, %v110
  %v117 = vpack.c.b16 %v113, %v111
  %v123 = vsel %vm55, %v23, 0
  %125 = vmatprep.subr.bf16.mxu0 %v115
  %126 = vmatpush1.bf16.msra.mxu0 %v114
  %127 = vmatprep.subr.bf16.mxu0 %v117
  %128 = vmatpush1.bf16.msra.mxu0 %v116
  %129 = vmatprep.subr.bf16.mxu0 0
  %130 = vmatpush1.bf16.msra.mxu0 0
  %131 = vmatprep.subr.bf16.mxu0 0
  %132 = vmatpush1.bf16.msra.mxu0 0
  %133 = vmatprep.subr.bf16.mxu0 0
  %134 = vmatpush1.bf16.msra.mxu0 0
  %135 = vmatprep.subr.bf16.mxu0 0
  %136 = vmatpush1.bf16.msra.mxu0 0
  %137 = vmatprep.subr.bf16.mxu0 0
  %138 = vmatpush1.bf16.msra.mxu0 0
  %139 = vmatprep.subr.bf16.mxu0 0
  %140 = vmatpush1.bf16.msra.mxu0 0
  %141 = vmatprep.subr.bf16.mxu0 0
  %142 = vmatpush1.bf16.msra.mxu0 0
  %143 = vmatprep.subr.bf16.mxu0 0
  %144 = vmatpush1.bf16.msra.mxu0 0
  %145 = vmatprep.subr.bf16.mxu0 0
  %146 = vmatpush1.bf16.msra.mxu0 0
  %147 = vmatprep.subr.bf16.mxu0 0
  %148 = vmatpush1.bf16.msra.mxu0 0
  %149 = vmatprep.subr.bf16.mxu0 0
  %150 = vmatpush1.bf16.msra.mxu0 0
  %151 = vmatprep.subr.bf16.mxu0 0
  %152 = vmatpush1.bf16.msra.mxu0 0
  %153 = vmatprep.subr.bf16.mxu0 0
  %154 = vmatpush1.bf16.msra.mxu0 0
  %155 = vmatprep.subr.bf16.mxu0 0
  %156 = vmatpush1.bf16.msra.mxu0 0
  %157 = vmatprep.mubr.bf16.mxu0 0
  %158 = vmatmul.mubr.bf16.gmra.mrb[0].mxu0 %v123
  %v159 = vpop.f32.mrb[0].mxu0
  %v160 = vadd.f32 %v94, %v159
  %v161 = vpop.f32.mrb[0].mxu0
  %v162 = vadd.f32 %v96, %v161
  %v163 = vpop.f32.mrb[0].mxu0
  %v164 = vadd.f32 %v98, %v163
  %v165 = vpop.f32.mrb[0].mxu0
  %v166 = vadd.f32 %v100, %v165
  %167 = vdwg.mxu0
  %v168 = vld [vmem:[%s4] sm:$0x3]
  %v170 = vlaneseq
  %v171 = vshrl.u32 %v170, 7
  %v172 = vsub.s32 0, %v171
  %v173 = vrot.slane %v168, %v172
  %v174 = vlaneseq
  %v175 = vshrl.u32 %v174, 7
  %v176 = vsub.s32 1, %v175
  %v177 = vrot.slane %v168, %v176
  %v180 = vadd.f32 %v160, %v173
  %v181 = vadd.f32 %v162, %v177
  %v182 = vadd.f32 %v164, %v173
  %v183 = vadd.f32 %v166, %v177
  %184 = vst [vmem:[%s5] sm:$0xff] %v180
  %185 = vst [vmem:[%s5 + $0x8] sm:$0xff] %v181
  %186 = vst [vmem:[%s5 + $0x10] sm:$0xff] %v182
  %187 = vst [vmem:[%s5 + $0x18] sm:$0xff] %v183
  // Predicated region
  $region22: #{encoder_forward.6} parent=0 // pred_check
    _
  $region23: #{encoder_forward.6} parent=0 // pred_check_branch
    %189 = sbr.rel (0) target = $region25
  $region24: #{encoder_forward.6} parent=0 // pred_region
    _
  $region25: #{encoder_forward.6} parent=0 // pred_fallthru
    _
  // Predicated region
  $region26: #{encoder_forward.6} parent=0 // pred_check
    _
  $region27: #{encoder_forward.6} parent=0 // pred_check_branch
    %191 = sbr.rel (0) target = $region29
  $region28: #{encoder_forward.6} parent=0 // pred_region
    _
  $region29: #{encoder_forward.6} parent=0 // pred_fallthru
    _

// kernel: encoder_forward.5
$region0: #{encoder_forward.5}
  #allocation0 [shape = 'u32[]', space=smem, size = 0x4, offset = 0x4, fixed_abs, tag = 'smem constant byte address 0x4 - core index']
  #allocation1 [shape = 'u32[144,128]{1,0:T(1,128)}', space=vmem, size = 0x12000, scoped, tag = 'internal scratch']
  #allocation2 [shape = 'f32[4,32]{1,0:T(4,128)}', space=vmem, size = 0x800, scoped, tag = 'scratch operand']
  #allocation3 [shape = 'f32[4,32]{1,0:T(4,128)}', space=vmem, size = 0x800, scoped, tag = 'scratch operand']
  %s0 = inlined_call_operand.vmem [shape: f32[2,8,256], index: 0, kind: input, shape index: {}, may-alias: {0,1}]
  %s1 = inlined_call_operand.vmem [shape: f32[2,8,256], index: 1, kind: input, shape index: {}, may-alias: {0,1}]
  %s2 = inlined_call_operand.vmem [shape: bf16[32,256], index: 2, kind: input, shape index: {}]
  %s3 = inlined_call_operand.vmem [shape: s32[2,1], index: 3, kind: input, shape index: {}]
  %s4 = inlined_call_operand.vmem [shape: f32[2,8,32], index: 4, kind: output, shape index: {0}]
  %s5 = inlined_call_operand.vmem [shape: f32[2,8,32], index: 5, kind: output, shape index: {1}]
  %6 = xla_tuple %s4, %s5
  %s7 = sld [smem:[#allocation0]]
  $region114: #{encoder_forward.5} parent=0
    _
  %s9 = ssub.s32 1, %s7
  %s10 = scalar_select 0, %s9, %s7
  $region1: #{encoder_forward.5} parent=0
    #allocation4 [shape = 'u8[8192]{0}', space=vmem, size = 0x2000, scoped, tag = 'input window, operand 0, single buffered']
    #allocation5 [shape = 'u8[8192]{0}', space=vmem, size = 0x2000, scoped, tag = 'input window, operand 1, single buffered']
    // Predicated region
    $region2: #{encoder_forward.5} parent=1 // pred_check
      _
    $region3: #{encoder_forward.5} parent=1 // pred_check_branch
      %12 = sbr.rel (0) target = $region5
    $region4: #{encoder_forward.5} parent=1 // pred_region
      // Predicated region
      $region6: #{encoder_forward.5} parent=4 // pred_check
        _
      $region7: #{encoder_forward.5} parent=4 // pred_check_branch
        %14 = sbr.rel (0) target = $region9
      $region8: #{encoder_forward.5} parent=4 // pred_region
        // Predicated region
        $region10: #{encoder_forward.5} parent=8 // pred_check
          _
        $region11: #{encoder_forward.5} parent=8 // pred_check_branch
          %16 = sbr.rel (0) target = $region13
        $region12: #{encoder_forward.5} parent=8 // pred_region
          // Predicated region
          $region25: #{encoder_forward.5} parent=12 // pred_check
            _
          $region26: #{encoder_forward.5} parent=12 // pred_check_branch
            %33 = sbr.rel (0) target = $region28
          $region27: #{encoder_forward.5} parent=12 // pred_region
            loop: start=0, step=1, limit=1
            $region29: #{encoder_forward.5} parent=27 // loop_pre_header
              _
            $region30: #{encoder_forward.5} parent=27 // loop_header
              %s35 = sphi 0, %s39
              %p36 = scmp.ge.s32.totalorder %s35, 1
              %s40 = sphi %s0, %s0
              %s41 = sphi [#allocation4], [#allocation4]
            $region31: #{encoder_forward.5} parent=27 // loop_header_branch
              %38 = sbr.rel (%p36) target = $region35
            $region32: #{encoder_forward.5} parent=27 // loop_body
              %v42 = vld [vmem:[%s40] sm:$0xff]
              %43 = vst [vmem:[%s41] sm:$0xff] %v42
              %v44 = vld [vmem:[%s40 + $0x10] sm:$0xff]
              %45 = vst [vmem:[%s41 + $0x8] sm:$0xff] %v44
            $region33: #{encoder_forward.5} parent=27 // loop_footer
              %s39 = sadd.s32 1, %s35
            $region34: #{encoder_forward.5} parent=27 // loop_footer_branch
              %34 = sbr.rel target = $region30
            $region35: #{encoder_forward.5} parent=27 // loop_exit
              _
          $region28: #{encoder_forward.5} parent=12 // pred_fallthru
            _
          // Predicated region
          $region36: #{encoder_forward.5} parent=12 // pred_check
            _
          $region37: #{encoder_forward.5} parent=12 // pred_check_branch
            %47 = sbr.rel target = $region39
          $region38: #{encoder_forward.5} parent=12 // pred_region
            _
          $region39: #{encoder_forward.5} parent=12 // pred_fallthru
            _
        $region13: #{encoder_forward.5} parent=8 // pred_fallthru
          _
        // Predicated region
        $region14: #{encoder_forward.5} parent=8 // pred_check
          _
        $region15: #{encoder_forward.5} parent=8 // pred_check_branch
          %18 = sbr.rel target = $region17
        $region16: #{encoder_forward.5} parent=8 // pred_region
          loop: start=0, step=1, limit=1
          $region18: #{encoder_forward.5} parent=16 // loop_pre_header
            _
          $region19: #{encoder_forward.5} parent=16 // loop_header
            %s21 = sphi 0, %s25
            %p22 = scmp.ge.s32.totalorder %s21, 1
            %s26 = sphi %s0, %s0
            %s27 = sphi [#allocation4], [#allocation4]
          $region20: #{encoder_forward.5} parent=16 // loop_header_branch
            %24 = sbr.rel (%p22) target = $region24
          $region21: #{encoder_forward.5} parent=16 // loop_body
            %v28 = vld [vmem:[%s26] sm:$0xff]
            %29 = vst [vmem:[%s27] sm:$0xff] %v28
            %v30 = vld [vmem:[%s26 + $0x10] sm:$0xff]
            %31 = vst [vmem:[%s27 + $0x8] sm:$0xff] %v30
          $region22: #{encoder_forward.5} parent=16 // loop_footer
            %s25 = sadd.s32 1, %s21
          $region23: #{encoder_forward.5} parent=16 // loop_footer_branch
            %20 = sbr.rel target = $region19
          $region24: #{encoder_forward.5} parent=16 // loop_exit
            _
        $region17: #{encoder_forward.5} parent=8 // pred_fallthru
          _
      $region9: #{encoder_forward.5} parent=4 // pred_fallthru
        _
      %48 = vnop
    $region5: #{encoder_forward.5} parent=1 // pred_fallthru
      _
    // Predicated region
    $region40: #{encoder_forward.5} parent=1 // pred_check
      _
    $region41: #{encoder_forward.5} parent=1 // pred_check_branch
      %50 = sbr.rel (0) target = $region43
    $region42: #{encoder_forward.5} parent=1 // pred_region
      %s51 = ssub.s32 0, 0
      %s52 = smul.addr %s51, 2
      %s53 = sadd.s32 1, %s52
      %s54 = smul.addr %s53, 8
      %s55 = scalar_lea.vmem %s1, %s54
      // Predicated region
      $region44: #{encoder_forward.5} parent=42 // pred_check
        _
      $region45: #{encoder_forward.5} parent=42 // pred_check_branch
        %57 = sbr.rel (0) target = $region47
      $region46: #{encoder_forward.5} parent=42 // pred_region
        // Predicated region
        $region48: #{encoder_forward.5} parent=46 // pred_check
          _
        $region49: #{encoder_forward.5} parent=46 // pred_check_branch
          %59 = sbr.rel (0) target = $region51
        $region50: #{encoder_forward.5} parent=46 // pred_region
          // Predicated region
          $region63: #{encoder_forward.5} parent=50 // pred_check
            _
          $region64: #{encoder_forward.5} parent=50 // pred_check_branch
            %76 = sbr.rel (0) target = $region66
          $region65: #{encoder_forward.5} parent=50 // pred_region
            loop: start=0, step=1, limit=1
            $region67: #{encoder_forward.5} parent=65 // loop_pre_header
              _
            $region68: #{encoder_forward.5} parent=65 // loop_header
              %s78 = sphi 0, %s82
              %p79 = scmp.ge.s32.totalorder %s78, 1
              %s83 = sphi %s55, %s55
              %s84 = sphi [#allocation5], [#allocation5]
            $region69: #{encoder_forward.5} parent=65 // loop_header_branch
              %81 = sbr.rel (%p79) target = $region73
            $region70: #{encoder_forward.5} parent=65 // loop_body
              %v85 = vld [vmem:[%s83] sm:$0xff]
              %86 = vst [vmem:[%s84] sm:$0xff] %v85
              %v87 = vld [vmem:[%s83 + $0x10] sm:$0xff]
              %88 = vst [vmem:[%s84 + $0x8] sm:$0xff] %v87
            $region71: #{encoder_forward.5} parent=65 // loop_footer
              %s82 = sadd.s32 1, %s78
            $region72: #{encoder_forward.5} parent=65 // loop_footer_branch
              %77 = sbr.rel target = $region68
            $region73: #{encoder_forward.5} parent=65 // loop_exit
              _
          $region66: #{encoder_forward.5} parent=50 // pred_fallthru
            _
          // Predicated region
          $region74: #{encoder_forward.5} parent=50 // pred_check
            _
          $region75: #{encoder_forward.5} parent=50 // pred_check_branch
            %90 = sbr.rel target = $region77
          $region76: #{encoder_forward.5} parent=50 // pred_region
            _
          $region77: #{encoder_forward.5} parent=50 // pred_fallthru
            _
        $region51: #{encoder_forward.5} parent=46 // pred_fallthru
          _
        // Predicated region
        $region52: #{encoder_forward.5} parent=46 // pred_check
          _
        $region53: #{encoder_forward.5} parent=46 // pred_check_branch
          %61 = sbr.rel target = $region55
        $region54: #{encoder_forward.5} parent=46 // pred_region
          loop: start=0, step=1, limit=1
          $region56: #{encoder_forward.5} parent=54 // loop_pre_header
            _
          $region57: #{encoder_forward.5} parent=54 // loop_header
            %s64 = sphi 0, %s68
            %p65 = scmp.ge.s32.totalorder %s64, 1
            %s69 = sphi %s55, %s55
            %s70 = sphi [#allocation5], [#allocation5]
          $region58: #{encoder_forward.5} parent=54 // loop_header_branch
            %67 = sbr.rel (%p65) target = $region62
          $region59: #{encoder_forward.5} parent=54 // loop_body
            %v71 = vld [vmem:[%s69] sm:$0xff]
            %72 = vst [vmem:[%s70] sm:$0xff] %v71
            %v73 = vld [vmem:[%s69 + $0x10] sm:$0xff]
            %74 = vst [vmem:[%s70 + $0x8] sm:$0xff] %v73
          $region60: #{encoder_forward.5} parent=54 // loop_footer
            %s68 = sadd.s32 1, %s64
          $region61: #{encoder_forward.5} parent=54 // loop_footer_branch
            %63 = sbr.rel target = $region57
          $region62: #{encoder_forward.5} parent=54 // loop_exit
            _
        $region55: #{encoder_forward.5} parent=46 // pred_fallthru
          _
      $region47: #{encoder_forward.5} parent=42 // pred_fallthru
        _
      %91 = vnop
    $region43: #{encoder_forward.5} parent=1 // pred_fallthru
      _
    // Predicated region
    $region78: #{encoder_forward.5} parent=1 // pred_check
      _
    $region79: #{encoder_forward.5} parent=1 // pred_check_branch
      %93 = sbr.rel (0) target = $region81
    $region80: #{encoder_forward.5} parent=1 // pred_region
      _
    $region81: #{encoder_forward.5} parent=1 // pred_fallthru
      _
    // Predicated region
    $region82: #{encoder_forward.5} parent=1 // pred_check
      _
    $region83: #{encoder_forward.5} parent=1 // pred_check_branch
      %95 = sbr.rel (0) target = $region85
    $region84: #{encoder_forward.5} parent=1 // pred_region
      _
    $region85: #{encoder_forward.5} parent=1 // pred_fallthru
      _
    // Predicated region
    $region86: #{encoder_forward.5} parent=1 // pred_check
      _
    $region87: #{encoder_forward.5} parent=1 // pred_check_branch
      %97 = sbr.rel (0) target = $region89
    $region88: #{encoder_forward.5} parent=1 // pred_region
      _
    $region89: #{encoder_forward.5} parent=1 // pred_fallthru
      _
    // Predicated region
    $region90: #{encoder_forward.5} parent=1 // pred_check
      _
    $region91: #{encoder_forward.5} parent=1 // pred_check_branch
      %99 = sbr.rel (0) target = $region93
    $region92: #{encoder_forward.5} parent=1 // pred_region
      _
    $region93: #{encoder_forward.5} parent=1 // pred_fallthru
      _
    %s100 = ssub.s32 0, 0
    %p101 = scmp.lt.s32.totalorder %s100, 0
    %s102 = scalar_select %p101, %s100, 0
    %s103 = smul.addr %s102, 8
    %s104 = scalar_lea.vmem %s5, %s103
    %s105 = ssub.s32 0, 0
    %s106 = ssub.s32 0, 0
    %p107 = scmp.lt.s32.totalorder %s106, 0
    %s108 = scalar_select %p107, %s106, 0
    %s109 = smul.addr %s108, 8
    %s110 = scalar_lea.vmem %s5, %s109
    %s111 = ssub.s32 0, 0
    %p113 = scmp.eq.s32.totalorder 0, 0
    // Predicated region
    $region94: #{encoder_forward.5} parent=1 // pred_check
      %p114 = pneg %p113
    $region95: #{encoder_forward.5} parent=1 // pred_check_branch
      %116 = sbr.rel (%p114) target = $region97
    $region96: #{encoder_forward.5} parent=1 // pred_region
      %vm117 = vcmask 257024
      %118 = vst.msk [vmem:[#allocation2] sm:$0xf] %vm117, 0.0
      %119 = vst.msk [vmem:[#allocation3] sm:$0xf] %vm117, 0.0
    $region97: #{encoder_forward.5} parent=1 // pred_fallthru
      _
    %v120 = vld [vmem:[%s3] sm:$0x3]
    %v121 = vld [vmem:[%s2] sm:$0xff]
    %v122 = vld [vmem:[%s2 + $0x8] sm:$0xff]
    %v123 = vld [vmem:[%s2 + $0x10] sm:$0xff]
    %v124 = vld [vmem:[%s2 + $0x18] sm:$0xff]
    %v125 = vld [vmem:[#allocation2] sm:$0xf]
    %v126 = vld [vmem:[#allocation3] sm:$0xf]
    %s127 = smul.u32 0, 8
    %s128 = ssub.s32 7, %s127
    %v129 = vpack.c.bf16 %v125, %v125
    %v134 = vunpack.c.l.b16 %v121
    %v135 = vunpack.c.h.b16 %v121
    %v136 = vunpack.c.l.b16 %v122
    %v137 = vunpack.c.h.b16 %v122
    %v138 = vunpack.c.l.b16 %v123
    %v139 = vunpack.c.h.b16 %v123
    %v140 = vunpack.c.l.b16 %v124
    %v141 = vunpack.c.h.b16 %v124
    %v142 = vpack.c.b16 %v136, %v134
    %v143 = vpack.c.b16 %v137, %v135
    %v144 = vpack.c.b16 %v140, %v138
    %v145 = vpack.c.b16 %v141, %v139
    %vm150 = vcmask 261120
    %v152 = vsel %vm150, %v129, 0
    %154 = vmatprep.subr.bf16.mxu0 %v143
    %155 = vmatpush1.bf16.msra.mxu0 %v142
    %156 = vmatprep.subr.bf16.mxu0 %v145
    %157 = vmatpush1.bf16.msra.mxu0 %v144
    %158 = vmatprep.subr.bf16.mxu0 0
    %159 = vmatpush1.bf16.msra.mxu0 0
    %160 = vmatprep.subr.bf16.mxu0 0
    %161 = vmatpush1.bf16.msra.mxu0 0
    %162 = vmatprep.subr.bf16.mxu0 0
    %163 = vmatpush1.bf16.msra.mxu0 0
    %164 = vmatprep.subr.bf16.mxu0 0
    %165 = vmatpush1.bf16.msra.mxu0 0
    %166 = vmatprep.subr.bf16.mxu0 0
    %167 = vmatpush1.bf16.msra.mxu0 0
    %168 = vmatprep.subr.bf16.mxu0 0
    %169 = vmatpush1.bf16.msra.mxu0 0
    %170 = vmatprep.subr.bf16.mxu0 0
    %171 = vmatpush1.bf16.msra.mxu0 0
    %172 = vmatprep.subr.bf16.mxu0 0
    %173 = vmatpush1.bf16.msra.mxu0 0
    %174 = vmatprep.subr.bf16.mxu0 0
    %175 = vmatpush1.bf16.msra.mxu0 0
    %176 = vmatprep.subr.bf16.mxu0 0
    %177 = vmatpush1.bf16.msra.mxu0 0
    %178 = vmatprep.subr.bf16.mxu0 0
    %179 = vmatpush1.bf16.msra.mxu0 0
    %180 = vmatprep.subr.bf16.mxu0 0
    %181 = vmatpush1.bf16.msra.mxu0 0
    %182 = vmatprep.subr.bf16.mxu0 0
    %183 = vmatpush1.bf16.msra.mxu0 0
    %184 = vmatprep.subr.bf16.mxu0 0
    %185 = vmatpush1.bf16.msra.mxu0 0
    %186 = vmatprep.mubr.bf16.mxu0 0
    %187 = vmatmul.mubr.bf16.gmra.mrb[0].mxu0 %v152
    %v188 = vpop.f32.mrb[0].mxu0
    %v189 = vadd.f32 0.0, %v188
    %v190 = vpop.f32.mrb[0].mxu0
    %v191 = vadd.f32 0.0, %v190
    %v192 = vpop.f32.mrb[0].mxu0
    %v193 = vpop.f32.mrb[0].mxu0
    %194 = vdwg.mxu0
    %v195 = vld [vmem:[#allocation4] sm:$0x1]
    %v196 = vld [vmem:[#allocation4 + $0x8] sm:$0x1]
    %v198 = vrot.slane %v189, 1
    %v201 = vadd.f32 %v195, %v189
    %v202 = vadd.f32 %v196, %v198
    %v203 = vld [vmem:[#allocation5 + $0x7] sm:$0x1]
    %v204 = vld [vmem:[#allocation5 + $0xf] sm:$0x1]
    %v206 = vrot.slane %v191, 2
    %v207 = vrot.slane %v191, 3
    %v210 = vadd.f32 %v203, %v206
    %v211 = vadd.f32 %v204, %v207
    %v212 = vxor.u32 %v201, 2147483648
    %v213 = vxor.u32 %v202, 2147483648
    %v214 = vmul.f32 %v212, 1.442695
    %v215 = vpow.pop %v214
    %v216 = vmul.f32 %v213, 1.442695
    %v217 = vpow.pop %v216
    %v218 = vadd.f32 %v215, 1.0
    %v219 = vadd.f32 %v217, 1.0
    %v220 = vrcp.pop %v218
    %v221 = vmul.f32 1.0, %v220
    %v222 = vrcp.pop %v219
    %v223 = vmul.f32 1.0, %v222
    %v224 = vtanh.pop %v201
    %v225 = vtanh.pop %v202
    %v227 = vrot.slane %v126, 1
    %228 = vrot.lane.b32.xlu0 %v126, 32
    %v229 = vpop.permute.xlu0 %228
    %230 = vrot.lane.b32.xlu0 %v227, 32
    %v231 = vpop.permute.xlu0 %230
    %v234 = vmul.f32 %v221, %v229
    %v235 = vmul.f32 %v223, %v231
    %238 = vrot.lane.b32.xlu0 %v224, 64
    %v239 = vpop.permute.xlu0 %238
    %240 = vrot.lane.b32.xlu0 %v225, 64
    %v241 = vpop.permute.xlu0 %240
    %v244 = vmul.f32 %v221, %v239
    %v245 = vmul.f32 %v223, %v241
    %248 = vrot.lane.b32.xlu0 %v244, 32
    %v249 = vpop.permute.xlu0 %248
    %250 = vrot.lane.b32.xlu0 %v245, 32
    %v251 = vpop.permute.xlu0 %250
    %v254 = vadd.f32 %v234, %v249
    %v255 = vadd.f32 %v235, %v251
    %v256 = vtanh.pop %v254
    %v257 = vtanh.pop %v255
    %260 = vrot.lane.b32.xlu0 %v256, 64
    %v261 = vpop.permute.xlu0 %260
    %262 = vrot.lane.b32.xlu0 %v257, 64
    %v263 = vpop.permute.xlu0 %262
    %v266 = vmul.f32 %v221, %v261
    %v267 = vmul.f32 %v223, %v263
    %v268 = vxor.u32 %v210, 2147483648
    %v269 = vxor.u32 %v211, 2147483648
    %v270 = vmul.f32 %v268, 1.442695
    %v271 = vpow.pop %v270
    %v272 = vmul.f32 %v269, 1.442695
    %v273 = vpow.pop %v272
    %v274 = vadd.f32 %v271, 1.0
    %v275 = vadd.f32 %v273, 1.0
    %v276 = vrcp.pop %v274
    %v277 = vmul.f32 1.0, %v276
    %v278 = vrcp.pop %v275
    %v279 = vmul.f32 1.0, %v278
    %v280 = vtanh.pop %v210
    %v281 = vtanh.pop %v211
    %v282 = vrot.slane %v126, 2
    %v283 = vrot.slane %v126, 3
    %284 = vrot.lane.b32.xlu0 %v282, 32
    %v285 = vpop.permute.xlu0 %284
    %286 = vrot.lane.b32.xlu0 %v283, 32
    %v287 = vpop.permute.xlu0 %286
    %v290 = vmul.f32 %v277, %v285
    %v291 = vmul.f32 %v279, %v287
    %294 = vrot.lane.b32.xlu0 %v280, 64
    %v295 = vpop.permute.xlu0 %294
    %296 = vrot.lane.b32.xlu0 %v281, 64
    %v297 = vpop.permute.xlu0 %296
    %v300 = vmul.f32 %v277, %v295
    %v301 = vmul.f32 %v279, %v297
    %304 = vrot.lane.b32.xlu0 %v300, 32
    %v305 = vpop.permute.xlu0 %304
    %306 = vrot.lane.b32.xlu0 %v301, 32
    %v307 = vpop.permute.xlu0 %306
    %v310 = vadd.f32 %v290, %v305
    %v311 = vadd.f32 %v291, %v307
    %v312 = vtanh.pop %v310
    %v313 = vtanh.pop %v311
    %316 = vrot.lane.b32.xlu0 %v312, 64
    %v317 = vpop.permute.xlu0 %316
    %318 = vrot.lane.b32.xlu0 %v313, 64
    %v319 = vpop.permute.xlu0 %318
    %v322 = vmul.f32 %v277, %v317
    %v323 = vmul.f32 %v279, %v319
    %v324 = vstv %s127
    %vm325 = vcmp.lt.s32.totalorder %v324, %v120
    %v326 = vstv %s128
    %vm327 = vcmp.lt.s32.totalorder %v326, %v120
    %v328 = vsel %vm325, 1, 0
    %329 = vset.pattern.permute.xlu0 0
    %330 = vperm.xlu0 %329, %v328
    %v331 = vpop.permute.xlu0 %330
    %vm332 = vcmp.eq.s32.totalorder %v331, 1
    %v335 = vrot.slane %v267, 7
    %vm336 = vcmask 1041409
    %v337 = vsel %vm336, %v335, %v266
    %338 = vrot.lane.b32.xlu0 %v337, 32
    %v339 = vpop.permute.xlu0 %338
    %v341 = vsel %vm332, %v339, 0.0
    %v344 = vunpack.c.l.s4 1966171168
    %v345 = vunpack.c.0.s8 %v344
    %v346 = vlaneseq
    %v347 = vshrl.u32 %v346, 7
    %v348 = vsub.s32 %v345, %v347
    %v349 = vrot.slane %v341, %v348
    %v350 = vcombine.high %v349, %v349
    %v352 = vunpack.c.l.s4 1966171168
    %v353 = vunpack.c.0.s8 %v352
    %v354 = vlaneseq
    %v355 = vshrl.u32 %v354, 7
    %v356 = vsub.s32 %v353, %v355
    %v357 = vrot.slane %v349, %v356
    %v359 = vunpack.c.l.s4 1966171168
    %v360 = vunpack.c.0.s8 %v359
    %v361 = vlaneseq
    %v362 = vshrl.u32 %v361, 7
    %v363 = vsub.s32 %v360, %v362
    %v364 = vrot.slane %v350, %v363
    %vm367 = vcmask 253952
    %368 = vst.msk [vmem:[%s4] sm:$0x1] %vm367, %v357
    %369 = vst.msk [vmem:[%s4 + $0x8] sm:$0x1] %vm367, %v364
    %v370 = vsel %vm327, 1, 0
    %371 = vset.pattern.permute.xlu0 0
    %372 = vperm.xlu0 %371, %v370
    %v373 = vpop.permute.xlu0 %372
    %vm374 = vcmp.eq.s32.totalorder %v373, 1
    %v377 = vrot.slane %v323, 7
    %v378 = vsel %vm336, %v377, %v322
    %379 = vrot.lane.b32.xlu0 %v378, 32
    %v380 = vpop.permute.xlu0 %379
    %v382 = vsel %vm374, %v380, 0.0
    %v385 = vunpack.c.l.s4 1966171168
    %v386 = vunpack.c.0.s8 %v385
    %v387 = vlaneseq
    %v388 = vshrl.u32 %v387, 7
    %v389 = vsub.s32 %v386, %v388
    %v390 = vrot.slane %v382, %v389
    %v391 = vcombine.high %v390, %v390
    %v393 = vunpack.c.l.s4 1966171168
    %v394 = vunpack.c.0.s8 %v393
    %v395 = vlaneseq
    %v396 = vshrl.u32 %v395, 7
    %v397 = vsub.s32 %v394, %v396
    %v398 = vrot.slane %v390, %v397
    %v400 = vunpack.c.l.s4 1966171168
    %v401 = vunpack.c.0.s8 %v400
    %v402 = vlaneseq
    %v403 = vshrl.u32 %v402, 7
    %v404 = vsub.s32 %v401, %v403
    %v405 = vrot.slane %v391, %v404
    %408 = vst.msk [vmem:[%s110 + $0x7] sm:$0x1] %vm367, %v398
    %409 = vst.msk [vmem:[%s110 + $0xf] sm:$0x1] %vm367, %v405
    %v410 = vsel %vm332, %v339, %v125
    %v412 = vrot.slane %v125, 2
    %v414 = vsel %vm374, %v380, %v412
    %v416 = vrot.slane %v414, 6
    %vm418 = vcmask 1041408
    %v419 = vsel %vm418, %v410, %v416
    %v422 = vrot.slane %v255, 7
    %v423 = vsel %vm336, %v422, %v254
    %424 = vrot.lane.b32.xlu0 %v423, 96
    %v425 = vpop.permute.xlu0 %424
    %v427 = vsel %vm332, %v425, %v126
    %v430 = vrot.slane %v311, 7
    %v431 = vsel %vm336, %v430, %v310
    %432 = vrot.lane.b32.xlu0 %v431, 96
    %v433 = vpop.permute.xlu0 %432
    %v436 = vsel %vm374, %v433, %v282
    %v438 = vrot.slane %v436, 6
    %v440 = vsel %vm418, %v427, %v438
    %s441 = sadd.s32 %s127, 1
    %s442 = ssub.s32 6, %s127
    %v443 = vpack.c.bf16 %v419, %v419
    %v445 = vsel %vm150, %v443, 0
    %447 = vmatprep.subr.bf16.mxu0 %v143
    %448 = vmatpush1.bf16.msra.mxu0 %v142
    %449 = vmatprep.subr.bf16.mxu0 %v145
    %450 = vmatpush1.bf16.msra.mxu0 %v144
    %451 = vmatprep.subr.bf16.mxu0 0
    %452 = vmatpush1.bf16.msra.mxu0 0
    %453 = vmatprep.subr.bf16.mxu0 0
    %454 = vmatpush1.bf16.msra.mxu0 0
    %455 = vmatprep.subr.bf16.mxu0 0
    %456 = vmatpush1.bf16.msra.mxu0 0
    %457 = vmatprep.subr.bf16.mxu0 0
    %458 = vmatpush1.bf16.msra.mxu0 0
    %459 = vmatprep.subr.bf16.mxu0 0
    %460 = vmatpush1.bf16.msra.mxu0 0
    %461 = vmatprep.subr.bf16.mxu0 0
    %462 = vmatpush1.bf16.msra.mxu0 0
    %463 = vmatprep.subr.bf16.mxu0 0
    %464 = vmatpush1.bf16.msra.mxu0 0
    %465 = vmatprep.subr.bf16.mxu0 0
    %466 = vmatpush1.bf16.msra.mxu0 0
    %467 = vmatprep.subr.bf16.mxu0 0
    %468 = vmatpush1.bf16.msra.mxu0 0
    %469 = vmatprep.subr.bf16.mxu0 0
    %470 = vmatpush1.bf16.msra.mxu0 0
    %471 = vmatprep.subr.bf16.mxu0 0
    %472 = vmatpush1.bf16.msra.mxu0 0
    %473 = vmatprep.subr.bf16.mxu0 0
    %474 = vmatpush1.bf16.msra.mxu0 0
    %475 = vmatprep.subr.bf16.mxu0 0
    %476 = vmatpush1.bf16.msra.mxu0 0
    %477 = vmatprep.subr.bf16.mxu0 0
    %478 = vmatpush1.bf16.msra.mxu0 0
    %479 = vmatprep.mubr.bf16.mxu0 0
    %480 = vmatmul.mubr.bf16.gmra.mrb[0].mxu0 %v445
    %v481 = vpop.f32.mrb[0].mxu0
    %v482 = vadd.f32 0.0, %v481
    %v483 = vpop.f32.mrb[0].mxu0
    %v484 = vadd.f32 0.0, %v483
    %v485 = vpop.f32.mrb[0].mxu0
    %v486 = vpop.f32.mrb[0].mxu0
    %487 = vdwg.mxu0
    %v488 = vld [vmem:[#allocation4 + $0x1] sm:$0x1]
    %v489 = vld [vmem:[#allocation4 + $0x9] sm:$0x1]
    %v491 = vrot.slane %v482, 1
    %v494 = vadd.f32 %v488, %v482
    %v495 = vadd.f32 %v489, %v491
    %v496 = vld [vmem:[#allocation5 + $0x6] sm:$0x1]
    %v497 = vld [vmem:[#allocation5 + $0xe] sm:$0x1]
    %v499 = vrot.slane %v484, 2
    %v500 = vrot.slane %v484, 3
    %v503 = vadd.f32 %v496, %v499
    %v504 = vadd.f32 %v497, %v500
    %v505 = vxor.u32 %v494, 2147483648
    %v506 = vxor.u32 %v495, 2147483648
    %v507 = vmul.f32 %v505, 1.442695
    %v508 = vpow.pop %v507
    %v509 = vmul.f32 %v506, 1.442695
    %v510 = vpow.pop %v509
    %v511 = vadd.f32 %v508, 1.0
    %v512 = vadd.f32 %v510, 1.0
    %v513 = vrcp.pop %v511
    %v514 = vmul.f32 1.0, %v513
    %v515 = vrcp.pop %v512
    %v516 = vmul.f32 1.0, %v515
    %v517 = vtanh.pop %v494
    %v518 = vtanh.pop %v495
    %v520 = vrot.slane %v440, 1
    %521 = vrot.lane.b32.xlu0 %v440, 32
    %v522 = vpop.permute.xlu0 %521
    %523 = vrot.lane.b32.xlu0 %v520, 32
    %v524 = vpop.permute.xlu0 %523
    %v527 = vmul.f32 %v514, %v522
    %v528 = vmul.f32 %v516, %v524
    %531 = vrot.lane.b32.xlu0 %v517, 64
    %v532 = vpop.permute.xlu0 %531
    %533 = vrot.lane.b32.xlu0 %v518, 64
    %v534 = vpop.permute.xlu0 %533
    %v537 = vmul.f32 %v514, %v532
    %v538 = vmul.f32 %v516, %v534
    %541 = vrot.lane.b32.xlu0 %v537, 32
    %v542 = vpop.permute.xlu0 %541
    %543 = vrot.lane.b32.xlu0 %v538, 32
    %v544 = vpop.permute.xlu0 %543
    %v547 = vadd.f32 %v527, %v542
    %v548 = vadd.f32 %v528, %v544
    %v549 = vtanh.pop %v547
    %v550 = vtanh.pop %v548
    %553 = vrot.lane.b32.xlu0 %v549, 64
    %v554 = vpop.permute.xlu0 %553
    %555 = vrot.lane.b32.xlu0 %v550, 64
    %v556 = vpop.permute.xlu0 %555
    %v559 = vmul.f32 %v514, %v554
    %v560 = vmul.f32 %v516, %v556
    %v561 = vxor.u32 %v503, 2147483648
    %v562 = vxor.u32 %v504, 2147483648
    %v563 = vmul.f32 %v561, 1.442695
    %v564 = vpow.pop %v563
    %v565 = vmul.f32 %v562, 1.442695
    %v566 = vpow.pop %v565
    %v567 = vadd.f32 %v564, 1.0
    %v568 = vadd.f32 %v566, 1.0
    %v569 = vrcp.pop %v567
    %v570 = vmul.f32 1.0, %v569
    %v571 = vrcp.pop %v568
    %v572 = vmul.f32 1.0, %v571
    %v573 = vtanh.pop %v503
    %v574 = vtanh.pop %v504
    %v575 = vrot.slane %v440, 2
    %v576 = vrot.slane %v440, 3
    %577 = vrot.lane.b32.xlu0 %v575, 32
    %v578 = vpop.permute.xlu0 %577
    %579 = vrot.lane.b32.xlu0 %v576, 32
    %v580 = vpop.permute.xlu0 %579
    %v583 = vmul.f32 %v570, %v578
    %v584 = vmul.f32 %v572, %v580
    %587 = vrot.lane.b32.xlu0 %v573, 64
    %v588 = vpop.permute.xlu0 %587
    %589 = vrot.lane.b32.xlu0 %v574, 64
    %v590 = vpop.permute.xlu0 %589
    %v593 = vmul.f32 %v570, %v588
    %v594 = vmul.f32 %v572, %v590
    %597 = vrot.lane.b32.xlu0 %v593, 32
    %v598 = vpop.permute.xlu0 %597
    %599 = vrot.lane.b32.xlu0 %v594, 32
    %v600 = vpop.permute.xlu0 %599
    %v603 = vadd.f32 %v583, %v598
    %v604 = vadd.f32 %v584, %v600
    %v605 = vtanh.pop %v603
    %v606 = vtanh.pop %v604
    %609 = vrot.lane.b32.xlu0 %v605, 64
    %v610 = vpop.permute.xlu0 %609
    %611 = vrot.lane.b32.xlu0 %v606, 64
    %v612 = vpop.permute.xlu0 %611
    %v615 = vmul.f32 %v570, %v610
    %v616 = vmul.f32 %v572, %v612
    %v617 = vstv %s441
    %vm618 = vcmp.lt.s32.totalorder %v617, %v120
    %v619 = vstv %s442
    %vm620 = vcmp.lt.s32.totalorder %v619, %v120
    %v621 = vsel %vm618, 1, 0
    %622 = vset.pattern.permute.xlu0 0
    %623 = vperm.xlu0 %622, %v621
    %v624 = vpop.permute.xlu0 %623
    %vm625 = vcmp.eq.s32.totalorder %v624, 1
    %v628 = vrot.slane %v560, 7
    %v629 = vsel %vm336, %v628, %v559
    %630 = vrot.lane.b32.xlu0 %v629, 32
    %v631 = vpop.permute.xlu0 %630
    %v633 = vsel %vm625, %v631, 0.0
    %v636 = vunpack.c.l.s4 1966171168
    %v637 = vunpack.c.0.s8 %v636
    %v638 = vlaneseq
    %v639 = vshrl.u32 %v638, 7
    %v640 = vsub.s32 %v637, %v639
    %v641 = vrot.slane %v633, %v640
    %v642 = vcombine.high %v641, %v641
    %v644 = vunpack.c.l.s4 1966171168
    %v645 = vunpack.c.0.s8 %v644
    %v646 = vlaneseq
    %v647 = vshrl.u32 %v646, 7
    %v648 = vsub.s32 %v645, %v647
    %v649 = vrot.slane %v641, %v648
    %v651 = vunpack.c.l.s4 1966171168
    %v652 = vunpack.c.0.s8 %v651
    %v653 = vlaneseq
    %v654 = vshrl.u32 %v653, 7
    %v655 = vsub.s32 %v652, %v654
    %v656 = vrot.slane %v642, %v655
    %659 = vst.msk [vmem:[%s4 + $0x1] sm:$0x1] %vm367, %v649
    %660 = vst.msk [vmem:[%s4 + $0x9] sm:$0x1] %vm367, %v656
    %v661 = vsel %vm620, 1, 0
    %662 = vset.pattern.permute.xlu0 0
    %663 = vperm.xlu0 %662, %v661
    %v664 = vpop.permute.xlu0 %663
    %vm665 = vcmp.eq.s32.totalorder %v664, 1
    %v668 = vrot.slane %v616, 7
    %v669 = vsel %vm336, %v668, %v615
    %670 = vrot.lane.b32.xlu0 %v669, 32
    %v671 = vpop.permute.xlu0 %670
    %v673 = vsel %vm665, %v671, 0.0
    %v676 = vunpack.c.l.s4 1966171168
    %v677 = vunpack.c.0.s8 %v676
    %v678 = vlaneseq
    %v679 = vshrl.u32 %v678, 7
    %v680 = vsub.s32 %v677, %v679
    %v681 = vrot.slane %v673, %v680
    %v682 = vcombine.high %v681, %v681
    %v684 = vunpack.c.l.s4 1966171168
    %v685 = vunpack.c.0.s8 %v684
    %v686 = vlaneseq
    %v687 = vshrl.u32 %v686, 7
    %v688 = vsub.s32 %v685, %v687
    %v689 = vrot.slane %v681, %v688
    %v691 = vunpack.c.l.s4 1966171168
    %v692 = vunpack.c.0.s8 %v691
    %v693 = vlaneseq
    %v694 = vshrl.u32 %v693, 7
    %v695 = vsub.s32 %v692, %v694
    %v696 = vrot.slane %v682, %v695
    %699 = vst.msk [vmem:[%s110 + $0x6] sm:$0x1] %vm367, %v689
    %700 = vst.msk [vmem:[%s110 + $0xe] sm:$0x1] %vm367, %v696
    %v701 = vsel %vm625, %v631, %v419
    %v703 = vrot.slane %v419, 2
    %v705 = vsel %vm665, %v671, %v703
    %v707 = vrot.slane %v705, 6
    %v709 = vsel %vm418, %v701, %v707
    %v712 = vrot.slane %v548, 7
    %v713 = vsel %vm336, %v712, %v547
    %714 = vrot.lane.b32.xlu0 %v713, 96
    %v715 = vpop.permute.xlu0 %714
    %v717 = vsel %vm625, %v715, %v440
    %v720 = vrot.slane %v604, 7
    %v721 = vsel %vm336, %v720, %v603
    %722 = vrot.lane.b32.xlu0 %v721, 96
    %v723 = vpop.permute.xlu0 %722
    %v726 = vsel %vm665, %v723, %v575
    %v728 = vrot.slane %v726, 6
    %v730 = vsel %vm418, %v717, %v728
    %s731 = sadd.s32 %s127, 2
    %s732 = ssub.s32 5, %s127
    %v733 = vpack.c.bf16 %v709, %v709
    %v735 = vsel %vm150, %v733, 0
    %737 = vmatprep.subr.bf16.mxu0 %v143
    %738 = vmatpush1.bf16.msra.mxu0 %v142
    %739 = vmatprep.subr.bf16.mxu0 %v145
    %740 = vmatpush1.bf16.msra.mxu0 %v144
    %741 = vmatprep.subr.bf16.mxu0 0
    %742 = vmatpush1.bf16.msra.mxu0 0
    %743 = vmatprep.subr.bf16.mxu0 0
    %744 = vmatpush1.bf16.msra.mxu0 0
    %745 = vmatprep.subr.bf16.mxu0 0
    %746 = vmatpush1.bf16.msra.mxu0 0
    %747 = vmatprep.subr.bf16.mxu0 0
    %748 = vmatpush1.bf16.msra.mxu0 0
    %749 = vmatprep.subr.bf16.mxu0 0
    %750 = vmatpush1.bf16.msra.mxu0 0
    %751 = vmatprep.subr.bf16.mxu0 0
    %752 = vmatpush1.bf16.msra.mxu0 0
    %753 = vmatprep.subr.bf16.mxu0 0
    %754 = vmatpush1.bf16.msra.mxu0 0
    %755 = vmatprep.subr.bf16.mxu0 0
    %756 = vmatpush1.bf16.msra.mxu0 0
    %757 = vmatprep.subr.bf16.mxu0 0
    %758 = vmatpush1.bf16.msra.mxu0 0
    %759 = vmatprep.subr.bf16.mxu0 0
    %760 = vmatpush1.bf16.msra.mxu0 0
    %761 = vmatprep.subr.bf16.mxu0 0
    %762 = vmatpush1.bf16.msra.mxu0 0
    %763 = vmatprep.subr.bf16.mxu0 0
    %764 = vmatpush1.bf16.msra.mxu0 0
    %765 = vmatprep.subr.bf16.mxu0 0
    %766 = vmatpush1.bf16.msra.mxu0 0
    %767 = vmatprep.subr.bf16.mxu0 0
    %768 = vmatpush1.bf16.msra.mxu0 0
    %769 = vmatprep.mubr.bf16.mxu0 0
    %770 = vmatmul.mubr.bf16.gmra.mrb[0].mxu0 %v735
    %v771 = vpop.f32.mrb[0].mxu0
    %v772 = vadd.f32 0.0, %v771
    %v773 = vpop.f32.mrb[0].mxu0
    %v774 = vadd.f32 0.0, %v773
    %v775 = vpop.f32.mrb[0].mxu0
    %v776 = vpop.f32.mrb[0].mxu0
    %777 = vdwg.mxu0
    %v778 = vld [vmem:[#allocation4 + $0x2] sm:$0x1]
    %v779 = vld [vmem:[#allocation4 + $0xa] sm:$0x1]
    %v781 = vrot.slane %v772, 1
    %v784 = vadd.f32 %v778, %v772
    %v785 = vadd.f32 %v779, %v781
    %v786 = vld [vmem:[#allocation5 + $0x5] sm:$0x1]
    %v787 = vld [vmem:[#allocation5 + $0xd] sm:$0x1]
    %v789 = vrot.slane %v774, 2
    %v790 = vrot.slane %v774, 3
    %v793 = vadd.f32 %v786, %v789
    %v794 = vadd.f32 %v787, %v790
    %v795 = vxor.u32 %v784, 2147483648
    %v796 = vxor.u32 %v785, 2147483648
    %v797 = vmul.f32 %v795, 1.442695
    %v798 = vpow.pop %v797
    %v799 = vmul.f32 %v796, 1.442695
    %v800 = vpow.pop %v799
    %v801 = vadd.f32 %v798, 1.0
    %v802 = vadd.f32 %v800, 1.0
    %v803 = vrcp.pop %v801
    %v804 = vmul.f32 1.0, %v803
    %v805 = vrcp.pop %v802
    %v806 = vmul.f32 1.0, %v805
    %v807 = vtanh.pop %v784
    %v808 = vtanh.pop %v785
    %v810 = vrot.slane %v730, 1
    %811 = vrot.lane.b32.xlu0 %v730, 32
    %v812 = vpop.permute.xlu0 %811
    %813 = vrot.lane.b32.xlu0 %v810, 32
    %v814 = vpop.permute.xlu0 %813
    %v817 = vmul.f32 %v804, %v812
    %v818 = vmul.f32 %v806, %v814
    %821 = vrot.lane.b32.xlu0 %v807, 64
    %v822 = vpop.permute.xlu0 %821
    %823 = vrot.lane.b32.xlu0 %v808, 64
    %v824 = vpop.permute.xlu0 %823
    %v827 = vmul.f32 %v804, %v822
    %v828 = vmul.f32 %v806, %v824
    %831 = vrot.lane.b32.xlu0 %v827, 32
    %v832 = vpop.permute.xlu0 %831
    %833 = vrot.lane.b32.xlu0 %v828, 32
    %v834 = vpop.permute.xlu0 %833
    %v837 = vadd.f32 %v817, %v832
    %v838 = vadd.f32 %v818, %v834
    %v839 = vtanh.pop %v837
    %v840 = vtanh.pop %v838
    %843 = vrot.lane.b32.xlu0 %v839, 64
    %v844 = vpop.permute.xlu0 %843
    %845 = vrot.lane.b32.xlu0 %v840, 64
    %v846 = vpop.permute.xlu0 %845
    %v849 = vmul.f32 %v804, %v844
    %v850 = vmul.f32 %v806, %v846
    %v851 = vxor.u32 %v793, 2147483648
    %v852 = vxor.u32 %v794, 2147483648
    %v853 = vmul.f32 %v851, 1.442695
    %v854 = vpow.pop %v853
    %v855 = vmul.f32 %v852, 1.442695
    %v856 = vpow.pop %v855
    %v857 = vadd.f32 %v854, 1.0
    %v858 = vadd.f32 %v856, 1.0
    %v859 = vrcp.pop %v857
    %v860 = vmul.f32 1.0, %v859
    %v861 = vrcp.pop %v858
    %v862 = vmul.f32 1.0, %v861
    %v863 = vtanh.pop %v793
    %v864 = vtanh.pop %v794
    %v865 = vrot.slane %v730, 2
    %v866 = vrot.slane %v730, 3
    %867 = vrot.lane.b32.xlu0 %v865, 32
    %v868 = vpop.permute.xlu0 %867
    %869 = vrot.lane.b32.xlu0 %v866, 32
    %v870 = vpop.permute.xlu0 %869
    %v873 = vmul.f32 %v860, %v868
    %v874 = vmul.f32 %v862, %v870
    %877 = vrot.lane.b32.xlu0 %v863, 64
    %v878 = vpop.permute.xlu0 %877
    %879 = vrot.lane.b32.xlu0 %v864, 64
    %v880 = vpop.permute.xlu0 %879
    %v883 = vmul.f32 %v860, %v878
    %v884 = vmul.f32 %v862, %v880
    %887 = vrot.lane.b32.xlu0 %v883, 32
    %v888 = vpop.permute.xlu0 %887
    %889 = vrot.lane.b32.xlu0 %v884, 32
    %v890 = vpop.permute.xlu0 %889
    %v893 = vadd.f32 %v873, %v888
    %v894 = vadd.f32 %v874, %v890
    %v895 = vtanh.pop %v893
    %v896 = vtanh.pop %v894
    %899 = vrot.lane.b32.xlu0 %v895, 64
    %v900 = vpop.permute.xlu0 %899
    %901 = vrot.lane.b32.xlu0 %v896, 64
    %v902 = vpop.permute.xlu0 %901
    %v905 = vmul.f32 %v860, %v900
    %v906 = vmul.f32 %v862, %v902
    %v907 = vstv %s731
    %vm908 = vcmp.lt.s32.totalorder %v907, %v120
    %v909 = vstv %s732
    %vm910 = vcmp.lt.s32.totalorder %v909, %v120
    %v911 = vsel %vm908, 1, 0
    %912 = vset.pattern.permute.xlu0 0
    %913 = vperm.xlu0 %912, %v911
    %v914 = vpop.permute.xlu0 %913
    %vm915 = vcmp.eq.s32.totalorder %v914, 1
    %v918 = vrot.slane %v850, 7
    %v919 = vsel %vm336, %v918, %v849
    %920 = vrot.lane.b32.xlu0 %v919, 32
    %v921 = vpop.permute.xlu0 %920
    %v923 = vsel %vm915, %v921, 0.0
    %v926 = vunpack.c.l.s4 1966171168
    %v927 = vunpack.c.0.s8 %v926
    %v928 = vlaneseq
    %v929 = vshrl.u32 %v928, 7
    %v930 = vsub.s32 %v927, %v929
    %v931 = vrot.slane %v923, %v930
    %v932 = vcombine.high %v931, %v931
    %v934 = vunpack.c.l.s4 1966171168
    %v935 = vunpack.c.0.s8 %v934
    %v936 = vlaneseq
    %v937 = vshrl.u32 %v936, 7
    %v938 = vsub.s32 %v935, %v937
    %v939 = vrot.slane %v931, %v938
    %v941 = vunpack.c.l.s4 1966171168
    %v942 = vunpack.c.0.s8 %v941
    %v943 = vlaneseq
    %v944 = vshrl.u32 %v943, 7
    %v945 = vsub.s32 %v942, %v944
    %v946 = vrot.slane %v932, %v945
    %949 = vst.msk [vmem:[%s4 + $0x2] sm:$0x1] %vm367, %v939
    %950 = vst.msk [vmem:[%s4 + $0xa] sm:$0x1] %vm367, %v946
    %v951 = vsel %vm910, 1, 0
    %952 = vset.pattern.permute.xlu0 0
    %953 = vperm.xlu0 %952, %v951
    %v954 = vpop.permute.xlu0 %953
    %vm955 = vcmp.eq.s32.totalorder %v954, 1
    %v958 = vrot.slane %v906, 7
    %v959 = vsel %vm336, %v958, %v905
    %960 = vrot.lane.b32.xlu0 %v959, 32
    %v961 = vpop.permute.xlu0 %960
    %v963 = vsel %vm955, %v961, 0.0
    %v966 = vunpack.c.l.s4 1966171168
    %v967 = vunpack.c.0.s8 %v966
    %v968 = vlaneseq
    %v969 = vshrl.u32 %v968, 7
    %v970 = vsub.s32 %v967, %v969
    %v971 = vrot.slane %v963, %v970
    %v972 = vcombine.high %v971, %v971
    %v974 = vunpack.c.l.s4 1966171168
    %v975 = vunpack.c.0.s8 %v974
    %v976 = vlaneseq
    %v977 = vshrl.u32 %v976, 7
    %v978 = vsub.s32 %v975, %v977
    %v979 = vrot.slane %v971, %v978
    %v981 = vunpack.c.l.s4 1966171168
    %v982 = vunpack.c.0.s8 %v981
    %v983 = vlaneseq
    %v984 = vshrl.u32 %v983, 7
    %v985 = vsub.s32 %v982, %v984
    %v986 = vrot.slane %v972, %v985
    %989 = vst.msk [vmem:[%s110 + $0x5] sm:$0x1] %vm367, %v979
    %990 = vst.msk [vmem:[%s110 + $0xd] sm:$0x1] %vm367, %v986
    %v991 = vsel %vm915, %v921, %v709
    %v993 = vrot.slane %v709, 2
    %v995 = vsel %vm955, %v961, %v993
    %v997 = vrot.slane %v995, 6
    %v999 = vsel %vm418, %v991, %v997
    %v1002 = vrot.slane %v838, 7
    %v1003 = vsel %vm336, %v1002, %v837
    %1004 = vrot.lane.b32.xlu0 %v1003, 96
    %v1005 = vpop.permute.xlu0 %1004
    %v1007 = vsel %vm915, %v1005, %v730
    %v1010 = vrot.slane %v894, 7
    %v1011 = vsel %vm336, %v1010, %v893
    %1012 = vrot.lane.b32.xlu0 %v1011, 96
    %v1013 = vpop.permute.xlu0 %1012
    %v1016 = vsel %vm955, %v1013, %v865
    %v1018 = vrot.slane %v1016, 6
    %v1020 = vsel %vm418, %v1007, %v1018
    %s1021 = sadd.s32 %s127, 3
    %s1022 = ssub.s32 4, %s127
    %v1023 = vpack.c.bf16 %v999, %v999
    %v1025 = vsel %vm150, %v1023, 0
    %1027 = vmatprep.subr.bf16.mxu0 %v143
    %1028 = vmatpush1.bf16.msra.mxu0 %v142
    %1029 = vmatprep.subr.bf16.mxu0 %v145
    %1030 = vmatpush1.bf16.msra.mxu0 %v144
    %1031 = vmatprep.subr.bf16.mxu0 0
    %1032 = vmatpush1.bf16.msra.mxu0 0
    %1033 = vmatprep.subr.bf16.mxu0 0
    %1034 = vmatpush1.bf16.msra.mxu0 0
    %1035 = vmatprep.subr.bf16.mxu0 0
    %1036 = vmatpush1.bf16.msra.mxu0 0
    %1037 = vmatprep.subr.bf16.mxu0 0
    %1038 = vmatpush1.bf16.msra.mxu0 0
    %1039 = vmatprep.subr.bf16.mxu0 0
    %1040 = vmatpush1.bf16.msra.mxu0 0
    %1041 = vmatprep.subr.bf16.mxu0 0
    %1042 = vmatpush1.bf16.msra.mxu0 0
    %1043 = vmatprep.subr.bf16.mxu0 0
    %1044 = vmatpush1.bf16.msra.mxu0 0
    %1045 = vmatprep.subr.bf16.mxu0 0
    %1046 = vmatpush1.bf16.msra.mxu0 0
    %1047 = vmatprep.subr.bf16.mxu0 0
    %1048 = vmatpush1.bf16.msra.mxu0 0
    %1049 = vmatprep.subr.bf16.mxu0 0
    %1050 = vmatpush1.bf16.msra.mxu0 0
    %1051 = vmatprep.subr.bf16.mxu0 0
    %1052 = vmatpush1.bf16.msra.mxu0 0
    %1053 = vmatprep.subr.bf16.mxu0 0
    %1054 = vmatpush1.bf16.msra.mxu0 0
    %1055 = vmatprep.subr.bf16.mxu0 0
    %1056 = vmatpush1.bf16.msra.mxu0 0
    %1057 = vmatprep.subr.bf16.mxu0 0
    %1058 = vmatpush1.bf16.msra.mxu0 0
    %1059 = vmatprep.mubr.bf16.mxu0 0
    %1060 = vmatmul.mubr.bf16.gmra.mrb[0].mxu0 %v1025
    %v1061 = vpop.f32.mrb[0].mxu0
    %v1062 = vadd.f32 0.0, %v1061
    %v1063 = vpop.f32.mrb[0].mxu0
    %v1064 = vadd.f32 0.0, %v1063
    %v1065 = vpop.f32.mrb[0].mxu0
    %v1066 = vpop.f32.mrb[0].mxu0
    %1067 = vdwg.mxu0
    %v1068 = vld [vmem:[#allocation4 + $0x3] sm:$0x1]
    %v1069 = vld [vmem:[#allocation4 + $0xb] sm:$0x1]
    %v1071 = vrot.slane %v1062, 1
    %v1074 = vadd.f32 %v1068, %v1062
    %v1075 = vadd.f32 %v1069, %v1071
    %v1076 = vld [vmem:[#allocation5 + $0x4] sm:$0x1]
    %v1077 = vld [vmem:[#allocation5 + $0xc] sm:$0x1]
    %v1079 = vrot.slane %v1064, 2
    %v1080 = vrot.slane %v1064, 3
    %v1083 = vadd.f32 %v1076, %v1079
    %v1084 = vadd.f32 %v1077, %v1080
    %v1085 = vxor.u32 %v1074, 2147483648
    %v1086 = vxor.u32 %v1075, 2147483648
    %v1087 = vmul.f32 %v1085, 1.442695
    %v1088 = vpow.pop %v1087
    %v1089 = vmul.f32 %v1086, 1.442695
    %v1090 = vpow.pop %v1089
    %v1091 = vadd.f32 %v1088, 1.0
    %v1092 = vadd.f32 %v1090, 1.0
    %v1093 = vrcp.pop %v1091
    %v1094 = vmul.f32 1.0, %v1093
    %v1095 = vrcp.pop %v1092
    %v1096 = vmul.f32 1.0, %v1095
    %v1097 = vtanh.pop %v1074
    %v1098 = vtanh.pop %v1075
    %v1100 = vrot.slane %v1020, 1
    %1101 = vrot.lane.b32.xlu0 %v1020, 32
    %v1102 = vpop.permute.xlu0 %1101
    %1103 = vrot.lane.b32.xlu0 %v1100, 32
    %v1104 = vpop.permute.xlu0 %1103
    %v1107 = vmul.f32 %v1094, %v1102
    %v1108 = vmul.f32 %v1096, %v1104
    %1111 = vrot.lane.b32.xlu0 %v1097, 64
    %v1112 = vpop.permute.xlu0 %1111
    %1113 = vrot.lane.b32.xlu0 %v1098, 64
    %v1114 = vpop.permute.xlu0 %1113
    %v1117 = vmul.f32 %v1094, %v1112
    %v1118 = vmul.f32 %v1096, %v1114
    %1121 = vrot.lane.b32.xlu0 %v1117, 32
    %v1122 = vpop.permute.xlu0 %1121
    %1123 = vrot.lane.b32.xlu0 %v1118, 32
    %v1124 = vpop.permute.xlu0 %1123
    %v1127 = vadd.f32 %v1107, %v1122
    %v1128 = vadd.f32 %v1108, %v1124
    %v1129 = vtanh.pop %v1127
    %v1130 = vtanh.pop %v1128
    %1133 = vrot.lane.b32.xlu0 %v1129, 64
    %v1134 = vpop.permute.xlu0 %1133
    %1135 = vrot.lane.b32.xlu0 %v1130, 64
    %v1136 = vpop.permute.xlu0 %1135
    %v1139 = vmul.f32 %v1094, %v1134
    %v1140 = vmul.f32 %v1096, %v1136
    %v1141 = vxor.u32 %v1083, 2147483648
    %v1142 = vxor.u32 %v1084, 2147483648
    %v1143 = vmul.f32 %v1141, 1.442695
    %v1144 = vpow.pop %v1143
    %v1145 = vmul.f32 %v1142, 1.442695
    %v1146 = vpow.pop %v1145
    %v1147 = vadd.f32 %v1144, 1.0
    %v1148 = vadd.f32 %v1146, 1.0
    %v1149 = vrcp.pop %v1147
    %v1150 = vmul.f32 1.0, %v1149
    %v1151 = vrcp.pop %v1148
    %v1152 = vmul.f32 1.0, %v1151
    %v1153 = vtanh.pop %v1083
    %v1154 = vtanh.pop %v1084
    %v1155 = vrot.slane %v1020, 2
    %v1156 = vrot.slane %v1020, 3
    %1157 = vrot.lane.b32.xlu0 %v1155, 32
    %v1158 = vpop.permute.xlu0 %1157
    %1159 = vrot.lane.b32.xlu0 %v1156, 32
    %v1160 = vpop.permute.xlu0 %1159
    %v1163 = vmul.f32 %v1150, %v1158
    %v1164 = vmul.f32 %v1152, %v1160
    %1167 = vrot.lane.b32.xlu0 %v1153, 64
    %v1168 = vpop.permute.xlu0 %1167
    %1169 = vrot.lane.b32.xlu0 %v1154, 64
    %v1170 = vpop.permute.xlu0 %1169
    %v1173 = vmul.f32 %v1150, %v1168
    %v1174 = vmul.f32 %v1152, %v1170
    %1177 = vrot.lane.b32.xlu0 %v1173, 32
    %v1178 = vpop.permute.xlu0 %1177
    %1179 = vrot.lane.b32.xlu0 %v1174, 32
    %v1180 = vpop.permute.xlu0 %1179
    %v1183 = vadd.f32 %v1163, %v1178
    %v1184 = vadd.f32 %v1164, %v1180
    %v1185 = vtanh.pop %v1183
    %v1186 = vtanh.pop %v1184
    %1189 = vrot.lane.b32.xlu0 %v1185, 64
    %v1190 = vpop.permute.xlu0 %1189
    %1191 = vrot.lane.b32.xlu0 %v1186, 64
    %v1192 = vpop.permute.xlu0 %1191
    %v1195 = vmul.f32 %v1150, %v1190
    %v1196 = vmul.f32 %v1152, %v1192
    %v1197 = vstv %s1021
    %vm1198 = vcmp.lt.s32.totalorder %v1197, %v120
    %v1199 = vstv %s1022
    %vm1200 = vcmp.lt.s32.totalorder %v1199, %v120
    %v1201 = vsel %vm1198, 1, 0
    %1202 = vset.pattern.permute.xlu0 0
    %1203 = vperm.xlu0 %1202, %v1201
    %v1204 = vpop.permute.xlu0 %1203
    %vm1205 = vcmp.eq.s32.totalorder %v1204, 1
    %v1208 = vrot.slane %v1140, 7
    %v1209 = vsel %vm336, %v1208, %v1139
    %1210 = vrot.lane.b32.xlu0 %v1209, 32
    %v1211 = vpop.permute.xlu0 %1210
    %v1213 = vsel %vm1205, %v1211, 0.0
    %v1216 = vunpack.c.l.s4 1966171168
    %v1217 = vunpack.c.0.s8 %v1216
    %v1218 = vlaneseq
    %v1219 = vshrl.u32 %v1218, 7
    %v1220 = vsub.s32 %v1217, %v1219
    %v1221 = vrot.slane %v1213, %v1220
    %v1222 = vcombine.high %v1221, %v1221
    %v1224 = vunpack.c.l.s4 1966171168
    %v1225 = vunpack.c.0.s8 %v1224
    %v1226 = vlaneseq
    %v1227 = vshrl.u32 %v1226, 7
    %v1228 = vsub.s32 %v1225, %v1227
    %v1229 = vrot.slane %v1221, %v1228
    %v1231 = vunpack.c.l.s4 1966171168
    %v1232 = vunpack.c.0.s8 %v1231
    %v1233 = vlaneseq
    %v1234 = vshrl.u32 %v1233, 7
    %v1235 = vsub.s32 %v1232, %v1234
    %v1236 = vrot.slane %v1222, %v1235
    %1239 = vst.msk [vmem:[%s4 + $0x3] sm:$0x1] %vm367, %v1229
    %1240 = vst.msk [vmem:[%s4 + $0xb] sm:$0x1] %vm367, %v1236
    %v1241 = vsel %vm1200, 1, 0
    %1242 = vset.pattern.permute.xlu0 0
    %1243 = vperm.xlu0 %1242, %v1241
    %v1244 = vpop.permute.xlu0 %1243
    %vm1245 = vcmp.eq.s32.totalorder %v1244, 1
    %v1248 = vrot.slane %v1196, 7
    %v1249 = vsel %vm336, %v1248, %v1195
    %1250 = vrot.lane.b32.xlu0 %v1249, 32
    %v1251 = vpop.permute.xlu0 %1250
    %v1253 = vsel %vm1245, %v1251, 0.0
    %v1256 = vunpack.c.l.s4 1966171168
    %v1257 = vunpack.c.0.s8 %v1256
    %v1258 = vlaneseq
    %v1259 = vshrl.u32 %v1258, 7
    %v1260 = vsub.s32 %v1257, %v1259
    %v1261 = vrot.slane %v1253, %v1260
    %v1262 = vcombine.high %v1261, %v1261
    %v1264 = vunpack.c.l.s4 1966171168
    %v1265 = vunpack.c.0.s8 %v1264
    %v1266 = vlaneseq
    %v1267 = vshrl.u32 %v1266, 7
    %v1268 = vsub.s32 %v1265, %v1267
    %v1269 = vrot.slane %v1261, %v1268
    %v1271 = vunpack.c.l.s4 1966171168
    %v1272 = vunpack.c.0.s8 %v1271
    %v1273 = vlaneseq
    %v1274 = vshrl.u32 %v1273, 7
    %v1275 = vsub.s32 %v1272, %v1274
    %v1276 = vrot.slane %v1262, %v1275
    %1279 = vst.msk [vmem:[%s110 + $0x4] sm:$0x1] %vm367, %v1269
    %1280 = vst.msk [vmem:[%s110 + $0xc] sm:$0x1] %vm367, %v1276
    %v1281 = vsel %vm1205, %v1211, %v999
    %v1283 = vrot.slane %v999, 2
    %v1285 = vsel %vm1245, %v1251, %v1283
    %v1287 = vrot.slane %v1285, 6
    %v1289 = vsel %vm418, %v1281, %v1287
    %v1292 = vrot.slane %v1128, 7
    %v1293 = vsel %vm336, %v1292, %v1127
    %1294 = vrot.lane.b32.xlu0 %v1293, 96
    %v1295 = vpop.permute.xlu0 %1294
    %v1297 = vsel %vm1205, %v1295, %v1020
    %v1300 = vrot.slane %v1184, 7
    %v1301 = vsel %vm336, %v1300, %v1183
    %1302 = vrot.lane.b32.xlu0 %v1301, 96
    %v1303 = vpop.permute.xlu0 %1302
    %v1306 = vsel %vm1245, %v1303, %v1155
    %v1308 = vrot.slane %v1306, 6
    %v1310 = vsel %vm418, %v1297, %v1308
    %s1311 = sadd.s32 %s127, 4
    %s1312 = ssub.s32 3, %s127
    %v1313 = vpack.c.bf16 %v1289, %v1289
    %v1315 = vsel %vm150, %v1313, 0
    %1317 = vmatprep.subr.bf16.mxu0 %v143
    %1318 = vmatpush1.bf16.msra.mxu0 %v142
    %1319 = vmatprep.subr.bf16.mxu0 %v145
    %1320 = vmatpush1.bf16.msra.mxu0 %v144
    %1321 = vmatprep.subr.bf16.mxu0 0
    %1322 = vmatpush1.bf16.msra.mxu0 0
    %1323 = vmatprep.subr.bf16.mxu0 0
    %1324 = vmatpush1.bf16.msra.mxu0 0
    %1325 = vmatprep.subr.bf16.mxu0 0
    %1326 = vmatpush1.bf16.msra.mxu0 0
    %1327 = vmatprep.subr.bf16.mxu0 0
    %1328 = vmatpush1.bf16.msra.mxu0 0
    %1329 = vmatprep.subr.bf16.mxu0 0
    %1330 = vmatpush1.bf16.msra.mxu0 0
    %1331 = vmatprep.subr.bf16.mxu0 0
    %1332 = vmatpush1.bf16.msra.mxu0 0
    %1333 = vmatprep.subr.bf16.mxu0 0
    %1334 = vmatpush1.bf16.msra.mxu0 0
    %1335 = vmatprep.subr.bf16.mxu0 0
    %1336 = vmatpush1.bf16.msra.mxu0 0
    %1337 = vmatprep.subr.bf16.mxu0 0
    %1338 = vmatpush1.bf16.msra.mxu0 0
    %1339 = vmatprep.subr.bf16.mxu0 0
    %1340 = vmatpush1.bf16.msra.mxu0 0
    %1341 = vmatprep.subr.bf16.mxu0 0
    %1342 = vmatpush1.bf16.msra.mxu0 0
    %1343 = vmatprep.subr.bf16.mxu0 0
    %1344 = vmatpush1.bf16.msra.mxu0 0
    %1345 = vmatprep.subr.bf16.mxu0 0
    %1346 = vmatpush1.bf16.msra.mxu0 0
    %1347 = vmatprep.subr.bf16.mxu0 0
    %1348 = vmatpush1.bf16.msra.mxu0 0
    %1349 = vmatprep.mubr.bf16.mxu0 0
    %1350 = vmatmul.mubr.bf16.gmra.mrb[0].mxu0 %v1315
    %v1351 = vpop.f32.mrb[0].mxu0
    %v1352 = vadd.f32 0.0, %v1351
    %v1353 = vpop.f32.mrb[0].mxu0
    %v1354 = vadd.f32 0.0, %v1353
    %v1355 = vpop.f32.mrb[0].mxu0
    %v1356 = vpop.f32.mrb[0].mxu0
    %1357 = vdwg.mxu0
    %v1358 = vld [vmem:[#allocation4 + $0x4] sm:$0x1]
    %v1359 = vld [vmem:[#allocation4 + $0xc] sm:$0x1]
    %v1361 = vrot.slane %v1352, 1
    %v1364 = vadd.f32 %v1358, %v1352
    %v1365 = vadd.f32 %v1359, %v1361
    %v1366 = vld [vmem:[#allocation5 + $0x3] sm:$0x1]
    %v1367 = vld [vmem:[#allocation5 + $0xb] sm:$0x1]
    %v1369 = vrot.slane %v1354, 2
    %v1370 = vrot.slane %v1354, 3
    %v1373 = vadd.f32 %v1366, %v1369
    %v1374 = vadd.f32 %v1367, %v1370
    %v1375 = vxor.u32 %v1364, 2147483648
    %v1376 = vxor.u32 %v1365, 2147483648
    %v1377 = vmul.f32 %v1375, 1.442695
    %v1378 = vpow.pop %v1377
    %v1379 = vmul.f32 %v1376, 1.442695
    %v1380 = vpow.pop %v1379
    %v1381 = vadd.f32 %v1378, 1.0
    %v1382 = vadd.f32 %v1380, 1.0
    %v1383 = vrcp.pop %v1381
    %v1384 = vmul.f32 1.0, %v1383
    %v1385 = vrcp.pop %v1382
    %v1386 = vmul.f32 1.0, %v1385
    %v1387 = vtanh.pop %v1364
    %v1388 = vtanh.pop %v1365
    %v1390 = vrot.slane %v1310, 1
    %1391 = vrot.lane.b32.xlu0 %v1310, 32
    %v1392 = vpop.permute.xlu0 %1391
    %1393 = vrot.lane.b32.xlu0 %v1390, 32
    %v1394 = vpop.permute.xlu0 %1393
    %v1397 = vmul.f32 %v1384, %v1392
    %v1398 = vmul.f32 %v1386, %v1394
    %1401 = vrot.lane.b32.xlu0 %v1387, 64
    %v1402 = vpop.permute.xlu0 %1401
    %1403 = vrot.lane.b32.xlu0 %v1388, 64
    %v1404 = vpop.permute.xlu0 %1403
    %v1407 = vmul.f32 %v1384, %v1402
    %v1408 = vmul.f32 %v1386, %v1404
    %1411 = vrot.lane.b32.xlu0 %v1407, 32
    %v1412 = vpop.permute.xlu0 %1411
    %1413 = vrot.lane.b32.xlu0 %v1408, 32
    %v1414 = vpop.permute.xlu0 %1413
    %v1417 = vadd.f32 %v1397, %v1412
    %v1418 = vadd.f32 %v1398, %v1414
    %v1419 = vtanh.pop %v1417
    %v1420 = vtanh.pop %v1418
    %1423 = vrot.lane.b32.xlu0 %v1419, 64
    %v1424 = vpop.permute.xlu0 %1423
    %1425 = vrot.lane.b32.xlu0 %v1420, 64
    %v1426 = vpop.permute.xlu0 %1425
    %v1429 = vmul.f32 %v1384, %v1424
    %v1430 = vmul.f32 %v1386, %v1426
    %v1431 = vxor.u32 %v1373, 2147483648
    %v1432 = vxor.u32 %v1374, 2147483648
    %v1433 = vmul.f32 %v1431, 1.442695
    %v1434 = vpow.pop %v1433
    %v1435 = vmul.f32 %v1432, 1.442695
    %v1436 = vpow.pop %v1435
    %v1437 = vadd.f32 %v1434, 1.0
    %v1438 = vadd.f32 %v1436, 1.0
    %v1439 = vrcp.pop %v1437
    %v1440 = vmul.f32 1.0, %v1439
    %v1441 = vrcp.pop %v1438
    %v1442 = vmul.f32 1.0, %v1441
    %v1443 = vtanh.pop %v1373
    %v1444 = vtanh.pop %v1374
    %v1445 = vrot.slane %v1310, 2
    %v1446 = vrot.slane %v1310, 3
    %1447 = vrot.lane.b32.xlu0 %v1445, 32
    %v1448 = vpop.permute.xlu0 %1447
    %1449 = vrot.lane.b32.xlu0 %v1446, 32
    %v1450 = vpop.permute.xlu0 %1449
    %v1453 = vmul.f32 %v1440, %v1448
    %v1454 = vmul.f32 %v1442, %v1450
    %1457 = vrot.lane.b32.xlu0 %v1443, 64
    %v1458 = vpop.permute.xlu0 %1457
    %1459 = vrot.lane.b32.xlu0 %v1444, 64
    %v1460 = vpop.permute.xlu0 %1459
    %v1463 = vmul.f32 %v1440, %v1458
    %v1464 = vmul.f32 %v1442, %v1460
    %1467 = vrot.lane.b32.xlu0 %v1463, 32
    %v1468 = vpop.permute.xlu0 %1467
    %1469 = vrot.lane.b32.xlu0 %v1464, 32
    %v1470 = vpop.permute.xlu0 %1469
    %v1473 = vadd.f32 %v1453, %v1468
    %v1474 = vadd.f32 %v1454, %v1470
    %v1475 = vtanh.pop %v1473
    %v1476 = vtanh.pop %v1474
    %1479 = vrot.lane.b32.xlu0 %v1475, 64
    %v1480 = vpop.permute.xlu0 %1479
    %1481 = vrot.lane.b32.xlu0 %v1476, 64
    %v1482 = vpop.permute.xlu0 %1481
    %v1485 = vmul.f32 %v1440, %v1480
    %v1486 = vmul.f32 %v1442, %v1482
    %v1487 = vstv %s1311
    %vm1488 = vcmp.lt.s32.totalorder %v1487, %v120
    %v1489 = vstv %s1312
    %vm1490 = vcmp.lt.s32.totalorder %v1489, %v120
    %v1491 = vsel %vm1488, 1, 0
    %1492 = vset.pattern.permute.xlu0 0
    %1493 = vperm.xlu0 %1492, %v1491
    %v1494 = vpop.permute.xlu0 %1493
    %vm1495 = vcmp.eq.s32.totalorder %v1494, 1
    %v1498 = vrot.slane %v1430, 7
    %v1499 = vsel %vm336, %v1498, %v1429
    %1500 = vrot.lane.b32.xlu0 %v1499, 32
    %v1501 = vpop.permute.xlu0 %1500
    %v1503 = vsel %vm1495, %v1501, 0.0
    %v1506 = vunpack.c.l.s4 1966171168
    %v1507 = vunpack.c.0.s8 %v1506
    %v1508 = vlaneseq
    %v1509 = vshrl.u32 %v1508, 7
    %v1510 = vsub.s32 %v1507, %v1509
    %v1511 = vrot.slane %v1503, %v1510
    %v1512 = vcombine.high %v1511, %v1511
    %v1514 = vunpack.c.l.s4 1966171168
    %v1515 = vunpack.c.0.s8 %v1514
    %v1516 = vlaneseq
    %v1517 = vshrl.u32 %v1516, 7
    %v1518 = vsub.s32 %v1515, %v1517
    %v1519 = vrot.slane %v1511, %v1518
    %v1521 = vunpack.c.l.s4 1966171168
    %v1522 = vunpack.c.0.s8 %v1521
    %v1523 = vlaneseq
    %v1524 = vshrl.u32 %v1523, 7
    %v1525 = vsub.s32 %v1522, %v1524
    %v1526 = vrot.slane %v1512, %v1525
    %1529 = vst.msk [vmem:[%s4 + $0x4] sm:$0x1] %vm367, %v1519
    %1530 = vst.msk [vmem:[%s4 + $0xc] sm:$0x1] %vm367, %v1526
    %v1531 = vsel %vm1490, 1, 0
    %1532 = vset.pattern.permute.xlu0 0
    %1533 = vperm.xlu0 %1532, %v1531
    %v1534 = vpop.permute.xlu0 %1533
    %vm1535 = vcmp.eq.s32.totalorder %v1534, 1
    %v1538 = vrot.slane %v1486, 7
    %v1539 = vsel %vm336, %v1538, %v1485
    %1540 = vrot.lane.b32.xlu0 %v1539, 32
    %v1541 = vpop.permute.xlu0 %1540
    %v1543 = vsel %vm1535, %v1541, 0.0
    %v1546 = vunpack.c.l.s4 1966171168
    %v1547 = vunpack.c.0.s8 %v1546
    %v1548 = vlaneseq
    %v1549 = vshrl.u32 %v1548, 7
    %v1550 = vsub.s32 %v1547, %v1549
    %v1551 = vrot.slane %v1543, %v1550
    %v1552 = vcombine.high %v1551, %v1551
    %v1554 = vunpack.c.l.s4 1966171168
    %v1555 = vunpack.c.0.s8 %v1554
    %v1556 = vlaneseq
    %v1557 = vshrl.u32 %v1556, 7
    %v1558 = vsub.s32 %v1555, %v1557
    %v1559 = vrot.slane %v1551, %v1558
    %v1561 = vunpack.c.l.s4 1966171168
    %v1562 = vunpack.c.0.s8 %v1561
    %v1563 = vlaneseq
    %v1564 = vshrl.u32 %v1563, 7
    %v1565 = vsub.s32 %v1562, %v1564
    %v1566 = vrot.slane %v1552, %v1565
    %1569 = vst.msk [vmem:[%s110 + $0x3] sm:$0x1] %vm367, %v1559
    %1570 = vst.msk [vmem:[%s110 + $0xb] sm:$0x1] %vm367, %v1566
    %v1571 = vsel %vm1495, %v1501, %v1289
    %v1573 = vrot.slane %v1289, 2
    %v1575 = vsel %vm1535, %v1541, %v1573
    %v1577 = vrot.slane %v1575, 6
    %v1579 = vsel %vm418, %v1571, %v1577
    %v1582 = vrot.slane %v1418, 7
    %v1583 = vsel %vm336, %v1582, %v1417
    %1584 = vrot.lane.b32.xlu0 %v1583, 96
    %v1585 = vpop.permute.xlu0 %1584
    %v1587 = vsel %vm1495, %v1585, %v1310
    %v1590 = vrot.slane %v1474, 7
    %v1591 = vsel %vm336, %v1590, %v1473
    %1592 = vrot.lane.b32.xlu0 %v1591, 96
    %v1593 = vpop.permute.xlu0 %1592
    %v1596 = vsel %vm1535, %v1593, %v1445
    %v1598 = vrot.slane %v1596, 6
    %v1600 = vsel %vm418, %v1587, %v1598
    %s1601 = sadd.s32 %s127, 5
    %s1602 = ssub.s32 2, %s127
    %v1603 = vpack.c.bf16 %v1579, %v1579
    %v1605 = vsel %vm150, %v1603, 0
    %1607 = vmatprep.subr.bf16.mxu0 %v143
    %1608 = vmatpush1.bf16.msra.mxu0 %v142
    %1609 = vmatprep.subr.bf16.mxu0 %v145
    %1610 = vmatpush1.bf16.msra.mxu0 %v144
    %1611 = vmatprep.subr.bf16.mxu0 0
    %1612 = vmatpush1.bf16.msra.mxu0 0
    %1613 = vmatprep.subr.bf16.mxu0 0
    %1614 = vmatpush1.bf16.msra.mxu0 0
    %1615 = vmatprep.subr.bf16.mxu0 0
    %1616 = vmatpush1.bf16.msra.mxu0 0
    %1617 = vmatprep.subr.bf16.mxu0 0
    %1618 = vmatpush1.bf16.msra.mxu0 0
    %1619 = vmatprep.subr.bf16.mxu0 0
    %1620 = vmatpush1.bf16.msra.mxu0 0
    %1621 = vmatprep.subr.bf16.mxu0 0
    %1622 = vmatpush1.bf16.msra.mxu0 0
    %1623 = vmatprep.subr.bf16.mxu0 0
    %1624 = vmatpush1.bf16.msra.mxu0 0
    %1625 = vmatprep.subr.bf16.mxu0 0
    %1626 = vmatpush1.bf16.msra.mxu0 0
    %1627 = vmatprep.subr.bf16.mxu0 0
    %1628 = vmatpush1.bf16.msra.mxu0 0
    %1629 = vmatprep.subr.bf16.mxu0 0
    %1630 = vmatpush1.bf16.msra.mxu0 0
    %1631 = vmatprep.subr.bf16.mxu0 0
    %1632 = vmatpush1.bf16.msra.mxu0 0
    %1633 = vmatprep.subr.bf16.mxu0 0
    %1634 = vmatpush1.bf16.msra.mxu0 0
    %1635 = vmatprep.subr.bf16.mxu0 0
    %1636 = vmatpush1.bf16.msra.mxu0 0
    %1637 = vmatprep.subr.bf16.mxu0 0
    %1638 = vmatpush1.bf16.msra.mxu0 0
    %1639 = vmatprep.mubr.bf16.mxu0 0
    %1640 = vmatmul.mubr.bf16.gmra.mrb[0].mxu0 %v1605
    %v1641 = vpop.f32.mrb[0].mxu0
    %v1642 = vadd.f32 0.0, %v1641
    %v1643 = vpop.f32.mrb[0].mxu0
    %v1644 = vadd.f32 0.0, %v1643
    %v1645 = vpop.f32.mrb[0].mxu0
    %v1646 = vpop.f32.mrb[0].mxu0
    %1647 = vdwg.mxu0
    %v1648 = vld [vmem:[#allocation4 + $0x5] sm:$0x1]
    %v1649 = vld [vmem:[#allocation4 + $0xd] sm:$0x1]
    %v1651 = vrot.slane %v1642, 1
    %v1654 = vadd.f32 %v1648, %v1642
    %v1655 = vadd.f32 %v1649, %v1651
    %v1656 = vld [vmem:[#allocation5 + $0x2] sm:$0x1]
    %v1657 = vld [vmem:[#allocation5 + $0xa] sm:$0x1]
    %v1659 = vrot.slane %v1644, 2
    %v1660 = vrot.slane %v1644, 3
    %v1663 = vadd.f32 %v1656, %v1659
    %v1664 = vadd.f32 %v1657, %v1660
    %v1665 = vxor.u32 %v1654, 2147483648
    %v1666 = vxor.u32 %v1655, 2147483648
    %v1667 = vmul.f32 %v1665, 1.442695
    %v1668 = vpow.pop %v1667
    %v1669 = vmul.f32 %v1666, 1.442695
    %v1670 = vpow.pop %v1669
    %v1671 = vadd.f32 %v1668, 1.0
    %v1672 = vadd.f32 %v1670, 1.0
    %v1673 = vrcp.pop %v1671
    %v1674 = vmul.f32 1.0, %v1673
    %v1675 = vrcp.pop %v1672
    %v1676 = vmul.f32 1.0, %v1675
    %v1677 = vtanh.pop %v1654
    %v1678 = vtanh.pop %v1655
    %v1680 = vrot.slane %v1600, 1
    %1681 = vrot.lane.b32.xlu0 %v1600, 32
    %v1682 = vpop.permute.xlu0 %1681
    %1683 = vrot.lane.b32.xlu0 %v1680, 32
    %v1684 = vpop.permute.xlu0 %1683
    %v1687 = vmul.f32 %v1674, %v1682
    %v1688 = vmul.f32 %v1676, %v1684
    %1691 = vrot.lane.b32.xlu0 %v1677, 64
    %v1692 = vpop.permute.xlu0 %1691
    %1693 = vrot.lane.b32.xlu0 %v1678, 64
    %v1694 = vpop.permute.xlu0 %1693
    %v1697 = vmul.f32 %v1674, %v1692
    %v1698 = vmul.f32 %v1676, %v1694
    %1701 = vrot.lane.b32.xlu0 %v1697, 32
    %v1702 = vpop.permute.xlu0 %1701
    %1703 = vrot.lane.b32.xlu0 %v1698, 32
    %v1704 = vpop.permute.xlu0 %1703
    %v1707 = vadd.f32 %v1687, %v1702
    %v1708 = vadd.f32 %v1688, %v1704
    %v1709 = vtanh.pop %v1707
    %v1710 = vtanh.pop %v1708
    %1713 = vrot.lane.b32.xlu0 %v1709, 64
    %v1714 = vpop.permute.xlu0 %1713
    %1715 = vrot.lane.b32.xlu0 %v1710, 64
    %v1716 = vpop.permute.xlu0 %1715
    %v1719 = vmul.f32 %v1674, %v1714
    %v1720 = vmul.f32 %v1676, %v1716
    %v1721 = vxor.u32 %v1663, 2147483648
    %v1722 = vxor.u32 %v1664, 2147483648
    %v1723 = vmul.f32 %v1721, 1.442695
    %v1724 = vpow.pop %v1723
    %v1725 = vmul.f32 %v1722, 1.442695
    %v1726 = vpow.pop %v1725
    %v1727 = vadd.f32 %v1724, 1.0
    %v1728 = vadd.f32 %v1726, 1.0
    %v1729 = vrcp.pop %v1727
    %v1730 = vmul.f32 1.0, %v1729
    %v1731 = vrcp.pop %v1728
    %v1732 = vmul.f32 1.0, %v1731
    %v1733 = vtanh.pop %v1663
    %v1734 = vtanh.pop %v1664
    %v1735 = vrot.slane %v1600, 2
    %v1736 = vrot.slane %v1600, 3
    %1737 = vrot.lane.b32.xlu0 %v1735, 32
    %v1738 = vpop.permute.xlu0 %1737
    %1739 = vrot.lane.b32.xlu0 %v1736, 32
    %v1740 = vpop.permute.xlu0 %1739
    %v1743 = vmul.f32 %v1730, %v1738
    %v1744 = vmul.f32 %v1732, %v1740
    %1747 = vrot.lane.b32.xlu0 %v1733, 64
    %v1748 = vpop.permute.xlu0 %1747
    %1749 = vrot.lane.b32.xlu0 %v1734, 64
    %v1750 = vpop.permute.xlu0 %1749
    %v1753 = vmul.f32 %v1730, %v1748
    %v1754 = vmul.f32 %v1732, %v1750
    %1757 = vrot.lane.b32.xlu0 %v1753, 32
    %v1758 = vpop.permute.xlu0 %1757
    %1759 = vrot.lane.b32.xlu0 %v1754, 32
    %v1760 = vpop.permute.xlu0 %1759
    %v1763 = vadd.f32 %v1743, %v1758
    %v1764 = vadd.f32 %v1744, %v1760
    %v1765 = vtanh.pop %v1763
    %v1766 = vtanh.pop %v1764
    %1769 = vrot.lane.b32.xlu0 %v1765, 64
    %v1770 = vpop.permute.xlu0 %1769
    %1771 = vrot.lane.b32.xlu0 %v1766, 64
    %v1772 = vpop.permute.xlu0 %1771
    %v1775 = vmul.f32 %v1730, %v1770
    %v1776 = vmul.f32 %v1732, %v1772
    %v1777 = vstv %s1601
    %vm1778 = vcmp.lt.s32.totalorder %v1777, %v120
    %v1779 = vstv %s1602
    %vm1780 = vcmp.lt.s32.totalorder %v1779, %v120
    %v1781 = vsel %vm1778, 1, 0
    %1782 = vset.pattern.permute.xlu0 0
    %1783 = vperm.xlu0 %1782, %v1781
    %v1784 = vpop.permute.xlu0 %1783
    %vm1785 = vcmp.eq.s32.totalorder %v1784, 1
    %v1788 = vrot.slane %v1720, 7
    %v1789 = vsel %vm336, %v1788, %v1719
    %1790 = vrot.lane.b32.xlu0 %v1789, 32
    %v1791 = vpop.permute.xlu0 %1790
    %v1793 = vsel %vm1785, %v1791, 0.0
    %v1796 = vunpack.c.l.s4 1966171168
    %v1797 = vunpack.c.0.s8 %v1796
    %v1798 = vlaneseq
    %v1799 = vshrl.u32 %v1798, 7
    %v1800 = vsub.s32 %v1797, %v1799
    %v1801 = vrot.slane %v1793, %v1800
    %v1802 = vcombine.high %v1801, %v1801
    %v1804 = vunpack.c.l.s4 1966171168
    %v1805 = vunpack.c.0.s8 %v1804
    %v1806 = vlaneseq
    %v1807 = vshrl.u32 %v1806, 7
    %v1808 = vsub.s32 %v1805, %v1807
    %v1809 = vrot.slane %v1801, %v1808
    %v1811 = vunpack.c.l.s4 1966171168
    %v1812 = vunpack.c.0.s8 %v1811
    %v1813 = vlaneseq
    %v1814 = vshrl.u32 %v1813, 7
    %v1815 = vsub.s32 %v1812, %v1814
    %v1816 = vrot.slane %v1802, %v1815
    %1819 = vst.msk [vmem:[%s4 + $0x5] sm:$0x1] %vm367, %v1809
    %1820 = vst.msk [vmem:[%s4 + $0xd] sm:$0x1] %vm367, %v1816
    %v1821 = vsel %vm1780, 1, 0
    %1822 = vset.pattern.permute.xlu0 0
    %1823 = vperm.xlu0 %1822, %v1821
    %v1824 = vpop.permute.xlu0 %1823
    %vm1825 = vcmp.eq.s32.totalorder %v1824, 1
    %v1828 = vrot.slane %v1776, 7
    %v1829 = vsel %vm336, %v1828, %v1775
    %1830 = vrot.lane.b32.xlu0 %v1829, 32
    %v1831 = vpop.permute.xlu0 %1830
    %v1833 = vsel %vm1825, %v1831, 0.0
    %v1836 = vunpack.c.l.s4 1966171168
    %v1837 = vunpack.c.0.s8 %v1836
    %v1838 = vlaneseq
    %v1839 = vshrl.u32 %v1838, 7
    %v1840 = vsub.s32 %v1837, %v1839
    %v1841 = vrot.slane %v1833, %v1840
    %v1842 = vcombine.high %v1841, %v1841
    %v1844 = vunpack.c.l.s4 1966171168
    %v1845 = vunpack.c.0.s8 %v1844
    %v1846 = vlaneseq
    %v1847 = vshrl.u32 %v1846, 7
    %v1848 = vsub.s32 %v1845, %v1847
    %v1849 = vrot.slane %v1841, %v1848
    %v1851 = vunpack.c.l.s4 1966171168
    %v1852 = vunpack.c.0.s8 %v1851
    %v1853 = vlaneseq
    %v1854 = vshrl.u32 %v1853, 7
    %v1855 = vsub.s32 %v1852, %v1854
    %v1856 = vrot.slane %v1842, %v1855
    %1859 = vst.msk [vmem:[%s110 + $0x2] sm:$0x1] %vm367, %v1849
    %1860 = vst.msk [vmem:[%s110 + $0xa] sm:$0x1] %vm367, %v1856
    %v1861 = vsel %vm1785, %v1791, %v1579
    %v1863 = vrot.slane %v1579, 2
    %v1865 = vsel %vm1825, %v1831, %v1863
    %v1867 = vrot.slane %v1865, 6
    %v1869 = vsel %vm418, %v1861, %v1867
    %v1872 = vrot.slane %v1708, 7
    %v1873 = vsel %vm336, %v1872, %v1707
    %1874 = vrot.lane.b32.xlu0 %v1873, 96
    %v1875 = vpop.permute.xlu0 %1874
    %v1877 = vsel %vm1785, %v1875, %v1600
    %v1880 = vrot.slane %v1764, 7
    %v1881 = vsel %vm336, %v1880, %v1763
    %1882 = vrot.lane.b32.xlu0 %v1881, 96
    %v1883 = vpop.permute.xlu0 %1882
    %v1886 = vsel %vm1825, %v1883, %v1735
    %v1888 = vrot.slane %v1886, 6
    %v1890 = vsel %vm418, %v1877, %v1888
    %s1891 = sadd.s32 %s127, 6
    %s1892 = ssub.s32 1, %s127
    %v1893 = vpack.c.bf16 %v1869, %v1869
    %v1895 = vsel %vm150, %v1893, 0
    %1897 = vmatprep.subr.bf16.mxu0 %v143
    %1898 = vmatpush1.bf16.msra.mxu0 %v142
    %1899 = vmatprep.subr.bf16.mxu0 %v145
    %1900 = vmatpush1.bf16.msra.mxu0 %v144
    %1901 = vmatprep.subr.bf16.mxu0 0
    %1902 = vmatpush1.bf16.msra.mxu0 0
    %1903 = vmatprep.subr.bf16.mxu0 0
    %1904 = vmatpush1.bf16.msra.mxu0 0
    %1905 = vmatprep.subr.bf16.mxu0 0
    %1906 = vmatpush1.bf16.msra.mxu0 0
    %1907 = vmatprep.subr.bf16.mxu0 0
    %1908 = vmatpush1.bf16.msra.mxu0 0
    %1909 = vmatprep.subr.bf16.mxu0 0
    %1910 = vmatpush1.bf16.msra.mxu0 0
    %1911 = vmatprep.subr.bf16.mxu0 0
    %1912 = vmatpush1.bf16.msra.mxu0 0
    %1913 = vmatprep.subr.bf16.mxu0 0
    %1914 = vmatpush1.bf16.msra.mxu0 0
    %1915 = vmatprep.subr.bf16.mxu0 0
    %1916 = vmatpush1.bf16.msra.mxu0 0
    %1917 = vmatprep.subr.bf16.mxu0 0
    %1918 = vmatpush1.bf16.msra.mxu0 0
    %1919 = vmatprep.subr.bf16.mxu0 0
    %1920 = vmatpush1.bf16.msra.mxu0 0
    %1921 = vmatprep.subr.bf16.mxu0 0
    %1922 = vmatpush1.bf16.msra.mxu0 0
    %1923 = vmatprep.subr.bf16.mxu0 0
    %1924 = vmatpush1.bf16.msra.mxu0 0
    %1925 = vmatprep.subr.bf16.mxu0 0
    %1926 = vmatpush1.bf16.msra.mxu0 0
    %1927 = vmatprep.subr.bf16.mxu0 0
    %1928 = vmatpush1.bf16.msra.mxu0 0
    %1929 = vmatprep.mubr.bf16.mxu0 0
    %1930 = vmatmul.mubr.bf16.gmra.mrb[0].mxu0 %v1895
    %v1931 = vpop.f32.mrb[0].mxu0
    %v1932 = vadd.f32 0.0, %v1931
    %v1933 = vpop.f32.mrb[0].mxu0
    %v1934 = vadd.f32 0.0, %v1933
    %v1935 = vpop.f32.mrb[0].mxu0
    %v1936 = vpop.f32.mrb[0].mxu0
    %1937 = vdwg.mxu0
    %v1938 = vld [vmem:[#allocation4 + $0x6] sm:$0x1]
    %v1939 = vld [vmem:[#allocation4 + $0xe] sm:$0x1]
    %v1941 = vrot.slane %v1932, 1
    %v1944 = vadd.f32 %v1938, %v1932
    %v1945 = vadd.f32 %v1939, %v1941
    %v1946 = vld [vmem:[#allocation5 + $0x1] sm:$0x1]
    %v1947 = vld [vmem:[#allocation5 + $0x9] sm:$0x1]
    %v1949 = vrot.slane %v1934, 2
    %v1950 = vrot.slane %v1934, 3
    %v1953 = vadd.f32 %v1946, %v1949
    %v1954 = vadd.f32 %v1947, %v1950
    %v1955 = vxor.u32 %v1944, 2147483648
    %v1956 = vxor.u32 %v1945, 2147483648
    %v1957 = vmul.f32 %v1955, 1.442695
    %v1958 = vpow.pop %v1957
    %v1959 = vmul.f32 %v1956, 1.442695
    %v1960 = vpow.pop %v1959
    %v1961 = vadd.f32 %v1958, 1.0
    %v1962 = vadd.f32 %v1960, 1.0
    %v1963 = vrcp.pop %v1961
    %v1964 = vmul.f32 1.0, %v1963
    %v1965 = vrcp.pop %v1962
    %v1966 = vmul.f32 1.0, %v1965
    %v1967 = vtanh.pop %v1944
    %v1968 = vtanh.pop %v1945
    %v1970 = vrot.slane %v1890, 1
    %1971 = vrot.lane.b32.xlu0 %v1890, 32
    %v1972 = vpop.permute.xlu0 %1971
    %1973 = vrot.lane.b32.xlu0 %v1970, 32
    %v1974 = vpop.permute.xlu0 %1973
    %v1977 = vmul.f32 %v1964, %v1972
    %v1978 = vmul.f32 %v1966, %v1974
    %1981 = vrot.lane.b32.xlu0 %v1967, 64
    %v1982 = vpop.permute.xlu0 %1981
    %1983 = vrot.lane.b32.xlu0 %v1968, 64
    %v1984 = vpop.permute.xlu0 %1983
    %v1987 = vmul.f32 %v1964, %v1982
    %v1988 = vmul.f32 %v1966, %v1984
    %1991 = vrot.lane.b32.xlu0 %v1987, 32
    %v1992 = vpop.permute.xlu0 %1991
    %1993 = vrot.lane.b32.xlu0 %v1988, 32
    %v1994 = vpop.permute.xlu0 %1993
    %v1997 = vadd.f32 %v1977, %v1992
    %v1998 = vadd.f32 %v1978, %v1994
    %v1999 = vtanh.pop %v1997
    %v2000 = vtanh.pop %v1998
    %2003 = vrot.lane.b32.xlu0 %v1999, 64
    %v2004 = vpop.permute.xlu0 %2003
    %2005 = vrot.lane.b32.xlu0 %v2000, 64
    %v2006 = vpop.permute.xlu0 %2005
    %v2009 = vmul.f32 %v1964, %v2004
    %v2010 = vmul.f32 %v1966, %v2006
    %v2011 = vxor.u32 %v1953, 2147483648
    %v2012 = vxor.u32 %v1954, 2147483648
    %v2013 = vmul.f32 %v2011, 1.442695
    %v2014 = vpow.pop %v2013
    %v2015 = vmul.f32 %v2012, 1.442695
    %v2016 = vpow.pop %v2015
    %v2017 = vadd.f32 %v2014, 1.0
    %v2018 = vadd.f32 %v2016, 1.0
    %v2019 = vrcp.pop %v2017
    %v2020 = vmul.f32 1.0, %v2019
    %v2021 = vrcp.pop %v2018
    %v2022 = vmul.f32 1.0, %v2021
    %v2023 = vtanh.pop %v1953
    %v2024 = vtanh.pop %v1954
    %v2025 = vrot.slane %v1890, 2
    %v2026 = vrot.slane %v1890, 3
    %2027 = vrot.lane.b32.xlu0 %v2025, 32
    %v2028 = vpop.permute.xlu0 %2027
    %2029 = vrot.lane.b32.xlu0 %v2026, 32
    %v2030 = vpop.permute.xlu0 %2029
    %v2033 = vmul.f32 %v2020, %v2028
    %v2034 = vmul.f32 %v2022, %v2030
    %2037 = vrot.lane.b32.xlu0 %v2023, 64
    %v2038 = vpop.permute.xlu0 %2037
    %2039 = vrot.lane.b32.xlu0 %v2024, 64
    %v2040 = vpop.permute.xlu0 %2039
    %v2043 = vmul.f32 %v2020, %v2038
    %v2044 = vmul.f32 %v2022, %v2040
    %2047 = vrot.lane.b32.xlu0 %v2043, 32
    %v2048 = vpop.permute.xlu0 %2047
    %2049 = vrot.lane.b32.xlu0 %v2044, 32
    %v2050 = vpop.permute.xlu0 %2049
    %v2053 = vadd.f32 %v2033, %v2048
    %v2054 = vadd.f32 %v2034, %v2050
    %v2055 = vtanh.pop %v2053
    %v2056 = vtanh.pop %v2054
    %2059 = vrot.lane.b32.xlu0 %v2055, 64
    %v2060 = vpop.permute.xlu0 %2059
    %2061 = vrot.lane.b32.xlu0 %v2056, 64
    %v2062 = vpop.permute.xlu0 %2061
    %v2065 = vmul.f32 %v2020, %v2060
    %v2066 = vmul.f32 %v2022, %v2062
    %v2067 = vstv %s1891
    %vm2068 = vcmp.lt.s32.totalorder %v2067, %v120
    %v2069 = vstv %s1892
    %vm2070 = vcmp.lt.s32.totalorder %v2069, %v120
    %v2071 = vsel %vm2068, 1, 0
    %2072 = vset.pattern.permute.xlu0 0
    %2073 = vperm.xlu0 %2072, %v2071
    %v2074 = vpop.permute.xlu0 %2073
    %vm2075 = vcmp.eq.s32.totalorder %v2074, 1
    %v2078 = vrot.slane %v2010, 7
    %v2079 = vsel %vm336, %v2078, %v2009
    %2080 = vrot.lane.b32.xlu0 %v2079, 32
    %v2081 = vpop.permute.xlu0 %2080
    %v2083 = vsel %vm2075, %v2081, 0.0
    %v2086 = vunpack.c.l.s4 1966171168
    %v2087 = vunpack.c.0.s8 %v2086
    %v2088 = vlaneseq
    %v2089 = vshrl.u32 %v2088, 7
    %v2090 = vsub.s32 %v2087, %v2089
    %v2091 = vrot.slane %v2083, %v2090
    %v2092 = vcombine.high %v2091, %v2091
    %v2094 = vunpack.c.l.s4 1966171168
    %v2095 = vunpack.c.0.s8 %v2094
    %v2096 = vlaneseq
    %v2097 = vshrl.u32 %v2096, 7
    %v2098 = vsub.s32 %v2095, %v2097
    %v2099 = vrot.slane %v2091, %v2098
    %v2101 = vunpack.c.l.s4 1966171168
    %v2102 = vunpack.c.0.s8 %v2101
    %v2103 = vlaneseq
    %v2104 = vshrl.u32 %v2103, 7
    %v2105 = vsub.s32 %v2102, %v2104
    %v2106 = vrot.slane %v2092, %v2105
    %2109 = vst.msk [vmem:[%s4 + $0x6] sm:$0x1] %vm367, %v2099
    %2110 = vst.msk [vmem:[%s4 + $0xe] sm:$0x1] %vm367, %v2106
    %v2111 = vsel %vm2070, 1, 0
    %2112 = vset.pattern.permute.xlu0 0
    %2113 = vperm.xlu0 %2112, %v2111
    %v2114 = vpop.permute.xlu0 %2113
    %vm2115 = vcmp.eq.s32.totalorder %v2114, 1
    %v2118 = vrot.slane %v2066, 7
    %v2119 = vsel %vm336, %v2118, %v2065
    %2120 = vrot.lane.b32.xlu0 %v2119, 32
    %v2121 = vpop.permute.xlu0 %2120
    %v2123 = vsel %vm2115, %v2121, 0.0
    %v2126 = vunpack.c.l.s4 1966171168
    %v2127 = vunpack.c.0.s8 %v2126
    %v2128 = vlaneseq
    %v2129 = vshrl.u32 %v2128, 7
    %v2130 = vsub.s32 %v2127, %v2129
    %v2131 = vrot.slane %v2123, %v2130
    %v2132 = vcombine.high %v2131, %v2131
    %v2134 = vunpack.c.l.s4 1966171168
    %v2135 = vunpack.c.0.s8 %v2134
    %v2136 = vlaneseq
    %v2137 = vshrl.u32 %v2136, 7
    %v2138 = vsub.s32 %v2135, %v2137
    %v2139 = vrot.slane %v2131, %v2138
    %v2141 = vunpack.c.l.s4 1966171168
    %v2142 = vunpack.c.0.s8 %v2141
    %v2143 = vlaneseq
    %v2144 = vshrl.u32 %v2143, 7
    %v2145 = vsub.s32 %v2142, %v2144
    %v2146 = vrot.slane %v2132, %v2145
    %2149 = vst.msk [vmem:[%s110 + $0x1] sm:$0x1] %vm367, %v2139
    %2150 = vst.msk [vmem:[%s110 + $0x9] sm:$0x1] %vm367, %v2146
    %v2151 = vsel %vm2075, %v2081, %v1869
    %v2153 = vrot.slane %v1869, 2
    %v2155 = vsel %vm2115, %v2121, %v2153
    %v2157 = vrot.slane %v2155, 6
    %v2159 = vsel %vm418, %v2151, %v2157
    %v2162 = vrot.slane %v1998, 7
    %v2163 = vsel %vm336, %v2162, %v1997
    %2164 = vrot.lane.b32.xlu0 %v2163, 96
    %v2165 = vpop.permute.xlu0 %2164
    %v2167 = vsel %vm2075, %v2165, %v1890
    %v2170 = vrot.slane %v2054, 7
    %v2171 = vsel %vm336, %v2170, %v2053
    %2172 = vrot.lane.b32.xlu0 %v2171, 96
    %v2173 = vpop.permute.xlu0 %2172
    %v2176 = vsel %vm2115, %v2173, %v2025
    %v2178 = vrot.slane %v2176, 6
    %v2180 = vsel %vm418, %v2167, %v2178
    %s2181 = sadd.s32 %s127, 7
    %s2182 = ssub.s32 0, %s127
    %v2183 = vpack.c.bf16 %v2159, %v2159
    %v2185 = vsel %vm150, %v2183, 0
    %2187 = vmatprep.subr.bf16.mxu0 %v143
    %2188 = vmatpush1.bf16.msra.mxu0 %v142
    %2189 = vmatprep.subr.bf16.mxu0 %v145
    %2190 = vmatpush1.bf16.msra.mxu0 %v144
    %2191 = vmatprep.subr.bf16.mxu0 0
    %2192 = vmatpush1.bf16.msra.mxu0 0
    %2193 = vmatprep.subr.bf16.mxu0 0
    %2194 = vmatpush1.bf16.msra.mxu0 0
    %2195 = vmatprep.subr.bf16.mxu0 0
    %2196 = vmatpush1.bf16.msra.mxu0 0
    %2197 = vmatprep.subr.bf16.mxu0 0
    %2198 = vmatpush1.bf16.msra.mxu0 0
    %2199 = vmatprep.subr.bf16.mxu0 0
    %2200 = vmatpush1.bf16.msra.mxu0 0
    %2201 = vmatprep.subr.bf16.mxu0 0
    %2202 = vmatpush1.bf16.msra.mxu0 0
    %2203 = vmatprep.subr.bf16.mxu0 0
    %2204 = vmatpush1.bf16.msra.mxu0 0
    %2205 = vmatprep.subr.bf16.mxu0 0
    %2206 = vmatpush1.bf16.msra.mxu0 0
    %2207 = vmatprep.subr.bf16.mxu0 0
    %2208 = vmatpush1.bf16.msra.mxu0 0
    %2209 = vmatprep.subr.bf16.mxu0 0
    %2210 = vmatpush1.bf16.msra.mxu0 0
    %2211 = vmatprep.subr.bf16.mxu0 0
    %2212 = vmatpush1.bf16.msra.mxu0 0
    %2213 = vmatprep.subr.bf16.mxu0 0
    %2214 = vmatpush1.bf16.msra.mxu0 0
    %2215 = vmatprep.subr.bf16.mxu0 0
    %2216 = vmatpush1.bf16.msra.mxu0 0
    %2217 = vmatprep.subr.bf16.mxu0 0
    %2218 = vmatpush1.bf16.msra.mxu0 0
    %2219 = vmatprep.mubr.bf16.mxu0 0
    %2220 = vmatmul.mubr.bf16.gmra.mrb[0].mxu0 %v2185
    %v2221 = vpop.f32.mrb[0].mxu0
    %v2222 = vadd.f32 0.0, %v2221
    %v2223 = vpop.f32.mrb[0].mxu0
    %v2224 = vadd.f32 0.0, %v2223
    %v2225 = vpop.f32.mrb[0].mxu0
    %v2226 = vpop.f32.mrb[0].mxu0
    %2227 = vdwg.mxu0
    %v2228 = vld [vmem:[#allocation4 + $0x7] sm:$0x1]
    %v2229 = vld [vmem:[#allocation4 + $0xf] sm:$0x1]
    %v2231 = vrot.slane %v2222, 1
    %v2234 = vadd.f32 %v2228, %v2222
    %v2235 = vadd.f32 %v2229, %v2231
    %v2236 = vld [vmem:[#allocation5] sm:$0x1]
    %v2237 = vld [vmem:[#allocation5 + $0x8] sm:$0x1]
    %v2239 = vrot.slane %v2224, 2
    %v2240 = vrot.slane %v2224, 3
    %v2243 = vadd.f32 %v2236, %v2239
    %v2244 = vadd.f32 %v2237, %v2240
    %v2245 = vxor.u32 %v2234, 2147483648
    %v2246 = vxor.u32 %v2235, 2147483648
    %v2247 = vmul.f32 %v2245, 1.442695
    %v2248 = vpow.pop %v2247
    %v2249 = vmul.f32 %v2246, 1.442695
    %v2250 = vpow.pop %v2249
    %v2251 = vadd.f32 %v2248, 1.0
    %v2252 = vadd.f32 %v2250, 1.0
    %v2253 = vrcp.pop %v2251
    %v2254 = vmul.f32 1.0, %v2253
    %v2255 = vrcp.pop %v2252
    %v2256 = vmul.f32 1.0, %v2255
    %v2257 = vtanh.pop %v2234
    %v2258 = vtanh.pop %v2235
    %v2260 = vrot.slane %v2180, 1
    %2261 = vrot.lane.b32.xlu0 %v2180, 32
    %v2262 = vpop.permute.xlu0 %2261
    %2263 = vrot.lane.b32.xlu0 %v2260, 32
    %v2264 = vpop.permute.xlu0 %2263
    %v2267 = vmul.f32 %v2254, %v2262
    %v2268 = vmul.f32 %v2256, %v2264
    %2271 = vrot.lane.b32.xlu0 %v2257, 64
    %v2272 = vpop.permute.xlu0 %2271
    %2273 = vrot.lane.b32.xlu0 %v2258, 64
    %v2274 = vpop.permute.xlu0 %2273
    %v2277 = vmul.f32 %v2254, %v2272
    %v2278 = vmul.f32 %v2256, %v2274
    %2281 = vrot.lane.b32.xlu0 %v2277, 32
    %v2282 = vpop.permute.xlu0 %2281
    %2283 = vrot.lane.b32.xlu0 %v2278, 32
    %v2284 = vpop.permute.xlu0 %2283
    %v2287 = vadd.f32 %v2267, %v2282
    %v2288 = vadd.f32 %v2268, %v2284
    %v2289 = vtanh.pop %v2287
    %v2290 = vtanh.pop %v2288
    %2293 = vrot.lane.b32.xlu0 %v2289, 64
    %v2294 = vpop.permute.xlu0 %2293
    %2295 = vrot.lane.b32.xlu0 %v2290, 64
    %v2296 = vpop.permute.xlu0 %2295
    %v2299 = vmul.f32 %v2254, %v2294
    %v2300 = vmul.f32 %v2256, %v2296
    %v2301 = vxor.u32 %v2243, 2147483648
    %v2302 = vxor.u32 %v2244, 2147483648
    %v2303 = vmul.f32 %v2301, 1.442695
    %v2304 = vpow.pop %v2303
    %v2305 = vmul.f32 %v2302, 1.442695
    %v2306 = vpow.pop %v2305
    %v2307 = vadd.f32 %v2304, 1.0
    %v2308 = vadd.f32 %v2306, 1.0
    %v2309 = vrcp.pop %v2307
    %v2310 = vmul.f32 1.0, %v2309
    %v2311 = vrcp.pop %v2308
    %v2312 = vmul.f32 1.0, %v2311
    %v2313 = vtanh.pop %v2243
    %v2314 = vtanh.pop %v2244
    %v2315 = vrot.slane %v2180, 2
    %v2316 = vrot.slane %v2180, 3
    %2317 = vrot.lane.b32.xlu0 %v2315, 32
    %v2318 = vpop.permute.xlu0 %2317
    %2319 = vrot.lane.b32.xlu0 %v2316, 32
    %v2320 = vpop.permute.xlu0 %2319
    %v2323 = vmul.f32 %v2310, %v2318
    %v2324 = vmul.f32 %v2312, %v2320
    %2327 = vrot.lane.b32.xlu0 %v2313, 64
    %v2328 = vpop.permute.xlu0 %2327
    %2329 = vrot.lane.b32.xlu0 %v2314, 64
    %v2330 = vpop.permute.xlu0 %2329
    %v2333 = vmul.f32 %v2310, %v2328
    %v2334 = vmul.f32 %v2312, %v2330
    %2337 = vrot.lane.b32.xlu0 %v2333, 32
    %v2338 = vpop.permute.xlu0 %2337
    %2339 = vrot.lane.b32.xlu0 %v2334, 32
    %v2340 = vpop.permute.xlu0 %2339
    %v2343 = vadd.f32 %v2323, %v2338
    %v2344 = vadd.f32 %v2324, %v2340
    %v2345 = vtanh.pop %v2343
    %v2346 = vtanh.pop %v2344
    %2349 = vrot.lane.b32.xlu0 %v2345, 64
    %v2350 = vpop.permute.xlu0 %2349
    %2351 = vrot.lane.b32.xlu0 %v2346, 64
    %v2352 = vpop.permute.xlu0 %2351
    %v2355 = vmul.f32 %v2310, %v2350
    %v2356 = vmul.f32 %v2312, %v2352
    %v2357 = vstv %s2181
    %vm2358 = vcmp.lt.s32.totalorder %v2357, %v120
    %v2359 = vstv %s2182
    %vm2360 = vcmp.lt.s32.totalorder %v2359, %v120
    %v2361 = vsel %vm2358, 1, 0
    %2362 = vset.pattern.permute.xlu0 0
    %2363 = vperm.xlu0 %2362, %v2361
    %v2364 = vpop.permute.xlu0 %2363
    %vm2365 = vcmp.eq.s32.totalorder %v2364, 1
    %v2368 = vrot.slane %v2300, 7
    %v2369 = vsel %vm336, %v2368, %v2299
    %2370 = vrot.lane.b32.xlu0 %v2369, 32
    %v2371 = vpop.permute.xlu0 %2370
    %v2373 = vsel %vm2365, %v2371, 0.0
    %v2376 = vunpack.c.l.s4 1966171168
    %v2377 = vunpack.c.0.s8 %v2376
    %v2378 = vlaneseq
    %v2379 = vshrl.u32 %v2378, 7
    %v2380 = vsub.s32 %v2377, %v2379
    %v2381 = vrot.slane %v2373, %v2380
    %v2382 = vcombine.high %v2381, %v2381
    %v2384 = vunpack.c.l.s4 1966171168
    %v2385 = vunpack.c.0.s8 %v2384
    %v2386 = vlaneseq
    %v2387 = vshrl.u32 %v2386, 7
    %v2388 = vsub.s32 %v2385, %v2387
    %v2389 = vrot.slane %v2381, %v2388
    %v2391 = vunpack.c.l.s4 1966171168
    %v2392 = vunpack.c.0.s8 %v2391
    %v2393 = vlaneseq
    %v2394 = vshrl.u32 %v2393, 7
    %v2395 = vsub.s32 %v2392, %v2394
    %v2396 = vrot.slane %v2382, %v2395
    %2399 = vst.msk [vmem:[%s4 + $0x7] sm:$0x1] %vm367, %v2389
    %2400 = vst.msk [vmem:[%s4 + $0xf] sm:$0x1] %vm367, %v2396
    %v2401 = vsel %vm2360, 1, 0
    %2402 = vset.pattern.permute.xlu0 0
    %2403 = vperm.xlu0 %2402, %v2401
    %v2404 = vpop.permute.xlu0 %2403
    %vm2405 = vcmp.eq.s32.totalorder %v2404, 1
    %v2408 = vrot.slane %v2356, 7
    %v2409 = vsel %vm336, %v2408, %v2355
    %2410 = vrot.lane.b32.xlu0 %v2409, 32
    %v2411 = vpop.permute.xlu0 %2410
    %v2413 = vsel %vm2405, %v2411, 0.0
    %v2416 = vunpack.c.l.s4 1966171168
    %v2417 = vunpack.c.0.s8 %v2416
    %v2418 = vlaneseq
    %v2419 = vshrl.u32 %v2418, 7
    %v2420 = vsub.s32 %v2417, %v2419
    %v2421 = vrot.slane %v2413, %v2420
    %v2422 = vcombine.high %v2421, %v2421
    %v2424 = vunpack.c.l.s4 1966171168
    %v2425 = vunpack.c.0.s8 %v2424
    %v2426 = vlaneseq
    %v2427 = vshrl.u32 %v2426, 7
    %v2428 = vsub.s32 %v2425, %v2427
    %v2429 = vrot.slane %v2421, %v2428
    %v2431 = vunpack.c.l.s4 1966171168
    %v2432 = vunpack.c.0.s8 %v2431
    %v2433 = vlaneseq
    %v2434 = vshrl.u32 %v2433, 7
    %v2435 = vsub.s32 %v2432, %v2434
    %v2436 = vrot.slane %v2422, %v2435
    %2439 = vst.msk [vmem:[%s110] sm:$0x1] %vm367, %v2429
    %2440 = vst.msk [vmem:[%s110 + $0x8] sm:$0x1] %vm367, %v2436
    %v2441 = vsel %vm2365, %v2371, %v2159
    %v2443 = vrot.slane %v2159, 2
    %v2445 = vsel %vm2405, %v2411, %v2443
    %v2447 = vrot.slane %v2445, 6
    %v2449 = vsel %vm418, %v2441, %v2447
    %v2452 = vrot.slane %v2288, 7
    %v2453 = vsel %vm336, %v2452, %v2287
    %2454 = vrot.lane.b32.xlu0 %v2453, 96
    %v2455 = vpop.permute.xlu0 %2454
    %v2457 = vsel %vm2365, %v2455, %v2180
    %v2460 = vrot.slane %v2344, 7
    %v2461 = vsel %vm336, %v2460, %v2343
    %2462 = vrot.lane.b32.xlu0 %v2461, 96
    %v2463 = vpop.permute.xlu0 %2462
    %v2466 = vsel %vm2405, %v2463, %v2315
    %v2468 = vrot.slane %v2466, 6
    %v2470 = vsel %vm418, %v2457, %v2468
    %vm2471 = vcmask 257024
    %2472 = vst.msk [vmem:[#allocation2] sm:$0xf] %vm2471, %v2449
    %2473 = vst.msk [vmem:[#allocation3] sm:$0xf] %vm2471, %v2470
    %s2474 = ssub.s32 0, 0
    %p2475 = scmp.lt.s32.totalorder %s2474, 0
    %s2476 = scalar_select %p2475, %s2474, 0
    %s2477 = smul.addr %s2476, 8
    %s2478 = scalar_lea.vmem %s5, %s2477
    // Predicated region
    $region98: #{encoder_forward.5} parent=1 // pred_check
      _
    $region99: #{encoder_forward.5} parent=1 // pred_check_branch
      %2480 = sbr.rel (0) target = $region101
    $region100: #{encoder_forward.5} parent=1 // pred_region
      _
    $region101: #{encoder_forward.5} parent=1 // pred_fallthru
      _
    // Predicated region
    $region102: #{encoder_forward.5} parent=1 // pred_check
      _
    $region103: #{encoder_forward.5} parent=1 // pred_check_branch
      %2482 = sbr.rel (0) target = $region105
    $region104: #{encoder_forward.5} parent=1 // pred_region
      %s2483 = ssub.s32 0, 0
    $region105: #{encoder_forward.5} parent=1 // pred_fallthru
      _
    // Predicated region
    $region106: #{encoder_forward.5} parent=1 // pred_check
      _
    $region107: #{encoder_forward.5} parent=1 // pred_check_branch
      %2485 = sbr.rel (0) target = $region109
    $region108: #{encoder_forward.5} parent=1 // pred_region
      _
    $region109: #{encoder_forward.5} parent=1 // pred_fallthru
      _
    // Predicated region
    $region110: #{encoder_forward.5} parent=1 // pred_check
      _
    $region111: #{encoder_forward.5} parent=1 // pred_check_branch
      %2487 = sbr.rel (0) target = $region113
    $region112: #{encoder_forward.5} parent=1 // pred_region
      %s2488 = ssub.s32 0, 0
      %p2489 = scmp.lt.s32.totalorder %s2488, 0
      %s2490 = scalar_select %p2489, %s2488, 0
      %s2491 = smul.addr %s2490, 8
      %s2492 = scalar_lea.vmem %s5, %s2491
    $region113: #{encoder_forward.5} parent=1 // pred_fallthru
      _

</llo_original>
